<compile_context>
chip_gen: v5e
topology: v5e:2x2
jax: 0.10.0
libtpu: 0.0.40
codegen_flags: <defaults>
</compile_context>

<pallas_src>
import functools

import jax
import jax.numpy as jnp
from jax import lax
from jax.experimental import pallas as pl
from jax.experimental.pallas import tpu as pltpu

NEG_INF = -1e9
_MIB = 1024 * 1024


# ---------------------------------------------------------------------------
# Tiling helpers
# ---------------------------------------------------------------------------

def _round_up(x, m):
    return ((x + m - 1) // m) * m


def _m_tiles(M):
    """Row tile (multiple of 8, capped at 256), padded M, #tiles (>=2 when possible)."""
    M8 = _round_up(M, 8)
    if M8 >= 512:
        tm = 256
    elif M8 >= 16:
        tm = _round_up(M8 // 2, 8)   # ensure >= 2 parallel row tiles (v7x megacore)
    else:
        tm = M8
    M_pad = _round_up(M, tm)
    return tm, M_pad, M_pad // tm


def _feature_tile(N):
    """Lane-dim tile: largest of 512/256/128 that divides N, else the full dim."""
    for t in (512, 256, 128):
        if N % t == 0:
            return t
    return N


def _vmem_limit(block_bytes, scratch_bytes=0):
    """Double-buffered block footprint + scratch + slack, clamped to 48 MiB
    (headroom under v7x's 64 MiB physical VMEM, above v5e's 16 MiB default)."""
    return int(min(48 * _MIB, max(16 * _MIB, 2 * block_bytes + scratch_bytes + 2 * _MIB)))


# ---------------------------------------------------------------------------
# RMSNorm scale pre-pass (per-row rsqrt(mean(x^2)+eps), computed once)
# ---------------------------------------------------------------------------

def _rms_scale_kernel(x_ref, o_ref):
    x = x_ref[...].astype(jnp.float32)
    o_ref[...] = lax.rsqrt(jnp.mean(x * x, axis=-1, keepdims=True) + 1e-6)


def rms_scale(x2d):
    M, K = x2d.shape
    tm, M_pad, n_m = _m_tiles(M)
    x_p = x2d if M_pad == M else jnp.pad(x2d, ((0, M_pad - M), (0, 0)))
    out = pl.pallas_call(
        _rms_scale_kernel,
        out_shape=jax.ShapeDtypeStruct((M_pad, 1), jnp.float32),
        grid=(n_m,),
        in_specs=[pl.BlockSpec((tm, K), lambda i: (i, 0))],
        out_specs=pl.BlockSpec((tm, 1), lambda i: (i, 0)),
        compiler_params=pltpu.CompilerParams(
            dimension_semantics=("parallel",),
            vmem_limit_bytes=_vmem_limit(tm * K * x2d.dtype.itemsize + tm * 4)),
    )(x_p)
    return out if M_pad == M else out[:M]


# ---------------------------------------------------------------------------
# Fused [RMSNorm-scale*gamma] -> matmul (bf16 MXU, K-tiled f32 accumulator)
#       -> [ReLU] -> [+residual] -> bf16 store
# ---------------------------------------------------------------------------

def _matmul_kernel(*refs, n_k, has_scale, has_gamma, relu, has_residual):
    idx = 0
    x_ref = refs[idx]; idx += 1
    scale_ref = None
    if has_scale:
        scale_ref = refs[idx]; idx += 1
    gamma_ref = None
    if has_gamma:
        gamma_ref = refs[idx]; idx += 1
    w_ref = refs[idx]; idx += 1
    res_ref = None
    if has_residual:
        res_ref = refs[idx]; idx += 1
    out_ref = refs[idx]; idx += 1
    acc_ref = refs[idx]

    k = pl.program_id(2)

    @pl.when(k == 0)
    def _init():
        acc_ref[...] = jnp.zeros_like(acc_ref)

    x = x_ref[...]
    if has_scale or has_gamma:
        x = x.astype(jnp.float32)
        if has_scale:
            x = x * scale_ref[...]          # (tm, 1) per-row rms scale
        if has_gamma:
            x = x * gamma_ref[...]          # (1, tk) norm weight
    x = x.astype(jnp.bfloat16)
    acc_ref[...] += jnp.dot(x, w_ref[...].astype(jnp.bfloat16),
                            preferred_element_type=jnp.float32)

    @pl.when(k == n_k - 1)
    def _finalize():
        out = acc_ref[...]
        if relu:
            out = jnp.maximum(out, 0.0)
        if has_residual:
            out = out + res_ref[...].astype(jnp.float32)
        out_ref[...] = out.astype(out_ref.dtype)


def fused_linear(x2d, w, *, scale=None, gamma=None, relu=False, residual=None,
                 out_dtype=jnp.bfloat16):
    """y = [scale*gamma*x] @ w  (+ReLU) (+residual), K-tiled, bf16 output."""
    M, K = x2d.shape
    Kw, N = w.shape
    assert K == Kw
    tm, M_pad, n_m = _m_tiles(M)
    tk = _feature_tile(K)
    tn = _feature_tile(N)
    n_k = K // tk
    n_n = N // tn

    def pad_m(a):
        return a if M_pad == M else jnp.pad(a, ((0, M_pad - M), (0, 0)))

    x_p = pad_m(x2d)
    inputs = [x_p]
    in_specs = [pl.BlockSpec((tm, tk), lambda i, j, k: (i, k))]
    blk = tm * tk * x_p.dtype.itemsize
    if scale is not None:
        inputs.append(pad_m(scale.astype(jnp.float32)))
        in_specs.append(pl.BlockSpec((tm, 1), lambda i, j, k: (i, 0)))
        blk += tm * 4
    if gamma is not None:
        inputs.append(gamma.reshape(1, K).astype(jnp.float32))
        in_specs.append(pl.BlockSpec((1, tk), lambda i, j, k: (0, k)))
        blk += tk * 4
    inputs.append(w)
    in_specs.append(pl.BlockSpec((tk, tn), lambda i, j, k: (k, j)))
    blk += tk * tn * w.dtype.itemsize
    if residual is not None:
        inputs.append(pad_m(residual))
        in_specs.append(pl.BlockSpec((tm, tn), lambda i, j, k: (i, j)))
        blk += tm * tn * residual.dtype.itemsize
    blk += tm * tn * jnp.dtype(out_dtype).itemsize

    kernel = functools.partial(
        _matmul_kernel, n_k=n_k,
        has_scale=scale is not None, has_gamma=gamma is not None,
        relu=relu, has_residual=residual is not None)

    out = pl.pallas_call(
        kernel,
        out_shape=jax.ShapeDtypeStruct((M_pad, N), out_dtype),
        grid=(n_m, n_n, n_k),
        in_specs=in_specs,
        out_specs=pl.BlockSpec((tm, tn), lambda i, j, k: (i, j)),
        scratch_shapes=[pltpu.VMEM((tm, tn), jnp.float32)],
        compiler_params=pltpu.CompilerParams(
            dimension_semantics=("parallel", "parallel", "arbitrary"),
            vmem_limit_bytes=_vmem_limit(blk, tm * tn * 4)),
    )(*inputs)
    return out if M_pad == M else out[:M]


# ---------------------------------------------------------------------------
# Attention: reads packed Q/K/V, writes lane-dense (S, D) context,
# causal mask generated in-kernel, padding bias stays (B, 1, Sk).
# ---------------------------------------------------------------------------

def _attn_kernel(*refs, n_heads, d_head, causal, cross):
    D = n_heads * d_head
    if cross:
        q_ref, kv_ref, b_ref, o_ref = refs
        q_all = q_ref[...]
        kv = kv_ref[...]
        k_all = kv[:, :D]
        v_all = kv[:, D:]
    else:
        qkv_ref, b_ref, o_ref = refs
        qkv = qkv_ref[...]
        q_all = qkv[:, :D]
        k_all = qkv[:, D:2 * D]
        v_all = qkv[:, 2 * D:]

    Sq = q_all.shape[0]
    Sk = k_all.shape[0]
    mask = b_ref[0].astype(jnp.float32)                     # (1, Sk) key-padding bias
    if causal:
        rows = lax.broadcasted_iota(jnp.int32, (Sq, Sk), 0)
        cols = lax.broadcasted_iota(jnp.int32, (Sq, Sk), 1)
        mask = mask + jnp.where(rows >= cols, 0.0, NEG_INF).astype(jnp.float32)

    # T5 attention: no 1/sqrt(d) scaling (folded into weight init).
    outs = []
    for h in range(n_heads):                                # static per-head slices
        lo = h * d_head
        qh = q_all[:, lo:lo + d_head].astype(jnp.bfloat16)
        kh = k_all[:, lo:lo + d_head].astype(jnp.bfloat16)
        vh = v_all[:, lo:lo + d_head].astype(jnp.bfloat16)
        s = jnp.dot(qh, kh.T, preferred_element_type=jnp.float32) + mask
        s = s - jnp.max(s, axis=-1, keepdims=True)
        p = jnp.exp(s)
        p = p * pl.reciprocal(jnp.sum(p, axis=-1, keepdims=True), approx=True)
        outs.append(jnp.dot(p.astype(jnp.bfloat16), vh,
                            preferred_element_type=jnp.float32))
    # lane-dense (Sq, H*dh) == (Sq, D) store, no wrapper transpose needed.
    o_ref[...] = jnp.concatenate(outs, axis=-1).astype(o_ref.dtype)


def attention_self(qkv, bias, B, S, n_heads, causal):
    D3 = qkv.shape[1]
    D = D3 // 3
    kernel = functools.partial(_attn_kernel, n_heads=n_heads, d_head=D // n_heads,
                               causal=causal, cross=False)
    blk = S * D3 * qkv.dtype.itemsize + S * 4 + S * D * 2
    return pl.pallas_call(
        kernel,
        out_shape=jax.ShapeDtypeStruct((B * S, D), jnp.bfloat16),
        grid=(B,),
        in_specs=[pl.BlockSpec((S, D3), lambda b: (b, 0)),
                  pl.BlockSpec((1, 1, S), lambda b: (b, 0, 0))],
        out_specs=pl.BlockSpec((S, D), lambda b: (b, 0)),
        compiler_params=pltpu.CompilerParams(
            dimension_semantics=("parallel",),
            vmem_limit_bytes=_vmem_limit(blk)),
    )(qkv, bias)


def attention_cross(q, kv, bias, B, Sq, Sk, n_heads):
    D = q.shape[1]
    kernel = functools.partial(_attn_kernel, n_heads=n_heads, d_head=D // n_heads,
                               causal=False, cross=True)
    blk = Sq * D * 2 + Sk * 2 * D * 2 + Sk * 4 + Sq * D * 2
    return pl.pallas_call(
        kernel,
        out_shape=jax.ShapeDtypeStruct((B * Sq, D), jnp.bfloat16),
        grid=(B,),
        in_specs=[pl.BlockSpec((Sq, D), lambda b: (b, 0)),
                  pl.BlockSpec((Sk, 2 * D), lambda b: (b, 0)),
                  pl.BlockSpec((1, 1, Sk), lambda b: (b, 0, 0))],
        out_specs=pl.BlockSpec((Sq, D), lambda b: (b, 0)),
        compiler_params=pltpu.CompilerParams(
            dimension_semantics=("parallel",),
            vmem_limit_bytes=_vmem_limit(blk)),
    )(q, kv, bias)


# ---------------------------------------------------------------------------
# Fused final RMSNorm + task head Linear + LogSoftmax (lane/sublane padded)
# ---------------------------------------------------------------------------

def _head_kernel(h_ref, g_ref, w_ref, b_ref, o_ref):
    x = h_ref[...].astype(jnp.float32)
    var = jnp.mean(x * x, axis=-1, keepdims=True)
    x = x * lax.rsqrt(var + 1e-6) * g_ref[...]
    logits = jnp.dot(x.astype(jnp.bfloat16), w_ref[...].astype(jnp.bfloat16),
                     preferred_element_type=jnp.float32) + b_ref[...]
    m = jnp.max(logits, axis=-1, keepdims=True)
    z = logits - m
    lse = jnp.log(jnp.sum(jnp.exp(z), axis=-1, keepdims=True))
    o_ref[...] = z - lse


def task_head_logsoftmax(h, gamma, w, b):
    B, D = h.shape
    _, L = w.shape
    Bp = max(8, _round_up(B, 8))
    Lp = max(128, _round_up(L, 128))
    h_p = jnp.pad(h, ((0, Bp - B), (0, 0)))
    w_p = jnp.pad(w, ((0, 0), (0, Lp - L)))
    # padded labels get -1e30 bias -> exp() == 0 -> no effect on the log-softmax.
    b_p = jnp.pad(b.astype(jnp.float32), (0, Lp - L), constant_values=-1e30)
    blk = Bp * D * h_p.dtype.itemsize + D * 4 + D * Lp * 2 + Lp * 4 + Bp * Lp * 4
    out = pl.pallas_call(
        _head_kernel,
        out_shape=jax.ShapeDtypeStruct((Bp, Lp), jnp.float32),
        in_specs=[
            pl.BlockSpec((Bp, D), lambda: (0, 0)),
            pl.BlockSpec((1, D), lambda: (0, 0)),
            pl.BlockSpec((D, Lp), lambda: (0, 0)),
            pl.BlockSpec((1, Lp), lambda: (0, 0)),
        ],
        out_specs=pl.BlockSpec((Bp, Lp), lambda: (0, 0)),
        compiler_params=pltpu.CompilerParams(vmem_limit_bytes=_vmem_limit(blk)),
    )(h_p, gamma.reshape(1, D), w_p, b_p.reshape(1, Lp))
    return out[:B, :L]


# ---------------------------------------------------------------------------
# Model glue (plain JAX around the Pallas kernels; everything stays 2D bf16)
# ---------------------------------------------------------------------------

def mha_self(x2d, bias, gamma, wqkv, wo, n_heads, B, S, causal):
    scale = rms_scale(x2d)
    qkv = fused_linear(x2d, wqkv, scale=scale, gamma=gamma)      # (B*S, 3D) bf16
    ctx = attention_self(qkv, bias, B, S, n_heads, causal)       # (B*S, D) bf16
    return fused_linear(ctx, wo, residual=x2d)                   # out-proj + residual


def mha_cross(x2d, kv2d, bias, gamma, wq, wkv, wo, n_heads, B, Sq, Sk, kv_gamma):
    scale_q = rms_scale(x2d)
    q = fused_linear(x2d, wq, scale=scale_q, gamma=gamma)        # (B*Sq, D)
    scale_kv = rms_scale(kv2d)
    kvp = fused_linear(kv2d, wkv, scale=scale_kv, gamma=kv_gamma)  # (B*Sk, 2D)
    ctx = attention_cross(q, kvp, bias, B, Sq, Sk, n_heads)      # (B*Sq, D)
    return fused_linear(ctx, wo, residual=x2d)


def ffn_block(x2d, gamma, wi, wo):
    scale = rms_scale(x2d)
    mid = fused_linear(x2d, wi, scale=scale, gamma=gamma, relu=True)   # (B*S, d_ff)
    return fused_linear(mid, wo, residual=x2d)


def extend_mask(mask):
    # (B, Sk) 1/0 -> additive (B, 1, Sk) bias (broadcast over heads & queries).
    return (1.0 - mask.astype(jnp.float32))[:, None, :] * NEG_INF


def distill_backbone_forward(params, input_ids, attention_mask,
                             decoder_input_ids, decoder_attention_mask, n_heads):
    emb = params["shared_embedding"]
    B, Se = input_ids.shape
    _, Sd = decoder_input_ids.shape
    D = emb.shape[1]

    enc_bias = extend_mask(attention_mask)                 # (B, 1, Se)
    dec_bias = extend_mask(decoder_attention_mask)         # (B, 1, Sd); causal in-kernel

    # ---------------- encoder (1 layer) ----------------
    x2d = jnp.take(emb, input_ids.reshape(-1), axis=0).astype(jnp.bfloat16)
    pe = params["enc"]
    h = mha_self(x2d, enc_bias, pe["ln1"], pe["wqkv"], pe["o"], n_heads, B, Se,
                 causal=False)
    h = ffn_block(h, pe["ln2"], pe["wi"], pe["wo"])
    enc_h = h  # encoder final RMSNorm (ln_f) fused into the cross-attn KV projection

    # ---------------- decoder (1 layer) ----------------
    y2d = jnp.take(emb, decoder_input_ids.reshape(-1), axis=0).astype(jnp.bfloat16)
    pd = params["dec"]
    h = mha_self(y2d, dec_bias, pd["ln1"], pd["sqkv"], pd["so"], n_heads, B, Sd,
                 causal=True)
    h = mha_cross(h, enc_h, enc_bias, pd["ln2"], pd["cq"], pd["ckv"], pd["co"],
                  n_heads, B, Sd, Se, kv_gamma=pe["ln_f"])
    h = ffn_block(h, pd["ln3"], pd["wi"], pd["wo"])

    # ---------------- task head ----------------
    # RMSNorm is per-row, so slice the last decoder position first and fuse the
    # decoder final norm into the head kernel.
    last_hidden = h.reshape(B, Sd, D)[:, -1, :]            # (B, D) bf16
    return task_head_logsoftmax(last_hidden, pd["ln_f"],
                                params["head_w"], params["head_b"])


# ---------------------------------------------------------------------------
# Deterministic parameter init (weights stored bf16 for the MXU, norms f32)
# ---------------------------------------------------------------------------

def init_params(key, vocab, d_model, d_ff, num_labels):
    ks = iter(jax.random.split(key, 32))
    D = d_model

    def w(shape, scale=0.05):
        return (scale * jax.random.normal(next(ks), shape)).astype(jnp.float32)

    def bf(shape, scale=0.05):
        return w(shape, scale).astype(jnp.bfloat16)

    def cat_bf(n, shape, scale=0.05):
        return jnp.concatenate([w(shape, scale) for _ in range(n)],
                               axis=1).astype(jnp.bfloat16)

    ones = lambda n: jnp.ones((n,), jnp.float32)

    return {
        "shared_embedding": w((vocab, D), 0.1),
        "enc": {
            "ln1": ones(D), "ln2": ones(D), "ln_f": ones(D),
            "wqkv": cat_bf(3, (D, D)),          # [wq | wk | wv]
            "o": bf((D, D)),
            "wi": bf((D, d_ff)), "wo": bf((d_ff, D)),
        },
        "dec": {
            "ln1": ones(D), "ln2": ones(D), "ln3": ones(D), "ln_f": ones(D),
            "sqkv": cat_bf(3, (D, D)),          # self-attn [wq | wk | wv]
            "so": bf((D, D)),
            "cq": bf((D, D)),
            "ckv": cat_bf(2, (D, D)),           # cross-attn [wk | wv]
            "co": bf((D, D)),
            "wi": bf((D, d_ff)), "wo": bf((d_ff, D)),
        },
        "head_w": bf((D, num_labels), 0.1),
        "head_b": jnp.zeros((num_labels,), jnp.float32),
    }


# ---------------------------------------------------------------------------
# main
# ---------------------------------------------------------------------------

if __name__ == "__main__":
    B, Se, Sd = 2, 8, 8
    D, H, FF = 32, 4, 64
    VOCAB, NUM_LABELS = 64, 5

    key = jax.random.PRNGKey(0)
    kp, k1, k2 = jax.random.split(key, 3)
    params = init_params(kp, VOCAB, D, FF, NUM_LABELS)

    input_ids = jax.random.randint(k1, (B, Se), 0, VOCAB, dtype=jnp.int32)
    decoder_input_ids = jax.random.randint(k2, (B, Sd), 0, VOCAB, dtype=jnp.int32)
    attention_mask = jnp.ones((B, Se), jnp.int32)
    decoder_attention_mask = jnp.ones((B, Sd), jnp.int32)

    fwd = jax.jit(functools.partial(distill_backbone_forward, n_heads=H))
    out = fwd(params, input_ids, attention_mask,
              decoder_input_ids, decoder_attention_mask)
    out = jax.block_until_ready(out)

    assert out.shape == (B, NUM_LABELS)
    # log-softmax rows must sum to ~1 in prob space
    assert bool(jnp.allclose(jnp.sum(jnp.exp(out), axis=-1), 1.0, atol=1e-4))
    print("KERNEL_OK")
</pallas_src>

<mosaic_0001>
module attributes {stable_mosaic.version = 11 : i64} {
  func.func @_attn_kernel(%arg0: i32, %arg1: memref<8x96xbf16, #tpu.memory_space<vmem>>, %arg2: memref<1x1x8xf32, #tpu.memory_space<vmem>>, %arg3: memref<8x32xbf16, #tpu.memory_space<vmem>>) attributes {dimension_semantics = [#tpu.dimension_semantics<parallel>], iteration_bounds = array<i64: 2>, scalar_prefetch = 0 : i64, scratch_operands = 0 : i64, tpu.core_type = #tpu.core_type<tc>, window_params = [{transform_indices = @transform_0, window_bounds = array<i64: 8, 96>}, {transform_indices = @transform_1, window_bounds = array<i64: 1, 1, 8>}, {transform_indices = @transform_2, window_bounds = array<i64: 8, 32>}]} {
    %c0 = arith.constant 0 : index
    %c0_0 = arith.constant 0 : index
    %0 = vector.load %arg1[%c0, %c0_0] : memref<8x96xbf16, #tpu.memory_space<vmem>>, vector<8x96xbf16>
    %1 = vector.extract_strided_slice %0 {offsets = [0, 0], sizes = [8, 32], strides = [1, 1]} : vector<8x96xbf16> to vector<8x32xbf16>
    %2 = vector.extract_strided_slice %0 {offsets = [0, 32], sizes = [8, 32], strides = [1, 1]} : vector<8x96xbf16> to vector<8x32xbf16>
    %3 = vector.extract_strided_slice %0 {offsets = [0, 64], sizes = [8, 32], strides = [1, 1]} : vector<8x96xbf16> to vector<8x32xbf16>
    %c0_1 = arith.constant 0 : index
    %c0_2 = arith.constant 0 : index
    %c0_3 = arith.constant 0 : index
    %4 = vector.load %arg2[%c0_1, %c0_2, %c0_3] : memref<1x1x8xf32, #tpu.memory_space<vmem>>, vector<1x1x8xf32>
    %5 = vector.shape_cast %4 : vector<1x1x8xf32> to vector<1x8xf32>
    %6 = tpu.iota {dimensions = array<i32: 0>} : vector<8x8xi32>
    %7 = tpu.iota {dimensions = array<i32: 1>} : vector<8x8xi32>
    %8 = arith.cmpi sge, %6, %7 : vector<8x8xi32>
    %cst = arith.constant 0.000000e+00 : f32
    %cst_4 = arith.constant -1.000000e+09 : f32
    %9 = vector.broadcast %cst : f32 to vector<8x8xf32>
    %10 = vector.broadcast %cst_4 : f32 to vector<8x8xf32>
    %11 = arith.select %8, %9, %10 : vector<8x8xi1>, vector<8x8xf32>
    %12 = vector.broadcast %5 : vector<1x8xf32> to vector<8x8xf32>
    %13 = arith.addf %12, %11 : vector<8x8xf32>
    %14 = vector.extract_strided_slice %1 {offsets = [0, 0], sizes = [8, 8], strides = [1, 1]} : vector<8x32xbf16> to vector<8x8xbf16>
    %15 = vector.extract_strided_slice %2 {offsets = [0, 0], sizes = [8, 8], strides = [1, 1]} : vector<8x32xbf16> to vector<8x8xbf16>
    %16 = vector.extract_strided_slice %3 {offsets = [0, 0], sizes = [8, 8], strides = [1, 1]} : vector<8x32xbf16> to vector<8x8xbf16>
    %17 = tpu.transpose %15, [1, 0] : vector<8x8xbf16> -> vector<8x8xbf16>
    %cst_5 = arith.constant dense<0.000000e+00> : vector<8x8xf32>
    %18 = tpu.matmul %14, %17, %cst_5 {dimension_numbers = #tpu.dot_dimension_numbers<[1], [0], [0], [1], [0, 0, 1, 1], [], []>} : vector<8x8xbf16>, vector<8x8xbf16>, vector<8x8xf32> -> vector<8x8xf32>
    %19 = arith.addf %18, %13 : vector<8x8xf32>
    %cst_6 = arith.constant dense<0xFF800000> : vector<8xf32>
    %20 = vector.multi_reduction <maximumf>, %19, %cst_6 [1] : vector<8x8xf32> to vector<8xf32>
    %21 = vector.shape_cast %20 : vector<8xf32> to vector<8x1xf32>
    %22 = vector.broadcast %21 : vector<8x1xf32> to vector<8x8xf32>
    %23 = arith.subf %19, %22 : vector<8x8xf32>
    %24 = math.exp %23 : vector<8x8xf32>
    %cst_7 = arith.constant dense<0.000000e+00> : vector<8xf32>
    %25 = vector.multi_reduction <add>, %24, %cst_7 [1] : vector<8x8xf32> to vector<8xf32>
    %26 = vector.shape_cast %25 : vector<8xf32> to vector<8x1xf32>
    %27 = tpu.reciprocal %26 {approx = true} : vector<8x1xf32> -> vector<8x1xf32>
    %28 = vector.broadcast %27 : vector<8x1xf32> to vector<8x8xf32>
    %29 = arith.mulf %24, %28 : vector<8x8xf32>
    %30 = arith.truncf %29 : vector<8x8xf32> to vector<8x8xbf16>
    %cst_8 = arith.constant dense<0.000000e+00> : vector<8x8xf32>
    %31 = tpu.matmul %30, %16, %cst_8 {dimension_numbers = #tpu.dot_dimension_numbers<[1], [0], [0], [1], [0, 0, 1, 1], [], []>} : vector<8x8xbf16>, vector<8x8xbf16>, vector<8x8xf32> -> vector<8x8xf32>
    %32 = vector.extract_strided_slice %1 {offsets = [0, 8], sizes = [8, 8], strides = [1, 1]} : vector<8x32xbf16> to vector<8x8xbf16>
    %33 = vector.extract_strided_slice %2 {offsets = [0, 8], sizes = [8, 8], strides = [1, 1]} : vector<8x32xbf16> to vector<8x8xbf16>
    %34 = vector.extract_strided_slice %3 {offsets = [0, 8], sizes = [8, 8], strides = [1, 1]} : vector<8x32xbf16> to vector<8x8xbf16>
    %35 = tpu.transpose %33, [1, 0] : vector<8x8xbf16> -> vector<8x8xbf16>
    %cst_9 = arith.constant dense<0.000000e+00> : vector<8x8xf32>
    %36 = tpu.matmul %32, %35, %cst_9 {dimension_numbers = #tpu.dot_dimension_numbers<[1], [0], [0], [1], [0, 0, 1, 1], [], []>} : vector<8x8xbf16>, vector<8x8xbf16>, vector<8x8xf32> -> vector<8x8xf32>
    %37 = arith.addf %36, %13 : vector<8x8xf32>
    %cst_10 = arith.constant dense<0xFF800000> : vector<8xf32>
    %38 = vector.multi_reduction <maximumf>, %37, %cst_10 [1] : vector<8x8xf32> to vector<8xf32>
    %39 = vector.shape_cast %38 : vector<8xf32> to vector<8x1xf32>
    %40 = vector.broadcast %39 : vector<8x1xf32> to vector<8x8xf32>
    %41 = arith.subf %37, %40 : vector<8x8xf32>
    %42 = math.exp %41 : vector<8x8xf32>
    %cst_11 = arith.constant dense<0.000000e+00> : vector<8xf32>
    %43 = vector.multi_reduction <add>, %42, %cst_11 [1] : vector<8x8xf32> to vector<8xf32>
    %44 = vector.shape_cast %43 : vector<8xf32> to vector<8x1xf32>
    %45 = tpu.reciprocal %44 {approx = true} : vector<8x1xf32> -> vector<8x1xf32>
    %46 = vector.broadcast %45 : vector<8x1xf32> to vector<8x8xf32>
    %47 = arith.mulf %42, %46 : vector<8x8xf32>
    %48 = arith.truncf %47 : vector<8x8xf32> to vector<8x8xbf16>
    %cst_12 = arith.constant dense<0.000000e+00> : vector<8x8xf32>
    %49 = tpu.matmul %48, %34, %cst_12 {dimension_numbers = #tpu.dot_dimension_numbers<[1], [0], [0], [1], [0, 0, 1, 1], [], []>} : vector<8x8xbf16>, vector<8x8xbf16>, vector<8x8xf32> -> vector<8x8xf32>
    %50 = vector.extract_strided_slice %1 {offsets = [0, 16], sizes = [8, 8], strides = [1, 1]} : vector<8x32xbf16> to vector<8x8xbf16>
    %51 = vector.extract_strided_slice %2 {offsets = [0, 16], sizes = [8, 8], strides = [1, 1]} : vector<8x32xbf16> to vector<8x8xbf16>
    %52 = vector.extract_strided_slice %3 {offsets = [0, 16], sizes = [8, 8], strides = [1, 1]} : vector<8x32xbf16> to vector<8x8xbf16>
    %53 = tpu.transpose %51, [1, 0] : vector<8x8xbf16> -> vector<8x8xbf16>
    %cst_13 = arith.constant dense<0.000000e+00> : vector<8x8xf32>
    %54 = tpu.matmul %50, %53, %cst_13 {dimension_numbers = #tpu.dot_dimension_numbers<[1], [0], [0], [1], [0, 0, 1, 1], [], []>} : vector<8x8xbf16>, vector<8x8xbf16>, vector<8x8xf32> -> vector<8x8xf32>
    %55 = arith.addf %54, %13 : vector<8x8xf32>
    %cst_14 = arith.constant dense<0xFF800000> : vector<8xf32>
    %56 = vector.multi_reduction <maximumf>, %55, %cst_14 [1] : vector<8x8xf32> to vector<8xf32>
    %57 = vector.shape_cast %56 : vector<8xf32> to vector<8x1xf32>
    %58 = vector.broadcast %57 : vector<8x1xf32> to vector<8x8xf32>
    %59 = arith.subf %55, %58 : vector<8x8xf32>
    %60 = math.exp %59 : vector<8x8xf32>
    %cst_15 = arith.constant dense<0.000000e+00> : vector<8xf32>
    %61 = vector.multi_reduction <add>, %60, %cst_15 [1] : vector<8x8xf32> to vector<8xf32>
    %62 = vector.shape_cast %61 : vector<8xf32> to vector<8x1xf32>
    %63 = tpu.reciprocal %62 {approx = true} : vector<8x1xf32> -> vector<8x1xf32>
    %64 = vector.broadcast %63 : vector<8x1xf32> to vector<8x8xf32>
    %65 = arith.mulf %60, %64 : vector<8x8xf32>
    %66 = arith.truncf %65 : vector<8x8xf32> to vector<8x8xbf16>
    %cst_16 = arith.constant dense<0.000000e+00> : vector<8x8xf32>
    %67 = tpu.matmul %66, %52, %cst_16 {dimension_numbers = #tpu.dot_dimension_numbers<[1], [0], [0], [1], [0, 0, 1, 1], [], []>} : vector<8x8xbf16>, vector<8x8xbf16>, vector<8x8xf32> -> vector<8x8xf32>
    %68 = vector.extract_strided_slice %1 {offsets = [0, 24], sizes = [8, 8], strides = [1, 1]} : vector<8x32xbf16> to vector<8x8xbf16>
    %69 = vector.extract_strided_slice %2 {offsets = [0, 24], sizes = [8, 8], strides = [1, 1]} : vector<8x32xbf16> to vector<8x8xbf16>
    %70 = vector.extract_strided_slice %3 {offsets = [0, 24], sizes = [8, 8], strides = [1, 1]} : vector<8x32xbf16> to vector<8x8xbf16>
    %71 = tpu.transpose %69, [1, 0] : vector<8x8xbf16> -> vector<8x8xbf16>
    %cst_17 = arith.constant dense<0.000000e+00> : vector<8x8xf32>
    %72 = tpu.matmul %68, %71, %cst_17 {dimension_numbers = #tpu.dot_dimension_numbers<[1], [0], [0], [1], [0, 0, 1, 1], [], []>} : vector<8x8xbf16>, vector<8x8xbf16>, vector<8x8xf32> -> vector<8x8xf32>
    %73 = arith.addf %72, %13 : vector<8x8xf32>
    %cst_18 = arith.constant dense<0xFF800000> : vector<8xf32>
    %74 = vector.multi_reduction <maximumf>, %73, %cst_18 [1] : vector<8x8xf32> to vector<8xf32>
    %75 = vector.shape_cast %74 : vector<8xf32> to vector<8x1xf32>
    %76 = vector.broadcast %75 : vector<8x1xf32> to vector<8x8xf32>
    %77 = arith.subf %73, %76 : vector<8x8xf32>
    %78 = math.exp %77 : vector<8x8xf32>
    %cst_19 = arith.constant dense<0.000000e+00> : vector<8xf32>
    %79 = vector.multi_reduction <add>, %78, %cst_19 [1] : vector<8x8xf32> to vector<8xf32>
    %80 = vector.shape_cast %79 : vector<8xf32> to vector<8x1xf32>
    %81 = tpu.reciprocal %80 {approx = true} : vector<8x1xf32> -> vector<8x1xf32>
    %82 = vector.broadcast %81 : vector<8x1xf32> to vector<8x8xf32>
    %83 = arith.mulf %78, %82 : vector<8x8xf32>
    %84 = arith.truncf %83 : vector<8x8xf32> to vector<8x8xbf16>
    %cst_20 = arith.constant dense<0.000000e+00> : vector<8x8xf32>
    %85 = tpu.matmul %84, %70, %cst_20 {dimension_numbers = #tpu.dot_dimension_numbers<[1], [0], [0], [1], [0, 0, 1, 1], [], []>} : vector<8x8xbf16>, vector<8x8xbf16>, vector<8x8xf32> -> vector<8x8xf32>
    %86 = tpu.concatenate %31, %49, %67, %85 in 1 : vector<8x8xf32>, vector<8x8xf32>, vector<8x8xf32>, vector<8x8xf32> -> vector<8x32xf32>
    %87 = arith.truncf %86 : vector<8x32xf32> to vector<8x32xbf16>
    %c0_21 = arith.constant 0 : index
    %c0_22 = arith.constant 0 : index
    %88 = vector.load %arg3[%c0_21, %c0_22] : memref<8x32xbf16, #tpu.memory_space<vmem>>, vector<8x32xbf16>
    tpu.vector_store %arg3[%c0_21, %c0_22], %87 {strides = array<i32>} : memref<8x32xbf16, #tpu.memory_space<vmem>>, vector<8x32xbf16>,
    return
  }
  func.func @transform_0(%arg0: i32) -> (i32, i32) {
    %c0_i32 = arith.constant 0 : i32
    %c0_i32_0 = arith.constant 0 : i32
    return %arg0, %c0_i32 : i32, i32
  }
  func.func @transform_1(%arg0: i32) -> (i32, i32, i32) {
    %c0_i32 = arith.constant 0 : i32
    %c0_i32_0 = arith.constant 0 : i32
    %c0_i32_1 = arith.constant 0 : i32
    return %arg0, %c0_i32, %c0_i32_0 : i32, i32, i32
  }
  func.func @transform_2(%arg0: i32) -> (i32, i32) {
    %c0_i32 = arith.constant 0 : i32
    %c0_i32_0 = arith.constant 0 : i32
    return %arg0, %c0_i32 : i32, i32
  }
}

module attributes {stable_mosaic.version = 11 : i64} {
  func.func @_rms_scale_kernel(%arg0: i32, %arg1: memref<8x32xbf16, #tpu.memory_space<vmem>>, %arg2: memref<8x1xf32, #tpu.memory_space<vmem>>) attributes {dimension_semantics = [#tpu.dimension_semantics<parallel>], iteration_bounds = array<i64: 2>, scalar_prefetch = 0 : i64, scratch_operands = 0 : i64, tpu.core_type = #tpu.core_type<tc>, window_params = [{transform_indices = @transform_0, window_bounds = array<i64: 8, 32>}, {transform_indices = @transform_1, window_bounds = array<i64: 8, 1>}]} {
    %c0 = arith.constant 0 : index
    %c0_0 = arith.constant 0 : index
    %0 = vector.load %arg1[%c0, %c0_0] : memref<8x32xbf16, #tpu.memory_space<vmem>>, vector<8x32xbf16>
    %1 = arith.extf %0 : vector<8x32xbf16> to vector<8x32xf32>
    %2 = arith.mulf %1, %1 : vector<8x32xf32>
    %cst = arith.constant dense<0.000000e+00> : vector<8xf32>
    %3 = vector.multi_reduction <add>, %2, %cst [1] : vector<8x32xf32> to vector<8xf32>
    %4 = vector.shape_cast %3 : vector<8xf32> to vector<8x1xf32>
    %cst_1 = arith.constant 3.200000e+01 : f32
    %5 = vector.broadcast %cst_1 : f32 to vector<8x1xf32>
    %6 = arith.divf %4, %5 : vector<8x1xf32>
    %cst_2 = arith.constant 9.99999997E-7 : f32
    %7 = vector.broadcast %cst_2 : f32 to vector<8x1xf32>
    %8 = arith.addf %6, %7 : vector<8x1xf32>
    %9 = math.rsqrt %8 : vector<8x1xf32>
    %c0_3 = arith.constant 0 : index
    %c0_4 = arith.constant 0 : index
    %10 = vector.load %arg2[%c0_3, %c0_4] : memref<8x1xf32, #tpu.memory_space<vmem>>, vector<8x1xf32>
    tpu.vector_store %arg2[%c0_3, %c0_4], %9 {strides = array<i32>} : memref<8x1xf32, #tpu.memory_space<vmem>>, vector<8x1xf32>,
    return
  }
  func.func @transform_0(%arg0: i32) -> (i32, i32) {
    %c0_i32 = arith.constant 0 : i32
    %c0_i32_0 = arith.constant 0 : i32
    return %arg0, %c0_i32 : i32, i32
  }
  func.func @transform_1(%arg0: i32) -> (i32, i32) {
    %c0_i32 = arith.constant 0 : i32
    %c0_i32_0 = arith.constant 0 : i32
    return %arg0, %c0_i32 : i32, i32
  }
}

module attributes {stable_mosaic.version = 11 : i64} {
  func.func @_matmul_kernel(%arg0: i32, %arg1: i32, %arg2: i32, %arg3: memref<8x32xbf16, #tpu.memory_space<vmem>>, %arg4: memref<8x1xf32, #tpu.memory_space<vmem>>, %arg5: memref<1x32xf32, #tpu.memory_space<vmem>>, %arg6: memref<32x96xbf16, #tpu.memory_space<vmem>>, %arg7: memref<8x96xbf16, #tpu.memory_space<vmem>>, %arg8: memref<8x96xf32, #tpu.memory_space<vmem>>) attributes {dimension_semantics = [#tpu.dimension_semantics<parallel>, #tpu.dimension_semantics<parallel>, #tpu.dimension_semantics<arbitrary>], iteration_bounds = array<i64: 2, 1, 1>, scalar_prefetch = 0 : i64, scratch_operands = 1 : i64, tpu.core_type = #tpu.core_type<tc>, window_params = [{transform_indices = @transform_0, window_bounds = array<i64: 8, 32>}, {transform_indices = @transform_1, window_bounds = array<i64: 8, 1>}, {transform_indices = @transform_2, window_bounds = array<i64: 1, 32>}, {transform_indices = @transform_3, window_bounds = array<i64: 32, 96>}, {transform_indices = @transform_4, window_bounds = array<i64: 8, 96>}]} {
    %c0_i32 = arith.constant 0 : i32
    %0 = arith.cmpi eq, %arg2, %c0_i32 : i32
    %1 = arith.extui %0 : i1 to i32
    %c0_i32_0 = arith.constant 0 : i32
    %2 = arith.cmpi ne, %1, %c0_i32_0 : i32
    scf.if %2 {
      %cst_14 = arith.constant 0.000000e+00 : f32
      %20 = vector.broadcast %cst_14 : f32 to vector<8x96xf32>
      %c0_15 = arith.constant 0 : index
      %c0_16 = arith.constant 0 : index
      %21 = vector.load %arg8[%c0_15, %c0_16] : memref<8x96xf32, #tpu.memory_space<vmem>>, vector<8x96xf32>
      tpu.vector_store %arg8[%c0_15, %c0_16], %20 {strides = array<i32>} : memref<8x96xf32, #tpu.memory_space<vmem>>, vector<8x96xf32>,
    } else {
    }
    %c0 = arith.constant 0 : index
    %c0_1 = arith.constant 0 : index
    %3 = vector.load %arg3[%c0, %c0_1] : memref<8x32xbf16, #tpu.memory_space<vmem>>, vector<8x32xbf16>
    %4 = arith.extf %3 : vector<8x32xbf16> to vector<8x32xf32>
    %c0_2 = arith.constant 0 : index
    %c0_3 = arith.constant 0 : index
    %5 = vector.load %arg4[%c0_2, %c0_3] : memref<8x1xf32, #tpu.memory_space<vmem>>, vector<8x1xf32>
    %6 = vector.broadcast %5 : vector<8x1xf32> to vector<8x32xf32>
    %7 = arith.mulf %4, %6 : vector<8x32xf32>
    %c0_4 = arith.constant 0 : index
    %c0_5 = arith.constant 0 : index
    %8 = vector.load %arg5[%c0_4, %c0_5] : memref<1x32xf32, #tpu.memory_space<vmem>>, vector<1x32xf32>
    %9 = vector.broadcast %8 : vector<1x32xf32> to vector<8x32xf32>
    %10 = arith.mulf %7, %9 : vector<8x32xf32>
    %11 = arith.truncf %10 : vector<8x32xf32> to vector<8x32xbf16>
    %c0_6 = arith.constant 0 : index
    %c0_7 = arith.constant 0 : index
    %12 = vector.load %arg8[%c0_6, %c0_7] : memref<8x96xf32, #tpu.memory_space<vmem>>, vector<8x96xf32>
    %c0_8 = arith.constant 0 : index
    %c0_9 = arith.constant 0 : index
    %13 = vector.load %arg6[%c0_8, %c0_9] : memref<32x96xbf16, #tpu.memory_space<vmem>>, vector<32x96xbf16>
    %cst = arith.constant dense<0.000000e+00> : vector<8x96xf32>
    %14 = tpu.matmul %11, %13, %cst {dimension_numbers = #tpu.dot_dimension_numbers<[1], [0], [0], [1], [0, 0, 1, 1], [], []>} : vector<8x32xbf16>, vector<32x96xbf16>, vector<8x96xf32> -> vector<8x96xf32>
    %15 = arith.addf %12, %14 : vector<8x96xf32>
    %c0_10 = arith.constant 0 : index
    %c0_11 = arith.constant 0 : index
    %16 = vector.load %arg8[%c0_10, %c0_11] : memref<8x96xf32, #tpu.memory_space<vmem>>, vector<8x96xf32>
    tpu.vector_store %arg8[%c0_10, %c0_11], %15 {strides = array<i32>} : memref<8x96xf32, #tpu.memory_space<vmem>>, vector<8x96xf32>,
    %c0_i32_12 = arith.constant 0 : i32
    %17 = arith.cmpi eq, %arg2, %c0_i32_12 : i32
    %18 = arith.extui %17 : i1 to i32
    %c0_i32_13 = arith.constant 0 : i32
    %19 = arith.cmpi ne, %18, %c0_i32_13 : i32
    scf.if %19 {
      %c0_14 = arith.constant 0 : index
      %c0_15 = arith.constant 0 : index
      %20 = vector.load %arg8[%c0_14, %c0_15] : memref<8x96xf32, #tpu.memory_space<vmem>>, vector<8x96xf32>
      %21 = arith.truncf %20 : vector<8x96xf32> to vector<8x96xbf16>
      %c0_16 = arith.constant 0 : index
      %c0_17 = arith.constant 0 : index
      %22 = vector.load %arg7[%c0_16, %c0_17] : memref<8x96xbf16, #tpu.memory_space<vmem>>, vector<8x96xbf16>
      tpu.vector_store %arg7[%c0_16, %c0_17], %21 {strides = array<i32>} : memref<8x96xbf16, #tpu.memory_space<vmem>>, vector<8x96xbf16>,
    } else {
    }
    return
  }
  func.func @transform_0(%arg0: i32, %arg1: i32, %arg2: i32) -> (i32, i32) {
    %c0_i32 = arith.constant 0 : i32
    return %arg0, %arg2 : i32, i32
  }
  func.func @transform_1(%arg0: i32, %arg1: i32, %arg2: i32) -> (i32, i32) {
    %c0_i32 = arith.constant 0 : i32
    %c0_i32_0 = arith.constant 0 : i32
    return %arg0, %c0_i32 : i32, i32
  }
  func.func @transform_2(%arg0: i32, %arg1: i32, %arg2: i32) -> (i32, i32) {
    %c0_i32 = arith.constant 0 : i32
    %c0_i32_0 = arith.constant 0 : i32
    return %c0_i32, %arg2 : i32, i32
  }
  func.func @transform_3(%arg0: i32, %arg1: i32, %arg2: i32) -> (i32, i32) {
    %c0_i32 = arith.constant 0 : i32
    return %arg2, %arg1 : i32, i32
  }
  func.func @transform_4(%arg0: i32, %arg1: i32, %arg2: i32) -> (i32, i32) {
    %c0_i32 = arith.constant 0 : i32
    return %arg0, %arg1 : i32, i32
  }
}

module attributes {stable_mosaic.version = 11 : i64} {
  func.func @_matmul_kernel(%arg0: i32, %arg1: i32, %arg2: i32, %arg3: memref<8x32xbf16, #tpu.memory_space<vmem>>, %arg4: memref<32x32xbf16, #tpu.memory_space<vmem>>, %arg5: memref<8x32xbf16, #tpu.memory_space<vmem>>, %arg6: memref<8x32xbf16, #tpu.memory_space<vmem>>, %arg7: memref<8x32xf32, #tpu.memory_space<vmem>>) attributes {dimension_semantics = [#tpu.dimension_semantics<parallel>, #tpu.dimension_semantics<parallel>, #tpu.dimension_semantics<arbitrary>], iteration_bounds = array<i64: 2, 1, 1>, scalar_prefetch = 0 : i64, scratch_operands = 1 : i64, tpu.core_type = #tpu.core_type<tc>, window_params = [{transform_indices = @transform_0, window_bounds = array<i64: 8, 32>}, {transform_indices = @transform_1, window_bounds = array<i64: 32, 32>}, {transform_indices = @transform_2, window_bounds = array<i64: 8, 32>}, {transform_indices = @transform_3, window_bounds = array<i64: 8, 32>}]} {
    %c0_i32 = arith.constant 0 : i32
    %0 = arith.cmpi eq, %arg2, %c0_i32 : i32
    %1 = arith.extui %0 : i1 to i32
    %c0_i32_0 = arith.constant 0 : i32
    %2 = arith.cmpi ne, %1, %c0_i32_0 : i32
    scf.if %2 {
      %cst_10 = arith.constant 0.000000e+00 : f32
      %12 = vector.broadcast %cst_10 : f32 to vector<8x32xf32>
      %c0_11 = arith.constant 0 : index
      %c0_12 = arith.constant 0 : index
      %13 = vector.load %arg7[%c0_11, %c0_12] : memref<8x32xf32, #tpu.memory_space<vmem>>, vector<8x32xf32>
      tpu.vector_store %arg7[%c0_11, %c0_12], %12 {strides = array<i32>} : memref<8x32xf32, #tpu.memory_space<vmem>>, vector<8x32xf32>,
    } else {
    }
    %c0 = arith.constant 0 : index
    %c0_1 = arith.constant 0 : index
    %3 = vector.load %arg3[%c0, %c0_1] : memref<8x32xbf16, #tpu.memory_space<vmem>>, vector<8x32xbf16>
    %c0_2 = arith.constant 0 : index
    %c0_3 = arith.constant 0 : index
    %4 = vector.load %arg7[%c0_2, %c0_3] : memref<8x32xf32, #tpu.memory_space<vmem>>, vector<8x32xf32>
    %c0_4 = arith.constant 0 : index
    %c0_5 = arith.constant 0 : index
    %5 = vector.load %arg4[%c0_4, %c0_5] : memref<32x32xbf16, #tpu.memory_space<vmem>>, vector<32x32xbf16>
    %cst = arith.constant dense<0.000000e+00> : vector<8x32xf32>
    %6 = tpu.matmul %3, %5, %cst {dimension_numbers = #tpu.dot_dimension_numbers<[1], [0], [0], [1], [0, 0, 1, 1], [], []>} : vector<8x32xbf16>, vector<32x32xbf16>, vector<8x32xf32> -> vector<8x32xf32>
    %7 = arith.addf %4, %6 : vector<8x32xf32>
    %c0_6 = arith.constant 0 : index
    %c0_7 = arith.constant 0 : index
    %8 = vector.load %arg7[%c0_6, %c0_7] : memref<8x32xf32, #tpu.memory_space<vmem>>, vector<8x32xf32>
    tpu.vector_store %arg7[%c0_6, %c0_7], %7 {strides = array<i32>} : memref<8x32xf32, #tpu.memory_space<vmem>>, vector<8x32xf32>,
    %c0_i32_8 = arith.constant 0 : i32
    %9 = arith.cmpi eq, %arg2, %c0_i32_8 : i32
    %10 = arith.extui %9 : i1 to i32
    %c0_i32_9 = arith.constant 0 : i32
    %11 = arith.cmpi ne, %10, %c0_i32_9 : i32
    scf.if %11 {
      %c0_10 = arith.constant 0 : index
      %c0_11 = arith.constant 0 : index
      %12 = vector.load %arg7[%c0_10, %c0_11] : memref<8x32xf32, #tpu.memory_space<vmem>>, vector<8x32xf32>
      %c0_12 = arith.constant 0 : index
      %c0_13 = arith.constant 0 : index
      %13 = vector.load %arg5[%c0_12, %c0_13] : memref<8x32xbf16, #tpu.memory_space<vmem>>, vector<8x32xbf16>
      %14 = arith.extf %13 : vector<8x32xbf16> to vector<8x32xf32>
      %15 = arith.addf %12, %14 : vector<8x32xf32>
      %16 = arith.truncf %15 : vector<8x32xf32> to vector<8x32xbf16>
      %c0_14 = arith.constant 0 : index
      %c0_15 = arith.constant 0 : index
      %17 = vector.load %arg6[%c0_14, %c0_15] : memref<8x32xbf16, #tpu.memory_space<vmem>>, vector<8x32xbf16>
      tpu.vector_store %arg6[%c0_14, %c0_15], %16 {strides = array<i32>} : memref<8x32xbf16, #tpu.memory_space<vmem>>, vector<8x32xbf16>,
    } else {
    }
    return
  }
  func.func @transform_0(%arg0: i32, %arg1: i32, %arg2: i32) -> (i32, i32) {
    %c0_i32 = arith.constant 0 : i32
    return %arg0, %arg2 : i32, i32
  }
  func.func @transform_1(%arg0: i32, %arg1: i32, %arg2: i32) -> (i32, i32) {
    %c0_i32 = arith.constant 0 : i32
    return %arg2, %arg1 : i32, i32
  }
  func.func @transform_2(%arg0: i32, %arg1: i32, %arg2: i32) -> (i32, i32) {
    %c0_i32 = arith.constant 0 : i32
    return %arg0, %arg1 : i32, i32
  }
  func.func @transform_3(%arg0: i32, %arg1: i32, %arg2: i32) -> (i32, i32) {
    %c0_i32 = arith.constant 0 : i32
    return %arg0, %arg1 : i32, i32
  }
}

module attributes {stable_mosaic.version = 11 : i64} {
  func.func @_attn_kernel(%arg0: i32, %arg1: memref<8x96xbf16, #tpu.memory_space<vmem>>, %arg2: memref<1x1x8xf32, #tpu.memory_space<vmem>>, %arg3: memref<8x32xbf16, #tpu.memory_space<vmem>>) attributes {dimension_semantics = [#tpu.dimension_semantics<parallel>], iteration_bounds = array<i64: 2>, scalar_prefetch = 0 : i64, scratch_operands = 0 : i64, tpu.core_type = #tpu.core_type<tc>, window_params = [{transform_indices = @transform_0, window_bounds = array<i64: 8, 96>}, {transform_indices = @transform_1, window_bounds = array<i64: 1, 1, 8>}, {transform_indices = @transform_2, window_bounds = array<i64: 8, 32>}]} {
    %c0 = arith.constant 0 : index
    %c0_0 = arith.constant 0 : index
    %0 = vector.load %arg1[%c0, %c0_0] : memref<8x96xbf16, #tpu.memory_space<vmem>>, vector<8x96xbf16>
    %1 = vector.extract_strided_slice %0 {offsets = [0, 0], sizes = [8, 32], strides = [1, 1]} : vector<8x96xbf16> to vector<8x32xbf16>
    %2 = vector.extract_strided_slice %0 {offsets = [0, 32], sizes = [8, 32], strides = [1, 1]} : vector<8x96xbf16> to vector<8x32xbf16>
    %3 = vector.extract_strided_slice %0 {offsets = [0, 64], sizes = [8, 32], strides = [1, 1]} : vector<8x96xbf16> to vector<8x32xbf16>
    %c0_1 = arith.constant 0 : index
    %c0_2 = arith.constant 0 : index
    %c0_3 = arith.constant 0 : index
    %4 = vector.load %arg2[%c0_1, %c0_2, %c0_3] : memref<1x1x8xf32, #tpu.memory_space<vmem>>, vector<1x1x8xf32>
    %5 = vector.shape_cast %4 : vector<1x1x8xf32> to vector<1x8xf32>
    %6 = vector.extract_strided_slice %1 {offsets = [0, 0], sizes = [8, 8], strides = [1, 1]} : vector<8x32xbf16> to vector<8x8xbf16>
    %7 = vector.extract_strided_slice %2 {offsets = [0, 0], sizes = [8, 8], strides = [1, 1]} : vector<8x32xbf16> to vector<8x8xbf16>
    %8 = vector.extract_strided_slice %3 {offsets = [0, 0], sizes = [8, 8], strides = [1, 1]} : vector<8x32xbf16> to vector<8x8xbf16>
    %9 = tpu.transpose %7, [1, 0] : vector<8x8xbf16> -> vector<8x8xbf16>
    %cst = arith.constant dense<0.000000e+00> : vector<8x8xf32>
    %10 = tpu.matmul %6, %9, %cst {dimension_numbers = #tpu.dot_dimension_numbers<[1], [0], [0], [1], [0, 0, 1, 1], [], []>} : vector<8x8xbf16>, vector<8x8xbf16>, vector<8x8xf32> -> vector<8x8xf32>
    %11 = vector.broadcast %5 : vector<1x8xf32> to vector<8x8xf32>
    %12 = arith.addf %10, %11 : vector<8x8xf32>
    %cst_4 = arith.constant dense<0xFF800000> : vector<8xf32>
    %13 = vector.multi_reduction <maximumf>, %12, %cst_4 [1] : vector<8x8xf32> to vector<8xf32>
    %14 = vector.shape_cast %13 : vector<8xf32> to vector<8x1xf32>
    %15 = vector.broadcast %14 : vector<8x1xf32> to vector<8x8xf32>
    %16 = arith.subf %12, %15 : vector<8x8xf32>
    %17 = math.exp %16 : vector<8x8xf32>
    %cst_5 = arith.constant dense<0.000000e+00> : vector<8xf32>
    %18 = vector.multi_reduction <add>, %17, %cst_5 [1] : vector<8x8xf32> to vector<8xf32>
    %19 = vector.shape_cast %18 : vector<8xf32> to vector<8x1xf32>
    %20 = tpu.reciprocal %19 {approx = true} : vector<8x1xf32> -> vector<8x1xf32>
    %21 = vector.broadcast %20 : vector<8x1xf32> to vector<8x8xf32>
    %22 = arith.mulf %17, %21 : vector<8x8xf32>
    %23 = arith.truncf %22 : vector<8x8xf32> to vector<8x8xbf16>
    %cst_6 = arith.constant dense<0.000000e+00> : vector<8x8xf32>
    %24 = tpu.matmul %23, %8, %cst_6 {dimension_numbers = #tpu.dot_dimension_numbers<[1], [0], [0], [1], [0, 0, 1, 1], [], []>} : vector<8x8xbf16>, vector<8x8xbf16>, vector<8x8xf32> -> vector<8x8xf32>
    %25 = vector.extract_strided_slice %1 {offsets = [0, 8], sizes = [8, 8], strides = [1, 1]} : vector<8x32xbf16> to vector<8x8xbf16>
    %26 = vector.extract_strided_slice %2 {offsets = [0, 8], sizes = [8, 8], strides = [1, 1]} : vector<8x32xbf16> to vector<8x8xbf16>
    %27 = vector.extract_strided_slice %3 {offsets = [0, 8], sizes = [8, 8], strides = [1, 1]} : vector<8x32xbf16> to vector<8x8xbf16>
    %28 = tpu.transpose %26, [1, 0] : vector<8x8xbf16> -> vector<8x8xbf16>
    %cst_7 = arith.constant dense<0.000000e+00> : vector<8x8xf32>
    %29 = tpu.matmul %25, %28, %cst_7 {dimension_numbers = #tpu.dot_dimension_numbers<[1], [0], [0], [1], [0, 0, 1, 1], [], []>} : vector<8x8xbf16>, vector<8x8xbf16>, vector<8x8xf32> -> vector<8x8xf32>
    %30 = vector.broadcast %5 : vector<1x8xf32> to vector<8x8xf32>
    %31 = arith.addf %29, %30 : vector<8x8xf32>
    %cst_8 = arith.constant dense<0xFF800000> : vector<8xf32>
    %32 = vector.multi_reduction <maximumf>, %31, %cst_8 [1] : vector<8x8xf32> to vector<8xf32>
    %33 = vector.shape_cast %32 : vector<8xf32> to vector<8x1xf32>
    %34 = vector.broadcast %33 : vector<8x1xf32> to vector<8x8xf32>
    %35 = arith.subf %31, %34 : vector<8x8xf32>
    %36 = math.exp %35 : vector<8x8xf32>
    %cst_9 = arith.constant dense<0.000000e+00> : vector<8xf32>
    %37 = vector.multi_reduction <add>, %36, %cst_9 [1] : vector<8x8xf32> to vector<8xf32>
    %38 = vector.shape_cast %37 : vector<8xf32> to vector<8x1xf32>
    %39 = tpu.reciprocal %38 {approx = true} : vector<8x1xf32> -> vector<8x1xf32>
    %40 = vector.broadcast %39 : vector<8x1xf32> to vector<8x8xf32>
    %41 = arith.mulf %36, %40 : vector<8x8xf32>
    %42 = arith.truncf %41 : vector<8x8xf32> to vector<8x8xbf16>
    %cst_10 = arith.constant dense<0.000000e+00> : vector<8x8xf32>
    %43 = tpu.matmul %42, %27, %cst_10 {dimension_numbers = #tpu.dot_dimension_numbers<[1], [0], [0], [1], [0, 0, 1, 1], [], []>} : vector<8x8xbf16>, vector<8x8xbf16>, vector<8x8xf32> -> vector<8x8xf32>
    %44 = vector.extract_strided_slice %1 {offsets = [0, 16], sizes = [8, 8], strides = [1, 1]} : vector<8x32xbf16> to vector<8x8xbf16>
    %45 = vector.extract_strided_slice %2 {offsets = [0, 16], sizes = [8, 8], strides = [1, 1]} : vector<8x32xbf16> to vector<8x8xbf16>
    %46 = vector.extract_strided_slice %3 {offsets = [0, 16], sizes = [8, 8], strides = [1, 1]} : vector<8x32xbf16> to vector<8x8xbf16>
    %47 = tpu.transpose %45, [1, 0] : vector<8x8xbf16> -> vector<8x8xbf16>
    %cst_11 = arith.constant dense<0.000000e+00> : vector<8x8xf32>
    %48 = tpu.matmul %44, %47, %cst_11 {dimension_numbers = #tpu.dot_dimension_numbers<[1], [0], [0], [1], [0, 0, 1, 1], [], []>} : vector<8x8xbf16>, vector<8x8xbf16>, vector<8x8xf32> -> vector<8x8xf32>
    %49 = vector.broadcast %5 : vector<1x8xf32> to vector<8x8xf32>
    %50 = arith.addf %48, %49 : vector<8x8xf32>
    %cst_12 = arith.constant dense<0xFF800000> : vector<8xf32>
    %51 = vector.multi_reduction <maximumf>, %50, %cst_12 [1] : vector<8x8xf32> to vector<8xf32>
    %52 = vector.shape_cast %51 : vector<8xf32> to vector<8x1xf32>
    %53 = vector.broadcast %52 : vector<8x1xf32> to vector<8x8xf32>
    %54 = arith.subf %50, %53 : vector<8x8xf32>
    %55 = math.exp %54 : vector<8x8xf32>
    %cst_13 = arith.constant dense<0.000000e+00> : vector<8xf32>
    %56 = vector.multi_reduction <add>, %55, %cst_13 [1] : vector<8x8xf32> to vector<8xf32>
    %57 = vector.shape_cast %56 : vector<8xf32> to vector<8x1xf32>
    %58 = tpu.reciprocal %57 {approx = true} : vector<8x1xf32> -> vector<8x1xf32>
    %59 = vector.broadcast %58 : vector<8x1xf32> to vector<8x8xf32>
    %60 = arith.mulf %55, %59 : vector<8x8xf32>
    %61 = arith.truncf %60 : vector<8x8xf32> to vector<8x8xbf16>
    %cst_14 = arith.constant dense<0.000000e+00> : vector<8x8xf32>
    %62 = tpu.matmul %61, %46, %cst_14 {dimension_numbers = #tpu.dot_dimension_numbers<[1], [0], [0], [1], [0, 0, 1, 1], [], []>} : vector<8x8xbf16>, vector<8x8xbf16>, vector<8x8xf32> -> vector<8x8xf32>
    %63 = vector.extract_strided_slice %1 {offsets = [0, 24], sizes = [8, 8], strides = [1, 1]} : vector<8x32xbf16> to vector<8x8xbf16>
    %64 = vector.extract_strided_slice %2 {offsets = [0, 24], sizes = [8, 8], strides = [1, 1]} : vector<8x32xbf16> to vector<8x8xbf16>
    %65 = vector.extract_strided_slice %3 {offsets = [0, 24], sizes = [8, 8], strides = [1, 1]} : vector<8x32xbf16> to vector<8x8xbf16>
    %66 = tpu.transpose %64, [1, 0] : vector<8x8xbf16> -> vector<8x8xbf16>
    %cst_15 = arith.constant dense<0.000000e+00> : vector<8x8xf32>
    %67 = tpu.matmul %63, %66, %cst_15 {dimension_numbers = #tpu.dot_dimension_numbers<[1], [0], [0], [1], [0, 0, 1, 1], [], []>} : vector<8x8xbf16>, vector<8x8xbf16>, vector<8x8xf32> -> vector<8x8xf32>
    %68 = vector.broadcast %5 : vector<1x8xf32> to vector<8x8xf32>
    %69 = arith.addf %67, %68 : vector<8x8xf32>
    %cst_16 = arith.constant dense<0xFF800000> : vector<8xf32>
    %70 = vector.multi_reduction <maximumf>, %69, %cst_16 [1] : vector<8x8xf32> to vector<8xf32>
    %71 = vector.shape_cast %70 : vector<8xf32> to vector<8x1xf32>
    %72 = vector.broadcast %71 : vector<8x1xf32> to vector<8x8xf32>
    %73 = arith.subf %69, %72 : vector<8x8xf32>
    %74 = math.exp %73 : vector<8x8xf32>
    %cst_17 = arith.constant dense<0.000000e+00> : vector<8xf32>
    %75 = vector.multi_reduction <add>, %74, %cst_17 [1] : vector<8x8xf32> to vector<8xf32>
    %76 = vector.shape_cast %75 : vector<8xf32> to vector<8x1xf32>
    %77 = tpu.reciprocal %76 {approx = true} : vector<8x1xf32> -> vector<8x1xf32>
    %78 = vector.broadcast %77 : vector<8x1xf32> to vector<8x8xf32>
    %79 = arith.mulf %74, %78 : vector<8x8xf32>
    %80 = arith.truncf %79 : vector<8x8xf32> to vector<8x8xbf16>
    %cst_18 = arith.constant dense<0.000000e+00> : vector<8x8xf32>
    %81 = tpu.matmul %80, %65, %cst_18 {dimension_numbers = #tpu.dot_dimension_numbers<[1], [0], [0], [1], [0, 0, 1, 1], [], []>} : vector<8x8xbf16>, vector<8x8xbf16>, vector<8x8xf32> -> vector<8x8xf32>
    %82 = tpu.concatenate %24, %43, %62, %81 in 1 : vector<8x8xf32>, vector<8x8xf32>, vector<8x8xf32>, vector<8x8xf32> -> vector<8x32xf32>
    %83 = arith.truncf %82 : vector<8x32xf32> to vector<8x32xbf16>
    %c0_19 = arith.constant 0 : index
    %c0_20 = arith.constant 0 : index
    %84 = vector.load %arg3[%c0_19, %c0_20] : memref<8x32xbf16, #tpu.memory_space<vmem>>, vector<8x32xbf16>
    tpu.vector_store %arg3[%c0_19, %c0_20], %83 {strides = array<i32>} : memref<8x32xbf16, #tpu.memory_space<vmem>>, vector<8x32xbf16>,
    return
  }
  func.func @transform_0(%arg0: i32) -> (i32, i32) {
    %c0_i32 = arith.constant 0 : i32
    %c0_i32_0 = arith.constant 0 : i32
    return %arg0, %c0_i32 : i32, i32
  }
  func.func @transform_1(%arg0: i32) -> (i32, i32, i32) {
    %c0_i32 = arith.constant 0 : i32
    %c0_i32_0 = arith.constant 0 : i32
    %c0_i32_1 = arith.constant 0 : i32
    return %arg0, %c0_i32, %c0_i32_0 : i32, i32, i32
  }
  func.func @transform_2(%arg0: i32) -> (i32, i32) {
    %c0_i32 = arith.constant 0 : i32
    %c0_i32_0 = arith.constant 0 : i32
    return %arg0, %c0_i32 : i32, i32
  }
}

module attributes {stable_mosaic.version = 11 : i64} {
  func.func @_matmul_kernel(%arg0: i32, %arg1: i32, %arg2: i32, %arg3: memref<8x32xbf16, #tpu.memory_space<vmem>>, %arg4: memref<8x1xf32, #tpu.memory_space<vmem>>, %arg5: memref<1x32xf32, #tpu.memory_space<vmem>>, %arg6: memref<32x32xbf16, #tpu.memory_space<vmem>>, %arg7: memref<8x32xbf16, #tpu.memory_space<vmem>>, %arg8: memref<8x32xf32, #tpu.memory_space<vmem>>) attributes {dimension_semantics = [#tpu.dimension_semantics<parallel>, #tpu.dimension_semantics<parallel>, #tpu.dimension_semantics<arbitrary>], iteration_bounds = array<i64: 2, 1, 1>, scalar_prefetch = 0 : i64, scratch_operands = 1 : i64, tpu.core_type = #tpu.core_type<tc>, window_params = [{transform_indices = @transform_0, window_bounds = array<i64: 8, 32>}, {transform_indices = @transform_1, window_bounds = array<i64: 8, 1>}, {transform_indices = @transform_2, window_bounds = array<i64: 1, 32>}, {transform_indices = @transform_3, window_bounds = array<i64: 32, 32>}, {transform_indices = @transform_4, window_bounds = array<i64: 8, 32>}]} {
    %c0_i32 = arith.constant 0 : i32
    %0 = arith.cmpi eq, %arg2, %c0_i32 : i32
    %1 = arith.extui %0 : i1 to i32
    %c0_i32_0 = arith.constant 0 : i32
    %2 = arith.cmpi ne, %1, %c0_i32_0 : i32
    scf.if %2 {
      %cst_14 = arith.constant 0.000000e+00 : f32
      %20 = vector.broadcast %cst_14 : f32 to vector<8x32xf32>
      %c0_15 = arith.constant 0 : index
      %c0_16 = arith.constant 0 : index
      %21 = vector.load %arg8[%c0_15, %c0_16] : memref<8x32xf32, #tpu.memory_space<vmem>>, vector<8x32xf32>
      tpu.vector_store %arg8[%c0_15, %c0_16], %20 {strides = array<i32>} : memref<8x32xf32, #tpu.memory_space<vmem>>, vector<8x32xf32>,
    } else {
    }
    %c0 = arith.constant 0 : index
    %c0_1 = arith.constant 0 : index
    %3 = vector.load %arg3[%c0, %c0_1] : memref<8x32xbf16, #tpu.memory_space<vmem>>, vector<8x32xbf16>
    %4 = arith.extf %3 : vector<8x32xbf16> to vector<8x32xf32>
    %c0_2 = arith.constant 0 : index
    %c0_3 = arith.constant 0 : index
    %5 = vector.load %arg4[%c0_2, %c0_3] : memref<8x1xf32, #tpu.memory_space<vmem>>, vector<8x1xf32>
    %6 = vector.broadcast %5 : vector<8x1xf32> to vector<8x32xf32>
    %7 = arith.mulf %4, %6 : vector<8x32xf32>
    %c0_4 = arith.constant 0 : index
    %c0_5 = arith.constant 0 : index
    %8 = vector.load %arg5[%c0_4, %c0_5] : memref<1x32xf32, #tpu.memory_space<vmem>>, vector<1x32xf32>
    %9 = vector.broadcast %8 : vector<1x32xf32> to vector<8x32xf32>
    %10 = arith.mulf %7, %9 : vector<8x32xf32>
    %11 = arith.truncf %10 : vector<8x32xf32> to vector<8x32xbf16>
    %c0_6 = arith.constant 0 : index
    %c0_7 = arith.constant 0 : index
    %12 = vector.load %arg8[%c0_6, %c0_7] : memref<8x32xf32, #tpu.memory_space<vmem>>, vector<8x32xf32>
    %c0_8 = arith.constant 0 : index
    %c0_9 = arith.constant 0 : index
    %13 = vector.load %arg6[%c0_8, %c0_9] : memref<32x32xbf16, #tpu.memory_space<vmem>>, vector<32x32xbf16>
    %cst = arith.constant dense<0.000000e+00> : vector<8x32xf32>
    %14 = tpu.matmul %11, %13, %cst {dimension_numbers = #tpu.dot_dimension_numbers<[1], [0], [0], [1], [0, 0, 1, 1], [], []>} : vector<8x32xbf16>, vector<32x32xbf16>, vector<8x32xf32> -> vector<8x32xf32>
    %15 = arith.addf %12, %14 : vector<8x32xf32>
    %c0_10 = arith.constant 0 : index
    %c0_11 = arith.constant 0 : index
    %16 = vector.load %arg8[%c0_10, %c0_11] : memref<8x32xf32, #tpu.memory_space<vmem>>, vector<8x32xf32>
    tpu.vector_store %arg8[%c0_10, %c0_11], %15 {strides = array<i32>} : memref<8x32xf32, #tpu.memory_space<vmem>>, vector<8x32xf32>,
    %c0_i32_12 = arith.constant 0 : i32
    %17 = arith.cmpi eq, %arg2, %c0_i32_12 : i32
    %18 = arith.extui %17 : i1 to i32
    %c0_i32_13 = arith.constant 0 : i32
    %19 = arith.cmpi ne, %18, %c0_i32_13 : i32
    scf.if %19 {
      %c0_14 = arith.constant 0 : index
      %c0_15 = arith.constant 0 : index
      %20 = vector.load %arg8[%c0_14, %c0_15] : memref<8x32xf32, #tpu.memory_space<vmem>>, vector<8x32xf32>
      %21 = arith.truncf %20 : vector<8x32xf32> to vector<8x32xbf16>
      %c0_16 = arith.constant 0 : index
      %c0_17 = arith.constant 0 : index
      %22 = vector.load %arg7[%c0_16, %c0_17] : memref<8x32xbf16, #tpu.memory_space<vmem>>, vector<8x32xbf16>
      tpu.vector_store %arg7[%c0_16, %c0_17], %21 {strides = array<i32>} : memref<8x32xbf16, #tpu.memory_space<vmem>>, vector<8x32xbf16>,
    } else {
    }
    return
  }
  func.func @transform_0(%arg0: i32, %arg1: i32, %arg2: i32) -> (i32, i32) {
    %c0_i32 = arith.constant 0 : i32
    return %arg0, %arg2 : i32, i32
  }
  func.func @transform_1(%arg0: i32, %arg1: i32, %arg2: i32) -> (i32, i32) {
    %c0_i32 = arith.constant 0 : i32
    %c0_i32_0 = arith.constant 0 : i32
    return %arg0, %c0_i32 : i32, i32
  }
  func.func @transform_2(%arg0: i32, %arg1: i32, %arg2: i32) -> (i32, i32) {
    %c0_i32 = arith.constant 0 : i32
    %c0_i32_0 = arith.constant 0 : i32
    return %c0_i32, %arg2 : i32, i32
  }
  func.func @transform_3(%arg0: i32, %arg1: i32, %arg2: i32) -> (i32, i32) {
    %c0_i32 = arith.constant 0 : i32
    return %arg2, %arg1 : i32, i32
  }
  func.func @transform_4(%arg0: i32, %arg1: i32, %arg2: i32) -> (i32, i32) {
    %c0_i32 = arith.constant 0 : i32
    return %arg0, %arg1 : i32, i32
  }
}

module attributes {stable_mosaic.version = 11 : i64} {
  func.func @_matmul_kernel(%arg0: i32, %arg1: i32, %arg2: i32, %arg3: memref<8x32xbf16, #tpu.memory_space<vmem>>, %arg4: memref<8x1xf32, #tpu.memory_space<vmem>>, %arg5: memref<1x32xf32, #tpu.memory_space<vmem>>, %arg6: memref<32x64xbf16, #tpu.memory_space<vmem>>, %arg7: memref<8x64xbf16, #tpu.memory_space<vmem>>, %arg8: memref<8x64xf32, #tpu.memory_space<vmem>>) attributes {dimension_semantics = [#tpu.dimension_semantics<parallel>, #tpu.dimension_semantics<parallel>, #tpu.dimension_semantics<arbitrary>], iteration_bounds = array<i64: 2, 1, 1>, scalar_prefetch = 0 : i64, scratch_operands = 1 : i64, tpu.core_type = #tpu.core_type<tc>, window_params = [{transform_indices = @transform_0, window_bounds = array<i64: 8, 32>}, {transform_indices = @transform_1, window_bounds = array<i64: 8, 1>}, {transform_indices = @transform_2, window_bounds = array<i64: 1, 32>}, {transform_indices = @transform_3, window_bounds = array<i64: 32, 64>}, {transform_indices = @transform_4, window_bounds = array<i64: 8, 64>}]} {
    %c0_i32 = arith.constant 0 : i32
    %0 = arith.cmpi eq, %arg2, %c0_i32 : i32
    %1 = arith.extui %0 : i1 to i32
    %c0_i32_0 = arith.constant 0 : i32
    %2 = arith.cmpi ne, %1, %c0_i32_0 : i32
    scf.if %2 {
      %cst_14 = arith.constant 0.000000e+00 : f32
      %20 = vector.broadcast %cst_14 : f32 to vector<8x64xf32>
      %c0_15 = arith.constant 0 : index
      %c0_16 = arith.constant 0 : index
      %21 = vector.load %arg8[%c0_15, %c0_16] : memref<8x64xf32, #tpu.memory_space<vmem>>, vector<8x64xf32>
      tpu.vector_store %arg8[%c0_15, %c0_16], %20 {strides = array<i32>} : memref<8x64xf32, #tpu.memory_space<vmem>>, vector<8x64xf32>,
    } else {
    }
    %c0 = arith.constant 0 : index
    %c0_1 = arith.constant 0 : index
    %3 = vector.load %arg3[%c0, %c0_1] : memref<8x32xbf16, #tpu.memory_space<vmem>>, vector<8x32xbf16>
    %4 = arith.extf %3 : vector<8x32xbf16> to vector<8x32xf32>
    %c0_2 = arith.constant 0 : index
    %c0_3 = arith.constant 0 : index
    %5 = vector.load %arg4[%c0_2, %c0_3] : memref<8x1xf32, #tpu.memory_space<vmem>>, vector<8x1xf32>
    %6 = vector.broadcast %5 : vector<8x1xf32> to vector<8x32xf32>
    %7 = arith.mulf %4, %6 : vector<8x32xf32>
    %c0_4 = arith.constant 0 : index
    %c0_5 = arith.constant 0 : index
    %8 = vector.load %arg5[%c0_4, %c0_5] : memref<1x32xf32, #tpu.memory_space<vmem>>, vector<1x32xf32>
    %9 = vector.broadcast %8 : vector<1x32xf32> to vector<8x32xf32>
    %10 = arith.mulf %7, %9 : vector<8x32xf32>
    %11 = arith.truncf %10 : vector<8x32xf32> to vector<8x32xbf16>
    %c0_6 = arith.constant 0 : index
    %c0_7 = arith.constant 0 : index
    %12 = vector.load %arg8[%c0_6, %c0_7] : memref<8x64xf32, #tpu.memory_space<vmem>>, vector<8x64xf32>
    %c0_8 = arith.constant 0 : index
    %c0_9 = arith.constant 0 : index
    %13 = vector.load %arg6[%c0_8, %c0_9] : memref<32x64xbf16, #tpu.memory_space<vmem>>, vector<32x64xbf16>
    %cst = arith.constant dense<0.000000e+00> : vector<8x64xf32>
    %14 = tpu.matmul %11, %13, %cst {dimension_numbers = #tpu.dot_dimension_numbers<[1], [0], [0], [1], [0, 0, 1, 1], [], []>} : vector<8x32xbf16>, vector<32x64xbf16>, vector<8x64xf32> -> vector<8x64xf32>
    %15 = arith.addf %12, %14 : vector<8x64xf32>
    %c0_10 = arith.constant 0 : index
    %c0_11 = arith.constant 0 : index
    %16 = vector.load %arg8[%c0_10, %c0_11] : memref<8x64xf32, #tpu.memory_space<vmem>>, vector<8x64xf32>
    tpu.vector_store %arg8[%c0_10, %c0_11], %15 {strides = array<i32>} : memref<8x64xf32, #tpu.memory_space<vmem>>, vector<8x64xf32>,
    %c0_i32_12 = arith.constant 0 : i32
    %17 = arith.cmpi eq, %arg2, %c0_i32_12 : i32
    %18 = arith.extui %17 : i1 to i32
    %c0_i32_13 = arith.constant 0 : i32
    %19 = arith.cmpi ne, %18, %c0_i32_13 : i32
    scf.if %19 {
      %c0_14 = arith.constant 0 : index
      %c0_15 = arith.constant 0 : index
      %20 = vector.load %arg8[%c0_14, %c0_15] : memref<8x64xf32, #tpu.memory_space<vmem>>, vector<8x64xf32>
      %cst_16 = arith.constant 0.000000e+00 : f32
      %21 = vector.broadcast %cst_16 : f32 to vector<8x64xf32>
      %22 = arith.maximumf %20, %21 : vector<8x64xf32>
      %23 = arith.truncf %22 : vector<8x64xf32> to vector<8x64xbf16>
      %c0_17 = arith.constant 0 : index
      %c0_18 = arith.constant 0 : index
      %24 = vector.load %arg7[%c0_17, %c0_18] : memref<8x64xbf16, #tpu.memory_space<vmem>>, vector<8x64xbf16>
      tpu.vector_store %arg7[%c0_17, %c0_18], %23 {strides = array<i32>} : memref<8x64xbf16, #tpu.memory_space<vmem>>, vector<8x64xbf16>,
    } else {
    }
    return
  }
  func.func @transform_0(%arg0: i32, %arg1: i32, %arg2: i32) -> (i32, i32) {
    %c0_i32 = arith.constant 0 : i32
    return %arg0, %arg2 : i32, i32
  }
  func.func @transform_1(%arg0: i32, %arg1: i32, %arg2: i32) -> (i32, i32) {
    %c0_i32 = arith.constant 0 : i32
    %c0_i32_0 = arith.constant 0 : i32
    return %arg0, %c0_i32 : i32, i32
  }
  func.func @transform_2(%arg0: i32, %arg1: i32, %arg2: i32) -> (i32, i32) {
    %c0_i32 = arith.constant 0 : i32
    %c0_i32_0 = arith.constant 0 : i32
    return %c0_i32, %arg2 : i32, i32
  }
  func.func @transform_3(%arg0: i32, %arg1: i32, %arg2: i32) -> (i32, i32) {
    %c0_i32 = arith.constant 0 : i32
    return %arg2, %arg1 : i32, i32
  }
  func.func @transform_4(%arg0: i32, %arg1: i32, %arg2: i32) -> (i32, i32) {
    %c0_i32 = arith.constant 0 : i32
    return %arg0, %arg1 : i32, i32
  }
}

module attributes {stable_mosaic.version = 11 : i64} {
  func.func @_matmul_kernel(%arg0: i32, %arg1: i32, %arg2: i32, %arg3: memref<8x64xbf16, #tpu.memory_space<vmem>>, %arg4: memref<64x32xbf16, #tpu.memory_space<vmem>>, %arg5: memref<8x32xbf16, #tpu.memory_space<vmem>>, %arg6: memref<8x32xbf16, #tpu.memory_space<vmem>>, %arg7: memref<8x32xf32, #tpu.memory_space<vmem>>) attributes {dimension_semantics = [#tpu.dimension_semantics<parallel>, #tpu.dimension_semantics<parallel>, #tpu.dimension_semantics<arbitrary>], iteration_bounds = array<i64: 2, 1, 1>, scalar_prefetch = 0 : i64, scratch_operands = 1 : i64, tpu.core_type = #tpu.core_type<tc>, window_params = [{transform_indices = @transform_0, window_bounds = array<i64: 8, 64>}, {transform_indices = @transform_1, window_bounds = array<i64: 64, 32>}, {transform_indices = @transform_2, window_bounds = array<i64: 8, 32>}, {transform_indices = @transform_3, window_bounds = array<i64: 8, 32>}]} {
    %c0_i32 = arith.constant 0 : i32
    %0 = arith.cmpi eq, %arg2, %c0_i32 : i32
    %1 = arith.extui %0 : i1 to i32
    %c0_i32_0 = arith.constant 0 : i32
    %2 = arith.cmpi ne, %1, %c0_i32_0 : i32
    scf.if %2 {
      %cst_10 = arith.constant 0.000000e+00 : f32
      %12 = vector.broadcast %cst_10 : f32 to vector<8x32xf32>
      %c0_11 = arith.constant 0 : index
      %c0_12 = arith.constant 0 : index
      %13 = vector.load %arg7[%c0_11, %c0_12] : memref<8x32xf32, #tpu.memory_space<vmem>>, vector<8x32xf32>
      tpu.vector_store %arg7[%c0_11, %c0_12], %12 {strides = array<i32>} : memref<8x32xf32, #tpu.memory_space<vmem>>, vector<8x32xf32>,
    } else {
    }
    %c0 = arith.constant 0 : index
    %c0_1 = arith.constant 0 : index
    %3 = vector.load %arg3[%c0, %c0_1] : memref<8x64xbf16, #tpu.memory_space<vmem>>, vector<8x64xbf16>
    %c0_2 = arith.constant 0 : index
    %c0_3 = arith.constant 0 : index
    %4 = vector.load %arg7[%c0_2, %c0_3] : memref<8x32xf32, #tpu.memory_space<vmem>>, vector<8x32xf32>
    %c0_4 = arith.constant 0 : index
    %c0_5 = arith.constant 0 : index
    %5 = vector.load %arg4[%c0_4, %c0_5] : memref<64x32xbf16, #tpu.memory_space<vmem>>, vector<64x32xbf16>
    %cst = arith.constant dense<0.000000e+00> : vector<8x32xf32>
    %6 = tpu.matmul %3, %5, %cst {dimension_numbers = #tpu.dot_dimension_numbers<[1], [0], [0], [1], [0, 0, 1, 1], [], []>} : vector<8x64xbf16>, vector<64x32xbf16>, vector<8x32xf32> -> vector<8x32xf32>
    %7 = arith.addf %4, %6 : vector<8x32xf32>
    %c0_6 = arith.constant 0 : index
    %c0_7 = arith.constant 0 : index
    %8 = vector.load %arg7[%c0_6, %c0_7] : memref<8x32xf32, #tpu.memory_space<vmem>>, vector<8x32xf32>
    tpu.vector_store %arg7[%c0_6, %c0_7], %7 {strides = array<i32>} : memref<8x32xf32, #tpu.memory_space<vmem>>, vector<8x32xf32>,
    %c0_i32_8 = arith.constant 0 : i32
    %9 = arith.cmpi eq, %arg2, %c0_i32_8 : i32
    %10 = arith.extui %9 : i1 to i32
    %c0_i32_9 = arith.constant 0 : i32
    %11 = arith.cmpi ne, %10, %c0_i32_9 : i32
    scf.if %11 {
      %c0_10 = arith.constant 0 : index
      %c0_11 = arith.constant 0 : index
      %12 = vector.load %arg7[%c0_10, %c0_11] : memref<8x32xf32, #tpu.memory_space<vmem>>, vector<8x32xf32>
      %c0_12 = arith.constant 0 : index
      %c0_13 = arith.constant 0 : index
      %13 = vector.load %arg5[%c0_12, %c0_13] : memref<8x32xbf16, #tpu.memory_space<vmem>>, vector<8x32xbf16>
      %14 = arith.extf %13 : vector<8x32xbf16> to vector<8x32xf32>
      %15 = arith.addf %12, %14 : vector<8x32xf32>
      %16 = arith.truncf %15 : vector<8x32xf32> to vector<8x32xbf16>
      %c0_14 = arith.constant 0 : index
      %c0_15 = arith.constant 0 : index
      %17 = vector.load %arg6[%c0_14, %c0_15] : memref<8x32xbf16, #tpu.memory_space<vmem>>, vector<8x32xbf16>
      tpu.vector_store %arg6[%c0_14, %c0_15], %16 {strides = array<i32>} : memref<8x32xbf16, #tpu.memory_space<vmem>>, vector<8x32xbf16>,
    } else {
    }
    return
  }
  func.func @transform_0(%arg0: i32, %arg1: i32, %arg2: i32) -> (i32, i32) {
    %c0_i32 = arith.constant 0 : i32
    return %arg0, %arg2 : i32, i32
  }
  func.func @transform_1(%arg0: i32, %arg1: i32, %arg2: i32) -> (i32, i32) {
    %c0_i32 = arith.constant 0 : i32
    return %arg2, %arg1 : i32, i32
  }
  func.func @transform_2(%arg0: i32, %arg1: i32, %arg2: i32) -> (i32, i32) {
    %c0_i32 = arith.constant 0 : i32
    return %arg0, %arg1 : i32, i32
  }
  func.func @transform_3(%arg0: i32, %arg1: i32, %arg2: i32) -> (i32, i32) {
    %c0_i32 = arith.constant 0 : i32
    return %arg0, %arg1 : i32, i32
  }
}

module attributes {stable_mosaic.version = 11 : i64} {
  func.func @_matmul_kernel(%arg0: i32, %arg1: i32, %arg2: i32, %arg3: memref<8x32xbf16, #tpu.memory_space<vmem>>, %arg4: memref<8x1xf32, #tpu.memory_space<vmem>>, %arg5: memref<1x32xf32, #tpu.memory_space<vmem>>, %arg6: memref<32x64xbf16, #tpu.memory_space<vmem>>, %arg7: memref<8x64xbf16, #tpu.memory_space<vmem>>, %arg8: memref<8x64xf32, #tpu.memory_space<vmem>>) attributes {dimension_semantics = [#tpu.dimension_semantics<parallel>, #tpu.dimension_semantics<parallel>, #tpu.dimension_semantics<arbitrary>], iteration_bounds = array<i64: 2, 1, 1>, scalar_prefetch = 0 : i64, scratch_operands = 1 : i64, tpu.core_type = #tpu.core_type<tc>, window_params = [{transform_indices = @transform_0, window_bounds = array<i64: 8, 32>}, {transform_indices = @transform_1, window_bounds = array<i64: 8, 1>}, {transform_indices = @transform_2, window_bounds = array<i64: 1, 32>}, {transform_indices = @transform_3, window_bounds = array<i64: 32, 64>}, {transform_indices = @transform_4, window_bounds = array<i64: 8, 64>}]} {
    %c0_i32 = arith.constant 0 : i32
    %0 = arith.cmpi eq, %arg2, %c0_i32 : i32
    %1 = arith.extui %0 : i1 to i32
    %c0_i32_0 = arith.constant 0 : i32
    %2 = arith.cmpi ne, %1, %c0_i32_0 : i32
    scf.if %2 {
      %cst_14 = arith.constant 0.000000e+00 : f32
      %20 = vector.broadcast %cst_14 : f32 to vector<8x64xf32>
      %c0_15 = arith.constant 0 : index
      %c0_16 = arith.constant 0 : index
      %21 = vector.load %arg8[%c0_15, %c0_16] : memref<8x64xf32, #tpu.memory_space<vmem>>, vector<8x64xf32>
      tpu.vector_store %arg8[%c0_15, %c0_16], %20 {strides = array<i32>} : memref<8x64xf32, #tpu.memory_space<vmem>>, vector<8x64xf32>,
    } else {
    }
    %c0 = arith.constant 0 : index
    %c0_1 = arith.constant 0 : index
    %3 = vector.load %arg3[%c0, %c0_1] : memref<8x32xbf16, #tpu.memory_space<vmem>>, vector<8x32xbf16>
    %4 = arith.extf %3 : vector<8x32xbf16> to vector<8x32xf32>
    %c0_2 = arith.constant 0 : index
    %c0_3 = arith.constant 0 : index
    %5 = vector.load %arg4[%c0_2, %c0_3] : memref<8x1xf32, #tpu.memory_space<vmem>>, vector<8x1xf32>
    %6 = vector.broadcast %5 : vector<8x1xf32> to vector<8x32xf32>
    %7 = arith.mulf %4, %6 : vector<8x32xf32>
    %c0_4 = arith.constant 0 : index
    %c0_5 = arith.constant 0 : index
    %8 = vector.load %arg5[%c0_4, %c0_5] : memref<1x32xf32, #tpu.memory_space<vmem>>, vector<1x32xf32>
    %9 = vector.broadcast %8 : vector<1x32xf32> to vector<8x32xf32>
    %10 = arith.mulf %7, %9 : vector<8x32xf32>
    %11 = arith.truncf %10 : vector<8x32xf32> to vector<8x32xbf16>
    %c0_6 = arith.constant 0 : index
    %c0_7 = arith.constant 0 : index
    %12 = vector.load %arg8[%c0_6, %c0_7] : memref<8x64xf32, #tpu.memory_space<vmem>>, vector<8x64xf32>
    %c0_8 = arith.constant 0 : index
    %c0_9 = arith.constant 0 : index
    %13 = vector.load %arg6[%c0_8, %c0_9] : memref<32x64xbf16, #tpu.memory_space<vmem>>, vector<32x64xbf16>
    %cst = arith.constant dense<0.000000e+00> : vector<8x64xf32>
    %14 = tpu.matmul %11, %13, %cst {dimension_numbers = #tpu.dot_dimension_numbers<[1], [0], [0], [1], [0, 0, 1, 1], [], []>} : vector<8x32xbf16>, vector<32x64xbf16>, vector<8x64xf32> -> vector<8x64xf32>
    %15 = arith.addf %12, %14 : vector<8x64xf32>
    %c0_10 = arith.constant 0 : index
    %c0_11 = arith.constant 0 : index
    %16 = vector.load %arg8[%c0_10, %c0_11] : memref<8x64xf32, #tpu.memory_space<vmem>>, vector<8x64xf32>
    tpu.vector_store %arg8[%c0_10, %c0_11], %15 {strides = array<i32>} : memref<8x64xf32, #tpu.memory_space<vmem>>, vector<8x64xf32>,
    %c0_i32_12 = arith.constant 0 : i32
    %17 = arith.cmpi eq, %arg2, %c0_i32_12 : i32
    %18 = arith.extui %17 : i1 to i32
    %c0_i32_13 = arith.constant 0 : i32
    %19 = arith.cmpi ne, %18, %c0_i32_13 : i32
    scf.if %19 {
      %c0_14 = arith.constant 0 : index
      %c0_15 = arith.constant 0 : index
      %20 = vector.load %arg8[%c0_14, %c0_15] : memref<8x64xf32, #tpu.memory_space<vmem>>, vector<8x64xf32>
      %21 = arith.truncf %20 : vector<8x64xf32> to vector<8x64xbf16>
      %c0_16 = arith.constant 0 : index
      %c0_17 = arith.constant 0 : index
      %22 = vector.load %arg7[%c0_16, %c0_17] : memref<8x64xbf16, #tpu.memory_space<vmem>>, vector<8x64xbf16>
      tpu.vector_store %arg7[%c0_16, %c0_17], %21 {strides = array<i32>} : memref<8x64xbf16, #tpu.memory_space<vmem>>, vector<8x64xbf16>,
    } else {
    }
    return
  }
  func.func @transform_0(%arg0: i32, %arg1: i32, %arg2: i32) -> (i32, i32) {
    %c0_i32 = arith.constant 0 : i32
    return %arg0, %arg2 : i32, i32
  }
  func.func @transform_1(%arg0: i32, %arg1: i32, %arg2: i32) -> (i32, i32) {
    %c0_i32 = arith.constant 0 : i32
    %c0_i32_0 = arith.constant 0 : i32
    return %arg0, %c0_i32 : i32, i32
  }
  func.func @transform_2(%arg0: i32, %arg1: i32, %arg2: i32) -> (i32, i32) {
    %c0_i32 = arith.constant 0 : i32
    %c0_i32_0 = arith.constant 0 : i32
    return %c0_i32, %arg2 : i32, i32
  }
  func.func @transform_3(%arg0: i32, %arg1: i32, %arg2: i32) -> (i32, i32) {
    %c0_i32 = arith.constant 0 : i32
    return %arg2, %arg1 : i32, i32
  }
  func.func @transform_4(%arg0: i32, %arg1: i32, %arg2: i32) -> (i32, i32) {
    %c0_i32 = arith.constant 0 : i32
    return %arg0, %arg1 : i32, i32
  }
}

module attributes {stable_mosaic.version = 11 : i64} {
  func.func @_attn_kernel(%arg0: i32, %arg1: memref<8x32xbf16, #tpu.memory_space<vmem>>, %arg2: memref<8x64xbf16, #tpu.memory_space<vmem>>, %arg3: memref<1x1x8xf32, #tpu.memory_space<vmem>>, %arg4: memref<8x32xbf16, #tpu.memory_space<vmem>>) attributes {dimension_semantics = [#tpu.dimension_semantics<parallel>], iteration_bounds = array<i64: 2>, scalar_prefetch = 0 : i64, scratch_operands = 0 : i64, tpu.core_type = #tpu.core_type<tc>, window_params = [{transform_indices = @transform_0, window_bounds = array<i64: 8, 32>}, {transform_indices = @transform_1, window_bounds = array<i64: 8, 64>}, {transform_indices = @transform_2, window_bounds = array<i64: 1, 1, 8>}, {transform_indices = @transform_3, window_bounds = array<i64: 8, 32>}]} {
    %c0 = arith.constant 0 : index
    %c0_0 = arith.constant 0 : index
    %0 = vector.load %arg1[%c0, %c0_0] : memref<8x32xbf16, #tpu.memory_space<vmem>>, vector<8x32xbf16>
    %c0_1 = arith.constant 0 : index
    %c0_2 = arith.constant 0 : index
    %1 = vector.load %arg2[%c0_1, %c0_2] : memref<8x64xbf16, #tpu.memory_space<vmem>>, vector<8x64xbf16>
    %2 = vector.extract_strided_slice %1 {offsets = [0, 0], sizes = [8, 32], strides = [1, 1]} : vector<8x64xbf16> to vector<8x32xbf16>
    %3 = vector.extract_strided_slice %1 {offsets = [0, 32], sizes = [8, 32], strides = [1, 1]} : vector<8x64xbf16> to vector<8x32xbf16>
    %c0_3 = arith.constant 0 : index
    %c0_4 = arith.constant 0 : index
    %c0_5 = arith.constant 0 : index
    %4 = vector.load %arg3[%c0_3, %c0_4, %c0_5] : memref<1x1x8xf32, #tpu.memory_space<vmem>>, vector<1x1x8xf32>
    %5 = vector.shape_cast %4 : vector<1x1x8xf32> to vector<1x8xf32>
    %6 = vector.extract_strided_slice %0 {offsets = [0, 0], sizes = [8, 8], strides = [1, 1]} : vector<8x32xbf16> to vector<8x8xbf16>
    %7 = vector.extract_strided_slice %2 {offsets = [0, 0], sizes = [8, 8], strides = [1, 1]} : vector<8x32xbf16> to vector<8x8xbf16>
    %8 = vector.extract_strided_slice %3 {offsets = [0, 0], sizes = [8, 8], strides = [1, 1]} : vector<8x32xbf16> to vector<8x8xbf16>
    %9 = tpu.transpose %7, [1, 0] : vector<8x8xbf16> -> vector<8x8xbf16>
    %cst = arith.constant dense<0.000000e+00> : vector<8x8xf32>
    %10 = tpu.matmul %6, %9, %cst {dimension_numbers = #tpu.dot_dimension_numbers<[1], [0], [0], [1], [0, 0, 1, 1], [], []>} : vector<8x8xbf16>, vector<8x8xbf16>, vector<8x8xf32> -> vector<8x8xf32>
    %11 = vector.broadcast %5 : vector<1x8xf32> to vector<8x8xf32>
    %12 = arith.addf %10, %11 : vector<8x8xf32>
    %cst_6 = arith.constant dense<0xFF800000> : vector<8xf32>
    %13 = vector.multi_reduction <maximumf>, %12, %cst_6 [1] : vector<8x8xf32> to vector<8xf32>
    %14 = vector.shape_cast %13 : vector<8xf32> to vector<8x1xf32>
    %15 = vector.broadcast %14 : vector<8x1xf32> to vector<8x8xf32>
    %16 = arith.subf %12, %15 : vector<8x8xf32>
    %17 = math.exp %16 : vector<8x8xf32>
    %cst_7 = arith.constant dense<0.000000e+00> : vector<8xf32>
    %18 = vector.multi_reduction <add>, %17, %cst_7 [1] : vector<8x8xf32> to vector<8xf32>
    %19 = vector.shape_cast %18 : vector<8xf32> to vector<8x1xf32>
    %20 = tpu.reciprocal %19 {approx = true} : vector<8x1xf32> -> vector<8x1xf32>
    %21 = vector.broadcast %20 : vector<8x1xf32> to vector<8x8xf32>
    %22 = arith.mulf %17, %21 : vector<8x8xf32>
    %23 = arith.truncf %22 : vector<8x8xf32> to vector<8x8xbf16>
    %cst_8 = arith.constant dense<0.000000e+00> : vector<8x8xf32>
    %24 = tpu.matmul %23, %8, %cst_8 {dimension_numbers = #tpu.dot_dimension_numbers<[1], [0], [0], [1], [0, 0, 1, 1], [], []>} : vector<8x8xbf16>, vector<8x8xbf16>, vector<8x8xf32> -> vector<8x8xf32>
    %25 = vector.extract_strided_slice %0 {offsets = [0, 8], sizes = [8, 8], strides = [1, 1]} : vector<8x32xbf16> to vector<8x8xbf16>
    %26 = vector.extract_strided_slice %2 {offsets = [0, 8], sizes = [8, 8], strides = [1, 1]} : vector<8x32xbf16> to vector<8x8xbf16>
    %27 = vector.extract_strided_slice %3 {offsets = [0, 8], sizes = [8, 8], strides = [1, 1]} : vector<8x32xbf16> to vector<8x8xbf16>
    %28 = tpu.transpose %26, [1, 0] : vector<8x8xbf16> -> vector<8x8xbf16>
    %cst_9 = arith.constant dense<0.000000e+00> : vector<8x8xf32>
    %29 = tpu.matmul %25, %28, %cst_9 {dimension_numbers = #tpu.dot_dimension_numbers<[1], [0], [0], [1], [0, 0, 1, 1], [], []>} : vector<8x8xbf16>, vector<8x8xbf16>, vector<8x8xf32> -> vector<8x8xf32>
    %30 = vector.broadcast %5 : vector<1x8xf32> to vector<8x8xf32>
    %31 = arith.addf %29, %30 : vector<8x8xf32>
    %cst_10 = arith.constant dense<0xFF800000> : vector<8xf32>
    %32 = vector.multi_reduction <maximumf>, %31, %cst_10 [1] : vector<8x8xf32> to vector<8xf32>
    %33 = vector.shape_cast %32 : vector<8xf32> to vector<8x1xf32>
    %34 = vector.broadcast %33 : vector<8x1xf32> to vector<8x8xf32>
    %35 = arith.subf %31, %34 : vector<8x8xf32>
    %36 = math.exp %35 : vector<8x8xf32>
    %cst_11 = arith.constant dense<0.000000e+00> : vector<8xf32>
    %37 = vector.multi_reduction <add>, %36, %cst_11 [1] : vector<8x8xf32> to vector<8xf32>
    %38 = vector.shape_cast %37 : vector<8xf32> to vector<8x1xf32>
    %39 = tpu.reciprocal %38 {approx = true} : vector<8x1xf32> -> vector<8x1xf32>
    %40 = vector.broadcast %39 : vector<8x1xf32> to vector<8x8xf32>
    %41 = arith.mulf %36, %40 : vector<8x8xf32>
    %42 = arith.truncf %41 : vector<8x8xf32> to vector<8x8xbf16>
    %cst_12 = arith.constant dense<0.000000e+00> : vector<8x8xf32>
    %43 = tpu.matmul %42, %27, %cst_12 {dimension_numbers = #tpu.dot_dimension_numbers<[1], [0], [0], [1], [0, 0, 1, 1], [], []>} : vector<8x8xbf16>, vector<8x8xbf16>, vector<8x8xf32> -> vector<8x8xf32>
    %44 = vector.extract_strided_slice %0 {offsets = [0, 16], sizes = [8, 8], strides = [1, 1]} : vector<8x32xbf16> to vector<8x8xbf16>
    %45 = vector.extract_strided_slice %2 {offsets = [0, 16], sizes = [8, 8], strides = [1, 1]} : vector<8x32xbf16> to vector<8x8xbf16>
    %46 = vector.extract_strided_slice %3 {offsets = [0, 16], sizes = [8, 8], strides = [1, 1]} : vector<8x32xbf16> to vector<8x8xbf16>
    %47 = tpu.transpose %45, [1, 0] : vector<8x8xbf16> -> vector<8x8xbf16>
    %cst_13 = arith.constant dense<0.000000e+00> : vector<8x8xf32>
    %48 = tpu.matmul %44, %47, %cst_13 {dimension_numbers = #tpu.dot_dimension_numbers<[1], [0], [0], [1], [0, 0, 1, 1], [], []>} : vector<8x8xbf16>, vector<8x8xbf16>, vector<8x8xf32> -> vector<8x8xf32>
    %49 = vector.broadcast %5 : vector<1x8xf32> to vector<8x8xf32>
    %50 = arith.addf %48, %49 : vector<8x8xf32>
    %cst_14 = arith.constant dense<0xFF800000> : vector<8xf32>
    %51 = vector.multi_reduction <maximumf>, %50, %cst_14 [1] : vector<8x8xf32> to vector<8xf32>
    %52 = vector.shape_cast %51 : vector<8xf32> to vector<8x1xf32>
    %53 = vector.broadcast %52 : vector<8x1xf32> to vector<8x8xf32>
    %54 = arith.subf %50, %53 : vector<8x8xf32>
    %55 = math.exp %54 : vector<8x8xf32>
    %cst_15 = arith.constant dense<0.000000e+00> : vector<8xf32>
    %56 = vector.multi_reduction <add>, %55, %cst_15 [1] : vector<8x8xf32> to vector<8xf32>
    %57 = vector.shape_cast %56 : vector<8xf32> to vector<8x1xf32>
    %58 = tpu.reciprocal %57 {approx = true} : vector<8x1xf32> -> vector<8x1xf32>
    %59 = vector.broadcast %58 : vector<8x1xf32> to vector<8x8xf32>
    %60 = arith.mulf %55, %59 : vector<8x8xf32>
    %61 = arith.truncf %60 : vector<8x8xf32> to vector<8x8xbf16>
    %cst_16 = arith.constant dense<0.000000e+00> : vector<8x8xf32>
    %62 = tpu.matmul %61, %46, %cst_16 {dimension_numbers = #tpu.dot_dimension_numbers<[1], [0], [0], [1], [0, 0, 1, 1], [], []>} : vector<8x8xbf16>, vector<8x8xbf16>, vector<8x8xf32> -> vector<8x8xf32>
    %63 = vector.extract_strided_slice %0 {offsets = [0, 24], sizes = [8, 8], strides = [1, 1]} : vector<8x32xbf16> to vector<8x8xbf16>
    %64 = vector.extract_strided_slice %2 {offsets = [0, 24], sizes = [8, 8], strides = [1, 1]} : vector<8x32xbf16> to vector<8x8xbf16>
    %65 = vector.extract_strided_slice %3 {offsets = [0, 24], sizes = [8, 8], strides = [1, 1]} : vector<8x32xbf16> to vector<8x8xbf16>
    %66 = tpu.transpose %64, [1, 0] : vector<8x8xbf16> -> vector<8x8xbf16>
    %cst_17 = arith.constant dense<0.000000e+00> : vector<8x8xf32>
    %67 = tpu.matmul %63, %66, %cst_17 {dimension_numbers = #tpu.dot_dimension_numbers<[1], [0], [0], [1], [0, 0, 1, 1], [], []>} : vector<8x8xbf16>, vector<8x8xbf16>, vector<8x8xf32> -> vector<8x8xf32>
    %68 = vector.broadcast %5 : vector<1x8xf32> to vector<8x8xf32>
    %69 = arith.addf %67, %68 : vector<8x8xf32>
    %cst_18 = arith.constant dense<0xFF800000> : vector<8xf32>
    %70 = vector.multi_reduction <maximumf>, %69, %cst_18 [1] : vector<8x8xf32> to vector<8xf32>
    %71 = vector.shape_cast %70 : vector<8xf32> to vector<8x1xf32>
    %72 = vector.broadcast %71 : vector<8x1xf32> to vector<8x8xf32>
    %73 = arith.subf %69, %72 : vector<8x8xf32>
    %74 = math.exp %73 : vector<8x8xf32>
    %cst_19 = arith.constant dense<0.000000e+00> : vector<8xf32>
    %75 = vector.multi_reduction <add>, %74, %cst_19 [1] : vector<8x8xf32> to vector<8xf32>
    %76 = vector.shape_cast %75 : vector<8xf32> to vector<8x1xf32>
    %77 = tpu.reciprocal %76 {approx = true} : vector<8x1xf32> -> vector<8x1xf32>
    %78 = vector.broadcast %77 : vector<8x1xf32> to vector<8x8xf32>
    %79 = arith.mulf %74, %78 : vector<8x8xf32>
    %80 = arith.truncf %79 : vector<8x8xf32> to vector<8x8xbf16>
    %cst_20 = arith.constant dense<0.000000e+00> : vector<8x8xf32>
    %81 = tpu.matmul %80, %65, %cst_20 {dimension_numbers = #tpu.dot_dimension_numbers<[1], [0], [0], [1], [0, 0, 1, 1], [], []>} : vector<8x8xbf16>, vector<8x8xbf16>, vector<8x8xf32> -> vector<8x8xf32>
    %82 = tpu.concatenate %24, %43, %62, %81 in 1 : vector<8x8xf32>, vector<8x8xf32>, vector<8x8xf32>, vector<8x8xf32> -> vector<8x32xf32>
    %83 = arith.truncf %82 : vector<8x32xf32> to vector<8x32xbf16>
    %c0_21 = arith.constant 0 : index
    %c0_22 = arith.constant 0 : index
    %84 = vector.load %arg4[%c0_21, %c0_22] : memref<8x32xbf16, #tpu.memory_space<vmem>>, vector<8x32xbf16>
    tpu.vector_store %arg4[%c0_21, %c0_22], %83 {strides = array<i32>} : memref<8x32xbf16, #tpu.memory_space<vmem>>, vector<8x32xbf16>,
    return
  }
  func.func @transform_0(%arg0: i32) -> (i32, i32) {
    %c0_i32 = arith.constant 0 : i32
    %c0_i32_0 = arith.constant 0 : i32
    return %arg0, %c0_i32 : i32, i32
  }
  func.func @transform_1(%arg0: i32) -> (i32, i32) {
    %c0_i32 = arith.constant 0 : i32
    %c0_i32_0 = arith.constant 0 : i32
    return %arg0, %c0_i32 : i32, i32
  }
  func.func @transform_2(%arg0: i32) -> (i32, i32, i32) {
    %c0_i32 = arith.constant 0 : i32
    %c0_i32_0 = arith.constant 0 : i32
    %c0_i32_1 = arith.constant 0 : i32
    return %arg0, %c0_i32, %c0_i32_0 : i32, i32, i32
  }
  func.func @transform_3(%arg0: i32) -> (i32, i32) {
    %c0_i32 = arith.constant 0 : i32
    %c0_i32_0 = arith.constant 0 : i32
    return %arg0, %c0_i32 : i32, i32
  }
}

module attributes {stable_mosaic.version = 11 : i64} {
  func.func @_head_kernel(%arg0: memref<8x32xbf16, #tpu.memory_space<vmem>>, %arg1: memref<1x32xf32, #tpu.memory_space<vmem>>, %arg2: memref<32x128xbf16, #tpu.memory_space<vmem>>, %arg3: memref<1x128xf32, #tpu.memory_space<vmem>>, %arg4: memref<8x128xf32, #tpu.memory_space<vmem>>) attributes {dimension_semantics = [], scalar_prefetch = 0 : i64, scratch_operands = 0 : i64, tpu.core_type = #tpu.core_type<tc>} {
    %c0 = arith.constant 0 : index
    %c0_0 = arith.constant 0 : index
    %0 = vector.load %arg0[%c0, %c0_0] : memref<8x32xbf16, #tpu.memory_space<vmem>>, vector<8x32xbf16>
    %1 = arith.extf %0 : vector<8x32xbf16> to vector<8x32xf32>
    %2 = arith.mulf %1, %1 : vector<8x32xf32>
    %cst = arith.constant dense<0.000000e+00> : vector<8xf32>
    %3 = vector.multi_reduction <add>, %2, %cst [1] : vector<8x32xf32> to vector<8xf32>
    %4 = vector.shape_cast %3 : vector<8xf32> to vector<8x1xf32>
    %cst_1 = arith.constant 3.200000e+01 : f32
    %5 = vector.broadcast %cst_1 : f32 to vector<8x1xf32>
    %6 = arith.divf %4, %5 : vector<8x1xf32>
    %cst_2 = arith.constant 9.99999997E-7 : f32
    %7 = vector.broadcast %cst_2 : f32 to vector<8x1xf32>
    %8 = arith.addf %6, %7 : vector<8x1xf32>
    %9 = math.rsqrt %8 : vector<8x1xf32>
    %10 = vector.broadcast %9 : vector<8x1xf32> to vector<8x32xf32>
    %11 = arith.mulf %1, %10 : vector<8x32xf32>
    %c0_3 = arith.constant 0 : index
    %c0_4 = arith.constant 0 : index
    %12 = vector.load %arg1[%c0_3, %c0_4] : memref<1x32xf32, #tpu.memory_space<vmem>>, vector<1x32xf32>
    %13 = vector.broadcast %12 : vector<1x32xf32> to vector<8x32xf32>
    %14 = arith.mulf %11, %13 : vector<8x32xf32>
    %15 = arith.truncf %14 : vector<8x32xf32> to vector<8x32xbf16>
    %c0_5 = arith.constant 0 : index
    %c0_6 = arith.constant 0 : index
    %16 = vector.load %arg2[%c0_5, %c0_6] : memref<32x128xbf16, #tpu.memory_space<vmem>>, vector<32x128xbf16>
    %cst_7 = arith.constant dense<0.000000e+00> : vector<8x128xf32>
    %17 = tpu.matmul %15, %16, %cst_7 {dimension_numbers = #tpu.dot_dimension_numbers<[1], [0], [0], [1], [0, 0, 1, 1], [], []>} : vector<8x32xbf16>, vector<32x128xbf16>, vector<8x128xf32> -> vector<8x128xf32>
    %c0_8 = arith.constant 0 : index
    %c0_9 = arith.constant 0 : index
    %18 = vector.load %arg3[%c0_8, %c0_9] : memref<1x128xf32, #tpu.memory_space<vmem>>, vector<1x128xf32>
    %19 = vector.broadcast %18 : vector<1x128xf32> to vector<8x128xf32>
    %20 = arith.addf %17, %19 : vector<8x128xf32>
    %cst_10 = arith.constant dense<0xFF800000> : vector<8xf32>
    %21 = vector.multi_reduction <maximumf>, %20, %cst_10 [1] : vector<8x128xf32> to vector<8xf32>
    %22 = vector.shape_cast %21 : vector<8xf32> to vector<8x1xf32>
    %23 = vector.broadcast %22 : vector<8x1xf32> to vector<8x128xf32>
    %24 = arith.subf %20, %23 : vector<8x128xf32>
    %25 = math.exp %24 : vector<8x128xf32>
    %cst_11 = arith.constant dense<0.000000e+00> : vector<8xf32>
    %26 = vector.multi_reduction <add>, %25, %cst_11 [1] : vector<8x128xf32> to vector<8xf32>
    %27 = vector.shape_cast %26 : vector<8xf32> to vector<8x1xf32>
    %28 = math.log %27 : vector<8x1xf32>
    %29 = vector.broadcast %28 : vector<8x1xf32> to vector<8x128xf32>
    %30 = arith.subf %24, %29 : vector<8x128xf32>
    %c0_12 = arith.constant 0 : index
    %c0_13 = arith.constant 0 : index
    %31 = vector.load %arg4[%c0_12, %c0_13] : memref<8x128xf32, #tpu.memory_space<vmem>>, vector<8x128xf32>
    tpu.vector_store %arg4[%c0_12, %c0_13], %30 {strides = array<i32>} : memref<8x128xf32, #tpu.memory_space<vmem>>, vector<8x128xf32>,
    return
  }
}

</mosaic_0001>

<llo_original>
// kernel: distill_backbone_forward.30
$region0: #{distill_backbone_forward.30}
  #allocation0 [shape = 'u32[]', space=smem, size = 0x4, offset = 0x4, fixed_abs, tag = 'smem constant byte address 0x4 - core index']
  #allocation1 [shape = 'u32[72,128]{1,0:T(1,128)}', space=vmem, size = 0x9000, scoped, tag = 'internal scratch']
  %s0 = inlined_call_operand.vmem [shape: bf16[16,96], index: 0, kind: input, shape index: {}]
  %s1 = inlined_call_operand.vmem [shape: f32[2,1,8], index: 1, kind: input, shape index: {}]
  %s2 = inlined_call_operand.vmem [shape: bf16[16,32], index: 2, kind: output, shape index: {}]
  %s3 = sld [smem:[#allocation0]]
  $region41: #{distill_backbone_forward.30} parent=0
    _
  %s5 = ssub.s32 1, %s3
  %s6 = scalar_select 0, %s5, %s3
  loop: start=0, step=1, limit=4
  $region2: #{distill_backbone_forward.30} parent=0 // loop_pre_header
    _
  $region3: #{distill_backbone_forward.30} parent=0 // loop_header
    %s8 = sphi 0, %s12
    %p9 = scmp.ge.s32.totalorder %s8, 4
    %s18 = sphi 0, %s20
    %s21 = sphi 0, %s18
    %s22 = sphi 0, %s21
    %s38 = sphi 0, %s22
    %s44 = sphi 0, %s46
    %s47 = sphi 0, %s44
    %s48 = sphi 0, %s47
    %s64 = sphi 0, %s48
    %s70 = sphi 0, %s72
    %s73 = sphi 0, %s70
    %s74 = sphi 0, %s73
    %s90 = sphi 0, %s74
  $region4: #{distill_backbone_forward.30} parent=0 // loop_header_branch
    %11 = sbr.rel (%p9) target = $region8
  $region5: #{distill_backbone_forward.30} parent=0 // loop_body
    %s13 = ssub.s32 %s8, 1
    %s14 = ssub.s32 %s8, 2
    %s15 = sadd.s32 %s8, 1
    %s16 = ssub.s32 %s8, %s15
    %p17 = scmp.eq.s32.totalorder %s16, 0
    %s19 = sadd.s32 %s18, 1
    %s20 = scalar_select %p17, %s18, %s19
    %p23 = pneg %p17
    %p24 = scmp.eq.s32.totalorder %s8, 1
    %p25 = por %p23, %p24
    %p26 = scmp.ne.s32.totalorder %s18, %s21
    %p27 = scmp.eq.s32.totalorder %s8, 0
    %p28 = por %p26, %p27
    %p29 = scmp.ne.s32.totalorder %s18, %s21
    %p30 = scmp.eq.s32.totalorder %s13, 1
    %p31 = por %p29, %p30
    %p32 = scmp.ne.s32.totalorder %s21, %s22
    %p33 = scmp.eq.s32.totalorder %s13, 0
    %p34 = por %p32, %p33
    %p35 = scmp.ne.s32.totalorder %s21, %s22
    %p36 = scmp.eq.s32.totalorder %s14, 1
    %p37 = por %p35, %p36
    %p39 = scmp.ne.s32.totalorder %s22, %s38
    %p40 = scmp.eq.s32.totalorder %s14, 0
    %p41 = por %p39, %p40
    %s42 = ssub.s32 %s8, %s15
    %p43 = scmp.eq.s32.totalorder %s42, 0
    %s45 = sadd.s32 %s44, 1
    %s46 = scalar_select %p43, %s44, %s45
    %p49 = pneg %p43
    %p50 = scmp.eq.s32.totalorder %s8, 1
    %p51 = por %p49, %p50
    %p52 = scmp.ne.s32.totalorder %s44, %s47
    %p53 = scmp.eq.s32.totalorder %s8, 0
    %p54 = por %p52, %p53
    %p55 = scmp.ne.s32.totalorder %s44, %s47
    %p56 = scmp.eq.s32.totalorder %s13, 1
    %p57 = por %p55, %p56
    %p58 = scmp.ne.s32.totalorder %s47, %s48
    %p59 = scmp.eq.s32.totalorder %s13, 0
    %p60 = por %p58, %p59
    %p61 = scmp.ne.s32.totalorder %s47, %s48
    %p62 = scmp.eq.s32.totalorder %s14, 1
    %p63 = por %p61, %p62
    %p65 = scmp.ne.s32.totalorder %s48, %s64
    %p66 = scmp.eq.s32.totalorder %s14, 0
    %p67 = por %p65, %p66
    %s68 = ssub.s32 %s8, %s15
    %p69 = scmp.eq.s32.totalorder %s68, 0
    %s71 = sadd.s32 %s70, 1
    %s72 = scalar_select %p69, %s70, %s71
    %p75 = pneg %p69
    %p76 = scmp.eq.s32.totalorder %s8, 1
    %p77 = por %p75, %p76
    %p78 = scmp.ne.s32.totalorder %s70, %s73
    %p79 = scmp.eq.s32.totalorder %s8, 0
    %p80 = por %p78, %p79
    %p81 = scmp.ne.s32.totalorder %s70, %s73
    %p82 = scmp.eq.s32.totalorder %s13, 1
    %p83 = por %p81, %p82
    %p84 = scmp.ne.s32.totalorder %s73, %s74
    %p85 = scmp.eq.s32.totalorder %s13, 0
    %p86 = por %p84, %p85
    %p87 = scmp.ne.s32.totalorder %s73, %s74
    %p88 = scmp.eq.s32.totalorder %s14, 1
    %p89 = por %p87, %p88
    %p91 = scmp.ne.s32.totalorder %s74, %s90
    %p92 = scmp.eq.s32.totalorder %s14, 0
    %p93 = por %p91, %p92
    %p94 = scmp.le.s32.totalorder 1, %s8
    %p95 = scmp.lt.s32.totalorder %s8, 3
    %p96 = pnand %p94, %p95
    %p97 = pneg %p96
    // Predicated region
    $region9: #{distill_backbone_forward.30} parent=5 // pred_check
      _
    $region10: #{distill_backbone_forward.30} parent=5 // pred_check_branch
      %99 = sbr.rel (%p96) target = $region12
    $region11: #{distill_backbone_forward.30} parent=5 // pred_region
      %s100 = ssub.s32 %s8, 1
    $region12: #{distill_backbone_forward.30} parent=5 // pred_fallthru
      _
    %p101 = scmp.lt.s32.totalorder %s8, 2
    // Predicated region
    $region13: #{distill_backbone_forward.30} parent=5 // pred_check
      %p102 = pneg %p101
    $region14: #{distill_backbone_forward.30} parent=5 // pred_check_branch
      %104 = sbr.rel (%p102) target = $region16
    $region15: #{distill_backbone_forward.30} parent=5 // pred_region
      // Predicated region
      $region17: #{distill_backbone_forward.30} parent=15 // pred_check
        %p105 = pneg %p28
      $region18: #{distill_backbone_forward.30} parent=15 // pred_check_branch
        %107 = sbr.rel (%p105) target = $region20
      $region19: #{distill_backbone_forward.30} parent=15 // pred_region
        %p108 = scmp.lt.s32.totalorder %s8, 1
        %s109 = scalar_select %p108, %s8, 1
        %s110 = smul.addr %s109, 4
        %s111 = scalar_lea.vmem %s0, %s110
      $region20: #{distill_backbone_forward.30} parent=15 // pred_fallthru
        _
      // Predicated region
      $region21: #{distill_backbone_forward.30} parent=15 // pred_check
        %p112 = pneg %p54
      $region22: #{distill_backbone_forward.30} parent=15 // pred_check_branch
        %114 = sbr.rel (%p112) target = $region24
      $region23: #{distill_backbone_forward.30} parent=15 // pred_region
        %p115 = scmp.lt.s32.totalorder %s8, 1
        %s116 = scalar_select %p115, %s8, 1
        %s117 = scalar_lea.vmem %s1, %s116
      $region24: #{distill_backbone_forward.30} parent=15 // pred_fallthru
        _
    $region16: #{distill_backbone_forward.30} parent=5 // pred_fallthru
      _
    %p118 = scmp.le.s32.totalorder 1, %s8
    %p119 = scmp.lt.s32.totalorder %s8, 3
    %p120 = pnand %p118, %p119
    %p121 = pneg %p120
    // Predicated region
    $region25: #{distill_backbone_forward.30} parent=5 // pred_check
      _
    $region26: #{distill_backbone_forward.30} parent=5 // pred_check_branch
      %123 = sbr.rel (%p120) target = $region28
    $region27: #{distill_backbone_forward.30} parent=5 // pred_region
      %s124 = ssub.s32 %s8, 1
      %p125 = scmp.lt.s32.totalorder %s13, 1
      %s126 = scalar_select %p125, %s13, 1
      %s127 = smul.addr %s126, 4
      %s128 = scalar_lea.vmem %s0, %s127
      %p129 = pneg %p34
      %p130 = pneg %p31
      %p131 = scmp.lt.s32.totalorder %s13, 1
      %s132 = scalar_select %p131, %s13, 1
      %s133 = scalar_lea.vmem %s1, %s132
      %p134 = pneg %p60
      %p135 = pneg %p57
      %p136 = pneg %p86
      %p137 = pneg %p83
      %p138 = scmp.lt.s32.totalorder %s13, 1
      %s139 = scalar_select %p138, %s13, 1
      %s140 = smul.addr %s139, 4
      %s141 = scalar_lea.vmem %s2, %s140
      %p142 = scmp.lt.s32.totalorder %s13, 1
      %s143 = scalar_select %p142, %s13, 1
      %s144 = smul.addr %s143, 4
      %s145 = scalar_lea.vmem %s0, %s144
      %p146 = scmp.lt.s32.totalorder %s13, 1
      %s147 = scalar_select %p146, %s13, 1
      %s148 = scalar_lea.vmem %s1, %s147
      %p149 = scmp.lt.s32.totalorder %s13, 1
      %s150 = scalar_select %p149, %s13, 1
      %s151 = smul.addr %s150, 4
      %s152 = scalar_lea.vmem %s2, %s151
      %v154 = vld [vmem:[%s145] sm:$0xf]
      %v155 = vld [vmem:[%s148] sm:$0x1]
      %v156 = vlaneseq
      %v157 = vshrl.u32 %v156, 7
      %v158 = vlaneseq
      %v159 = vand.u32 %v158, 127
      %vm160 = vcmp.ge.s32.totalorder %v157, %v159
      %v161 = vsel %vm160, 0.0, -1e+09
      %v163 = vperm.slane %v155, 0
      %v165 = vadd.f32 %v163, %v161
      %v167 = vunpack.c.l.b16 %v154
      %v168 = vpack.c.b16 %v167, %v167
      %169 = vrot.lane.b32.xlu0 %v168, 96
      %v170 = vpop.permute.xlu0 %169
      %vm171 = vcmask 64512
      %v173 = vsel %vm171, %v154, 0
      %v176 = vsel %vm171, %v170, 0
      %178 = vmatpush.bf16.xpose.msra.mxu0 0
      %179 = vmatpush.bf16.xpose.msra.mxu0 0
      %180 = vmatpush.bf16.xpose.msra.mxu0 0
      %181 = vmatpush.bf16.xpose.msra.mxu0 0
      %182 = vmatpush.bf16.xpose.msra.mxu0 0
      %183 = vmatpush.bf16.xpose.msra.mxu0 0
      %184 = vmatpush.bf16.xpose.msra.mxu0 0
      %185 = vmatpush.bf16.xpose.msra.mxu0 %v176
      %186 = vmatmul.bf16.gmra.mxu0 %v173
      %v187 = vpop.f32.mrf.mxu0
      %v188 = vadd.f32 %v165, %v187
      %v189 = vpop.f32.mrf.mxu0
      %190 = vdwg.mxu0
      %v191 = vsel %vm171, %v188, -inf
      %192 = vmax.xlane.f32.xlu0 %v191
      %v193 = vpop.xlane.xlu0 %192
      %v194 = vsub.f32 %v188, %v193
      %v195 = vmul.f32 %v194, 1.442695
      %v196 = vpow.pop %v195
      %v197 = vsel %vm171, %v196, 0.0
      %198 = vadd.xlane.f32.xlu0 %v197
      %v199 = vpop.xlane.xlu0 %198
      %v200 = vrcp.pop %v199
      %v201 = vmul.f32 %v196, %v200
      %v202 = vpack.c.bf16 %v201, %v201
      %203 = vrot.lane.b32.xlu0 %v168, 64
      %v204 = vpop.permute.xlu0 %203
      %v206 = vsel %vm171, %v202, 0
      %vm208 = vcmask 1043456
      %v210 = vsel %vm208, %v204, 0
      %212 = vmatpush.bf16.msra.mxu0 0
      %213 = vmatpush.bf16.msra.mxu0 0
      %214 = vmatpush.bf16.msra.mxu0 0
      %215 = vmatpush.bf16.msra.mxu0 0
      %216 = vmatpush.bf16.msra.mxu0 0
      %217 = vmatpush.bf16.msra.mxu0 0
      %218 = vmatpush.bf16.msra.mxu0 0
      %219 = vmatpush.bf16.msra.mxu0 %v210
      %220 = vmatmul.bf16.gmra.mxu0 %v206
      %v221 = vpop.f32.mrf.mxu0
      %v222 = vadd.f32 0.0, %v221
      %v223 = vpop.f32.mrf.mxu0
      %224 = vdwg.mxu0
      %225 = vrot.lane.b32.xlu0 %v168, 120
      %v226 = vpop.permute.xlu0 %225
      %227 = vrot.lane.b32.xlu0 %v168, 88
      %v228 = vpop.permute.xlu0 %227
      %v230 = vsel %vm171, %v226, 0
      %v233 = vsel %vm171, %v228, 0
      %235 = vmatpush.bf16.xpose.msra.mxu0 0
      %236 = vmatpush.bf16.xpose.msra.mxu0 0
      %237 = vmatpush.bf16.xpose.msra.mxu0 0
      %238 = vmatpush.bf16.xpose.msra.mxu0 0
      %239 = vmatpush.bf16.xpose.msra.mxu0 0
      %240 = vmatpush.bf16.xpose.msra.mxu0 0
      %241 = vmatpush.bf16.xpose.msra.mxu0 0
      %242 = vmatpush.bf16.xpose.msra.mxu0 %v233
      %243 = vmatmul.bf16.gmra.mxu0 %v230
      %v244 = vpop.f32.mrf.mxu0
      %v245 = vadd.f32 %v165, %v244
      %v246 = vpop.f32.mrf.mxu0
      %247 = vdwg.mxu0
      %v248 = vsel %vm171, %v245, -inf
      %249 = vmax.xlane.f32.xlu0 %v248
      %v250 = vpop.xlane.xlu0 %249
      %v251 = vsub.f32 %v245, %v250
      %v252 = vmul.f32 %v251, 1.442695
      %v253 = vpow.pop %v252
      %v254 = vsel %vm171, %v253, 0.0
      %255 = vadd.xlane.f32.xlu0 %v254
      %v256 = vpop.xlane.xlu0 %255
      %v257 = vrcp.pop %v256
      %v258 = vmul.f32 %v253, %v257
      %v259 = vpack.c.bf16 %v258, %v258
      %260 = vrot.lane.b32.xlu0 %v168, 56
      %v261 = vpop.permute.xlu0 %260
      %v263 = vsel %vm171, %v259, 0
      %v266 = vsel %vm208, %v261, 0
      %268 = vmatpush.bf16.msra.mxu0 0
      %269 = vmatpush.bf16.msra.mxu0 0
      %270 = vmatpush.bf16.msra.mxu0 0
      %271 = vmatpush.bf16.msra.mxu0 0
      %272 = vmatpush.bf16.msra.mxu0 0
      %273 = vmatpush.bf16.msra.mxu0 0
      %274 = vmatpush.bf16.msra.mxu0 0
      %275 = vmatpush.bf16.msra.mxu0 %v266
      %276 = vmatmul.bf16.gmra.mxu0 %v263
      %v277 = vpop.f32.mrf.mxu0
      %v278 = vadd.f32 0.0, %v277
      %v279 = vpop.f32.mrf.mxu0
      %280 = vdwg.mxu0
      %281 = vrot.lane.b32.xlu0 %v168, 112
      %v282 = vpop.permute.xlu0 %281
      %283 = vrot.lane.b32.xlu0 %v168, 80
      %v284 = vpop.permute.xlu0 %283
      %v286 = vsel %vm171, %v282, 0
      %v289 = vsel %vm171, %v284, 0
      %291 = vmatpush.bf16.xpose.msra.mxu0 0
      %292 = vmatpush.bf16.xpose.msra.mxu0 0
      %293 = vmatpush.bf16.xpose.msra.mxu0 0
      %294 = vmatpush.bf16.xpose.msra.mxu0 0
      %295 = vmatpush.bf16.xpose.msra.mxu0 0
      %296 = vmatpush.bf16.xpose.msra.mxu0 0
      %297 = vmatpush.bf16.xpose.msra.mxu0 0
      %298 = vmatpush.bf16.xpose.msra.mxu0 %v289
      %299 = vmatmul.bf16.gmra.mxu0 %v286
      %v300 = vpop.f32.mrf.mxu0
      %v301 = vadd.f32 %v165, %v300
      %v302 = vpop.f32.mrf.mxu0
      %303 = vdwg.mxu0
      %v304 = vsel %vm171, %v301, -inf
      %305 = vmax.xlane.f32.xlu0 %v304
      %v306 = vpop.xlane.xlu0 %305
      %v307 = vsub.f32 %v301, %v306
      %v308 = vmul.f32 %v307, 1.442695
      %v309 = vpow.pop %v308
      %v310 = vsel %vm171, %v309, 0.0
      %311 = vadd.xlane.f32.xlu0 %v310
      %v312 = vpop.xlane.xlu0 %311
      %v313 = vrcp.pop %v312
      %v314 = vmul.f32 %v309, %v313
      %v315 = vpack.c.bf16 %v314, %v314
      %316 = vrot.lane.b32.xlu0 %v168, 48
      %v317 = vpop.permute.xlu0 %316
      %v319 = vsel %vm171, %v315, 0
      %v322 = vsel %vm208, %v317, 0
      %324 = vmatpush.bf16.msra.mxu0 0
      %325 = vmatpush.bf16.msra.mxu0 0
      %326 = vmatpush.bf16.msra.mxu0 0
      %327 = vmatpush.bf16.msra.mxu0 0
      %328 = vmatpush.bf16.msra.mxu0 0
      %329 = vmatpush.bf16.msra.mxu0 0
      %330 = vmatpush.bf16.msra.mxu0 0
      %331 = vmatpush.bf16.msra.mxu0 %v322
      %332 = vmatmul.bf16.gmra.mxu0 %v319
      %v333 = vpop.f32.mrf.mxu0
      %v334 = vadd.f32 0.0, %v333
      %v335 = vpop.f32.mrf.mxu0
      %336 = vdwg.mxu0
      %337 = vrot.lane.b32.xlu0 %v168, 104
      %v338 = vpop.permute.xlu0 %337
      %339 = vrot.lane.b32.xlu0 %v168, 72
      %v340 = vpop.permute.xlu0 %339
      %v342 = vsel %vm171, %v338, 0
      %v345 = vsel %vm171, %v340, 0
      %347 = vmatpush.bf16.xpose.msra.mxu0 0
      %348 = vmatpush.bf16.xpose.msra.mxu0 0
      %349 = vmatpush.bf16.xpose.msra.mxu0 0
      %350 = vmatpush.bf16.xpose.msra.mxu0 0
      %351 = vmatpush.bf16.xpose.msra.mxu0 0
      %352 = vmatpush.bf16.xpose.msra.mxu0 0
      %353 = vmatpush.bf16.xpose.msra.mxu0 0
      %354 = vmatpush.bf16.xpose.msra.mxu0 %v345
      %355 = vmatmul.bf16.gmra.mxu0 %v342
      %v356 = vpop.f32.mrf.mxu0
      %v357 = vadd.f32 %v165, %v356
      %v358 = vpop.f32.mrf.mxu0
      %359 = vdwg.mxu0
      %v360 = vsel %vm171, %v357, -inf
      %361 = vmax.xlane.f32.xlu0 %v360
      %v362 = vpop.xlane.xlu0 %361
      %v363 = vsub.f32 %v357, %v362
      %v364 = vmul.f32 %v363, 1.442695
      %v365 = vpow.pop %v364
      %v366 = vsel %vm171, %v365, 0.0
      %367 = vadd.xlane.f32.xlu0 %v366
      %v368 = vpop.xlane.xlu0 %367
      %v369 = vrcp.pop %v368
      %v370 = vmul.f32 %v365, %v369
      %v371 = vpack.c.bf16 %v370, %v370
      %372 = vrot.lane.b32.xlu0 %v168, 40
      %v373 = vpop.permute.xlu0 %372
      %v375 = vsel %vm171, %v371, 0
      %v378 = vsel %vm208, %v373, 0
      %380 = vmatpush.bf16.msra.mxu0 0
      %381 = vmatpush.bf16.msra.mxu0 0
      %382 = vmatpush.bf16.msra.mxu0 0
      %383 = vmatpush.bf16.msra.mxu0 0
      %384 = vmatpush.bf16.msra.mxu0 0
      %385 = vmatpush.bf16.msra.mxu0 0
      %386 = vmatpush.bf16.msra.mxu0 0
      %387 = vmatpush.bf16.msra.mxu0 %v378
      %388 = vmatmul.bf16.gmra.mxu0 %v375
      %v389 = vpop.f32.mrf.mxu0
      %v390 = vadd.f32 0.0, %v389
      %v391 = vpop.f32.mrf.mxu0
      %392 = vdwg.mxu0
      %394 = vrot.lane.b32.xlu0 %v278, 8
      %v395 = vpop.permute.xlu0 %394
      %398 = vrot.lane.b32.xlu0 %v334, 16
      %v399 = vpop.permute.xlu0 %398
      %402 = vrot.lane.b32.xlu0 %v390, 24
      %v403 = vpop.permute.xlu0 %402
      %v405 = vsel %vm171, %v222, %v395
      %vm406 = vcmask 130048
      %v407 = vsel %vm406, %v405, %v399
      %vm408 = vcmask 195584
      %v409 = vsel %vm408, %v407, %v403
      %v410 = vpack.c.bf16 %v409, %v409
      %vm411 = vcmask 257024
      %412 = vst.msk [vmem:[%s152] sm:$0xf] %vm411, %v410
      %p413 = scmp.lt.s32.totalorder %s13, 1
      %s414 = scalar_select %p413, %s13, 1
      %s415 = smul.addr %s414, 4
      %s416 = scalar_lea.vmem %s2, %s415
      // Predicated region
      $region29: #{distill_backbone_forward.30} parent=27 // pred_check
        %p417 = pneg %p83
      $region30: #{distill_backbone_forward.30} parent=27 // pred_check_branch
        %419 = sbr.rel (%p417) target = $region32
      $region31: #{distill_backbone_forward.30} parent=27 // pred_region
        _
      $region32: #{distill_backbone_forward.30} parent=27 // pred_fallthru
        _
    $region28: #{distill_backbone_forward.30} parent=5 // pred_fallthru
      _
    %p420 = scmp.le.s32.totalorder 2, %s8
    // Predicated region
    $region33: #{distill_backbone_forward.30} parent=5 // pred_check
      %p421 = pneg %p420
    $region34: #{distill_backbone_forward.30} parent=5 // pred_check_branch
      %423 = sbr.rel (%p421) target = $region36
    $region35: #{distill_backbone_forward.30} parent=5 // pred_region
      %s424 = ssub.s32 %s8, 2
      // Predicated region
      $region37: #{distill_backbone_forward.30} parent=35 // pred_check
        %p425 = pneg %p89
      $region38: #{distill_backbone_forward.30} parent=35 // pred_check_branch
        %427 = sbr.rel (%p425) target = $region40
      $region39: #{distill_backbone_forward.30} parent=35 // pred_region
        %p428 = scmp.lt.s32.totalorder %s14, 1
        %s429 = scalar_select %p428, %s14, 1
        %s430 = smul.addr %s429, 4
        %s431 = scalar_lea.vmem %s2, %s430
      $region40: #{distill_backbone_forward.30} parent=35 // pred_fallthru
        _
    $region36: #{distill_backbone_forward.30} parent=5 // pred_fallthru
      _
  $region6: #{distill_backbone_forward.30} parent=0 // loop_footer
    %s12 = sadd.s32 1, %s8
  $region7: #{distill_backbone_forward.30} parent=0 // loop_footer_branch
    %7 = sbr.rel target = $region3
  $region8: #{distill_backbone_forward.30} parent=0 // loop_exit
    _

// kernel: distill_backbone_forward.28
$region0: #{distill_backbone_forward.28}
  #allocation0 [shape = 'u32[]', space=smem, size = 0x4, offset = 0x4, fixed_abs, tag = 'smem constant byte address 0x4 - core index']
  #allocation1 [shape = 'u32[72,128]{1,0:T(1,128)}', space=vmem, size = 0x9000, scoped, tag = 'internal scratch']
  %s0 = inlined_call_operand.vmem [shape: bf16[16,32], index: 0, kind: input, shape index: {}]
  %s1 = inlined_call_operand.vmem [shape: f32[16,1], index: 1, kind: output, shape index: {}]
  %s2 = sld [smem:[#allocation0]]
  $region37: #{distill_backbone_forward.28} parent=0
    _
  %s4 = ssub.s32 1, %s2
  %s5 = scalar_select 0, %s4, %s2
  loop: start=0, step=1, limit=4
  $region2: #{distill_backbone_forward.28} parent=0 // loop_pre_header
    _
  $region3: #{distill_backbone_forward.28} parent=0 // loop_header
    %s7 = sphi 0, %s11
    %p8 = scmp.ge.s32.totalorder %s7, 4
    %s17 = sphi 0, %s19
    %s20 = sphi 0, %s17
    %s21 = sphi 0, %s20
    %s37 = sphi 0, %s21
    %s43 = sphi 0, %s45
    %s46 = sphi 0, %s43
    %s47 = sphi 0, %s46
    %s63 = sphi 0, %s47
  $region4: #{distill_backbone_forward.28} parent=0 // loop_header_branch
    %10 = sbr.rel (%p8) target = $region8
  $region5: #{distill_backbone_forward.28} parent=0 // loop_body
    %s12 = ssub.s32 %s7, 1
    %s13 = ssub.s32 %s7, 2
    %s14 = sadd.s32 %s7, 1
    %s15 = ssub.s32 %s7, %s14
    %p16 = scmp.eq.s32.totalorder %s15, 0
    %s18 = sadd.s32 %s17, 1
    %s19 = scalar_select %p16, %s17, %s18
    %p22 = pneg %p16
    %p23 = scmp.eq.s32.totalorder %s7, 1
    %p24 = por %p22, %p23
    %p25 = scmp.ne.s32.totalorder %s17, %s20
    %p26 = scmp.eq.s32.totalorder %s7, 0
    %p27 = por %p25, %p26
    %p28 = scmp.ne.s32.totalorder %s17, %s20
    %p29 = scmp.eq.s32.totalorder %s12, 1
    %p30 = por %p28, %p29
    %p31 = scmp.ne.s32.totalorder %s20, %s21
    %p32 = scmp.eq.s32.totalorder %s12, 0
    %p33 = por %p31, %p32
    %p34 = scmp.ne.s32.totalorder %s20, %s21
    %p35 = scmp.eq.s32.totalorder %s13, 1
    %p36 = por %p34, %p35
    %p38 = scmp.ne.s32.totalorder %s21, %s37
    %p39 = scmp.eq.s32.totalorder %s13, 0
    %p40 = por %p38, %p39
    %s41 = ssub.s32 %s7, %s14
    %p42 = scmp.eq.s32.totalorder %s41, 0
    %s44 = sadd.s32 %s43, 1
    %s45 = scalar_select %p42, %s43, %s44
    %p48 = pneg %p42
    %p49 = scmp.eq.s32.totalorder %s7, 1
    %p50 = por %p48, %p49
    %p51 = scmp.ne.s32.totalorder %s43, %s46
    %p52 = scmp.eq.s32.totalorder %s7, 0
    %p53 = por %p51, %p52
    %p54 = scmp.ne.s32.totalorder %s43, %s46
    %p55 = scmp.eq.s32.totalorder %s12, 1
    %p56 = por %p54, %p55
    %p57 = scmp.ne.s32.totalorder %s46, %s47
    %p58 = scmp.eq.s32.totalorder %s12, 0
    %p59 = por %p57, %p58
    %p60 = scmp.ne.s32.totalorder %s46, %s47
    %p61 = scmp.eq.s32.totalorder %s13, 1
    %p62 = por %p60, %p61
    %p64 = scmp.ne.s32.totalorder %s47, %s63
    %p65 = scmp.eq.s32.totalorder %s13, 0
    %p66 = por %p64, %p65
    %p67 = scmp.le.s32.totalorder 1, %s7
    %p68 = scmp.lt.s32.totalorder %s7, 3
    %p69 = pnand %p67, %p68
    %p70 = pneg %p69
    // Predicated region
    $region9: #{distill_backbone_forward.28} parent=5 // pred_check
      _
    $region10: #{distill_backbone_forward.28} parent=5 // pred_check_branch
      %72 = sbr.rel (%p69) target = $region12
    $region11: #{distill_backbone_forward.28} parent=5 // pred_region
      %s73 = ssub.s32 %s7, 1
    $region12: #{distill_backbone_forward.28} parent=5 // pred_fallthru
      _
    %p74 = scmp.lt.s32.totalorder %s7, 2
    // Predicated region
    $region13: #{distill_backbone_forward.28} parent=5 // pred_check
      %p75 = pneg %p74
    $region14: #{distill_backbone_forward.28} parent=5 // pred_check_branch
      %77 = sbr.rel (%p75) target = $region16
    $region15: #{distill_backbone_forward.28} parent=5 // pred_region
      // Predicated region
      $region17: #{distill_backbone_forward.28} parent=15 // pred_check
        %p78 = pneg %p27
      $region18: #{distill_backbone_forward.28} parent=15 // pred_check_branch
        %80 = sbr.rel (%p78) target = $region20
      $region19: #{distill_backbone_forward.28} parent=15 // pred_region
        %p81 = scmp.lt.s32.totalorder %s7, 1
        %s82 = scalar_select %p81, %s7, 1
        %s83 = smul.addr %s82, 4
        %s84 = scalar_lea.vmem %s0, %s83
      $region20: #{distill_backbone_forward.28} parent=15 // pred_fallthru
        _
    $region16: #{distill_backbone_forward.28} parent=5 // pred_fallthru
      _
    %p85 = scmp.le.s32.totalorder 1, %s7
    %p86 = scmp.lt.s32.totalorder %s7, 3
    %p87 = pnand %p85, %p86
    %p88 = pneg %p87
    // Predicated region
    $region21: #{distill_backbone_forward.28} parent=5 // pred_check
      _
    $region22: #{distill_backbone_forward.28} parent=5 // pred_check_branch
      %90 = sbr.rel (%p87) target = $region24
    $region23: #{distill_backbone_forward.28} parent=5 // pred_region
      %s91 = ssub.s32 %s7, 1
      %p92 = scmp.lt.s32.totalorder %s12, 1
      %s93 = scalar_select %p92, %s12, 1
      %s94 = smul.addr %s93, 4
      %s95 = scalar_lea.vmem %s0, %s94
      %p96 = pneg %p33
      %p97 = pneg %p30
      %p98 = pneg %p59
      %p99 = pneg %p56
      %p100 = scmp.lt.s32.totalorder %s12, 1
      %s101 = scalar_select %p100, %s12, 1
      %s102 = smul.addr %s101, 8
      %s103 = scalar_lea.vmem %s1, %s102
      %p104 = scmp.lt.s32.totalorder %s12, 1
      %s105 = scalar_select %p104, %s12, 1
      %s106 = smul.addr %s105, 4
      %s107 = scalar_lea.vmem %s0, %s106
      %p108 = scmp.lt.s32.totalorder %s12, 1
      %s109 = scalar_select %p108, %s12, 1
      %s110 = smul.addr %s109, 8
      %s111 = scalar_lea.vmem %s1, %s110
      %v112 = vld [vmem:[%s107] sm:$0xf]
      %v113 = vunpack.c.l.bf16 %v112
      %v114 = vmul.f32 %v113, %v113
      %vm115 = vcmask 261120
      %v116 = vsel %vm115, %v114, 0.0
      %117 = vadd.xlane.f32.xlu0 %v116
      %v118 = vpop.xlane.xlu0 %117
      %v119 = vrcp.pop 32.0
      %v120 = vmul.f32 32.0, %v119
      %v121 = vsub.f32 1.0, %v120
      %v122 = vmul.f32 %v119, %v121
      %v123 = vadd.f32 %v119, %v122
      %vm124 = vweird.f32 %v119
      %v125 = vsel %vm124, %v119, %v123
      %v126 = vmul.f32 %v118, %v125
      %v127 = vadd.f32 %v126, 1e-06
      %v128 = vrsqrt.pop %v127
      %v129 = vmul.f32 %v128, %v127
      %v130 = vmul.f32 %v129, %v128
      %v131 = vmul.f32 0.5, %v130
      %v132 = vsub.f32 1.5, %v131
      %v133 = vmul.f32 %v128, %v132
      %vm134 = vweird.f32 %v127
      %vm135 = vweird.f32 %v128
      %vm136 = vmor %vm134, %vm135
      %v137 = vsel %vm136, %v128, %v133
      %vm138 = vcmask 7168
      %139 = vst.msk [vmem:[%s111] sm:$0xff] %vm138, %v137
      %p140 = scmp.lt.s32.totalorder %s12, 1
      %s141 = scalar_select %p140, %s12, 1
      %s142 = smul.addr %s141, 8
      %s143 = scalar_lea.vmem %s1, %s142
      // Predicated region
      $region25: #{distill_backbone_forward.28} parent=23 // pred_check
        %p144 = pneg %p56
      $region26: #{distill_backbone_forward.28} parent=23 // pred_check_branch
        %146 = sbr.rel (%p144) target = $region28
      $region27: #{distill_backbone_forward.28} parent=23 // pred_region
        _
      $region28: #{distill_backbone_forward.28} parent=23 // pred_fallthru
        _
    $region24: #{distill_backbone_forward.28} parent=5 // pred_fallthru
      _
    %p147 = scmp.le.s32.totalorder 2, %s7
    // Predicated region
    $region29: #{distill_backbone_forward.28} parent=5 // pred_check
      %p148 = pneg %p147
    $region30: #{distill_backbone_forward.28} parent=5 // pred_check_branch
      %150 = sbr.rel (%p148) target = $region32
    $region31: #{distill_backbone_forward.28} parent=5 // pred_region
      %s151 = ssub.s32 %s7, 2
      // Predicated region
      $region33: #{distill_backbone_forward.28} parent=31 // pred_check
        %p152 = pneg %p62
      $region34: #{distill_backbone_forward.28} parent=31 // pred_check_branch
        %154 = sbr.rel (%p152) target = $region36
      $region35: #{distill_backbone_forward.28} parent=31 // pred_region
        %p155 = scmp.lt.s32.totalorder %s13, 1
        %s156 = scalar_select %p155, %s13, 1
        %s157 = smul.addr %s156, 8
        %s158 = scalar_lea.vmem %s1, %s157
      $region36: #{distill_backbone_forward.28} parent=31 // pred_fallthru
        _
    $region32: #{distill_backbone_forward.28} parent=5 // pred_fallthru
      _
  $region6: #{distill_backbone_forward.28} parent=0 // loop_footer
    %s11 = sadd.s32 1, %s7
  $region7: #{distill_backbone_forward.28} parent=0 // loop_footer_branch
    %6 = sbr.rel target = $region3
  $region8: #{distill_backbone_forward.28} parent=0 // loop_exit
    _

// kernel: distill_backbone_forward.31
$region0: #{distill_backbone_forward.31}
  #allocation0 [shape = 'u32[]', space=smem, size = 0x4, offset = 0x4, fixed_abs, tag = 'smem constant byte address 0x4 - core index']
  #allocation1 [shape = 'u32[72,128]{1,0:T(1,128)}', space=vmem, size = 0x9000, scoped, tag = 'internal scratch']
  #allocation2 [shape = 'f32[8,32]{1,0:T(8,128)}', space=vmem, size = 0x1000, scoped, tag = 'scratch operand']
  %s0 = inlined_call_operand.vmem [shape: bf16[16,32], index: 0, kind: input, shape index: {}]
  %s1 = inlined_call_operand.vmem [shape: bf16[32,32], index: 1, kind: input, shape index: {}]
  %s2 = inlined_call_operand.vmem [shape: bf16[16,32], index: 2, kind: input, shape index: {}]
  %s3 = inlined_call_operand.vmem [shape: bf16[16,32], index: 3, kind: output, shape index: {}]
  %s4 = sld [smem:[#allocation0]]
  $region53: #{distill_backbone_forward.31} parent=0
    _
  %s6 = ssub.s32 1, %s4
  %s7 = scalar_select 0, %s6, %s4
  loop: start=0, step=1, limit=4
  $region2: #{distill_backbone_forward.31} parent=0 // loop_pre_header
    _
  $region3: #{distill_backbone_forward.31} parent=0 // loop_header
    %s9 = sphi 0, %s13
    %p10 = scmp.ge.s32.totalorder %s9, 4
    %s16 = sphi 0, %s35
    %s17 = sphi 0, %s31
    %s18 = sphi 0, %s27
    %s19 = sphi 0, %s16
    %s20 = sphi 0, %s17
    %s21 = sphi 0, %s18
    %s22 = sphi 0, %s19
    %s23 = sphi 0, %s20
    %s24 = sphi 0, %s21
    %s40 = sphi 0, %s42
    %s43 = sphi 0, %s40
    %s44 = sphi 0, %s43
    %s60 = sphi 0, %s44
    %s68 = sphi 0, %s70
    %s71 = sphi 0, %s68
    %s72 = sphi 0, %s71
    %s88 = sphi 0, %s72
    %s96 = sphi 0, %s98
    %s99 = sphi 0, %s96
    %s100 = sphi 0, %s99
    %s116 = sphi 0, %s100
    %s124 = sphi 0, %s126
    %s127 = sphi 0, %s124
    %s128 = sphi 0, %s127
    %s144 = sphi 0, %s128
  $region4: #{distill_backbone_forward.31} parent=0 // loop_header_branch
    %12 = sbr.rel (%p10) target = $region8
  $region5: #{distill_backbone_forward.31} parent=0 // loop_body
    %s14 = ssub.s32 %s9, 1
    %s15 = ssub.s32 %s9, 2
    %s25 = sadd.s32 1, %s18
    %p26 = scmp.ge.s32.totalorder %s25, 1
    %s27 = scalar_select %p26, 0, %s25
    %s28 = sadd.s32 1, %s17
    %s29 = scalar_select %p26, %s28, %s17
    %p30 = scmp.ge.s32.totalorder %s29, 1
    %s31 = scalar_select %p30, 0, %s29
    %s32 = sadd.s32 1, %s16
    %s33 = scalar_select %p30, %s32, %s16
    %p34 = scmp.ge.s32.totalorder %s33, 2
    %s35 = scalar_select %p34, 0, %s33
    %s36 = ssub.s32 %s16, %s35
    %s37 = ssub.s32 %s18, %s27
    %s38 = sor.u32 %s36, %s37
    %p39 = scmp.eq.s32.totalorder %s38, 0
    %s41 = sadd.s32 %s40, 1
    %s42 = scalar_select %p39, %s40, %s41
    %p45 = pneg %p39
    %p46 = scmp.eq.s32.totalorder %s9, 1
    %p47 = por %p45, %p46
    %p48 = scmp.ne.s32.totalorder %s40, %s43
    %p49 = scmp.eq.s32.totalorder %s9, 0
    %p50 = por %p48, %p49
    %p51 = scmp.ne.s32.totalorder %s40, %s43
    %p52 = scmp.eq.s32.totalorder %s14, 1
    %p53 = por %p51, %p52
    %p54 = scmp.ne.s32.totalorder %s43, %s44
    %p55 = scmp.eq.s32.totalorder %s14, 0
    %p56 = por %p54, %p55
    %p57 = scmp.ne.s32.totalorder %s43, %s44
    %p58 = scmp.eq.s32.totalorder %s15, 1
    %p59 = por %p57, %p58
    %p61 = scmp.ne.s32.totalorder %s44, %s60
    %p62 = scmp.eq.s32.totalorder %s15, 0
    %p63 = por %p61, %p62
    %s64 = ssub.s32 %s18, %s27
    %s65 = ssub.s32 %s17, %s31
    %s66 = sor.u32 %s64, %s65
    %p67 = scmp.eq.s32.totalorder %s66, 0
    %s69 = sadd.s32 %s68, 1
    %s70 = scalar_select %p67, %s68, %s69
    %p73 = pneg %p67
    %p74 = scmp.eq.s32.totalorder %s9, 1
    %p75 = por %p73, %p74
    %p76 = scmp.ne.s32.totalorder %s68, %s71
    %p77 = scmp.eq.s32.totalorder %s9, 0
    %p78 = por %p76, %p77
    %p79 = scmp.ne.s32.totalorder %s68, %s71
    %p80 = scmp.eq.s32.totalorder %s14, 1
    %p81 = por %p79, %p80
    %p82 = scmp.ne.s32.totalorder %s71, %s72
    %p83 = scmp.eq.s32.totalorder %s14, 0
    %p84 = por %p82, %p83
    %p85 = scmp.ne.s32.totalorder %s71, %s72
    %p86 = scmp.eq.s32.totalorder %s15, 1
    %p87 = por %p85, %p86
    %p89 = scmp.ne.s32.totalorder %s72, %s88
    %p90 = scmp.eq.s32.totalorder %s15, 0
    %p91 = por %p89, %p90
    %s92 = ssub.s32 %s16, %s35
    %s93 = ssub.s32 %s17, %s31
    %s94 = sor.u32 %s92, %s93
    %p95 = scmp.eq.s32.totalorder %s94, 0
    %s97 = sadd.s32 %s96, 1
    %s98 = scalar_select %p95, %s96, %s97
    %p101 = pneg %p95
    %p102 = scmp.eq.s32.totalorder %s9, 1
    %p103 = por %p101, %p102
    %p104 = scmp.ne.s32.totalorder %s96, %s99
    %p105 = scmp.eq.s32.totalorder %s9, 0
    %p106 = por %p104, %p105
    %p107 = scmp.ne.s32.totalorder %s96, %s99
    %p108 = scmp.eq.s32.totalorder %s14, 1
    %p109 = por %p107, %p108
    %p110 = scmp.ne.s32.totalorder %s99, %s100
    %p111 = scmp.eq.s32.totalorder %s14, 0
    %p112 = por %p110, %p111
    %p113 = scmp.ne.s32.totalorder %s99, %s100
    %p114 = scmp.eq.s32.totalorder %s15, 1
    %p115 = por %p113, %p114
    %p117 = scmp.ne.s32.totalorder %s100, %s116
    %p118 = scmp.eq.s32.totalorder %s15, 0
    %p119 = por %p117, %p118
    %s120 = ssub.s32 %s16, %s35
    %s121 = ssub.s32 %s17, %s31
    %s122 = sor.u32 %s120, %s121
    %p123 = scmp.eq.s32.totalorder %s122, 0
    %s125 = sadd.s32 %s124, 1
    %s126 = scalar_select %p123, %s124, %s125
    %p129 = pneg %p123
    %p130 = scmp.eq.s32.totalorder %s9, 1
    %p131 = por %p129, %p130
    %p132 = scmp.ne.s32.totalorder %s124, %s127
    %p133 = scmp.eq.s32.totalorder %s9, 0
    %p134 = por %p132, %p133
    %p135 = scmp.ne.s32.totalorder %s124, %s127
    %p136 = scmp.eq.s32.totalorder %s14, 1
    %p137 = por %p135, %p136
    %p138 = scmp.ne.s32.totalorder %s127, %s128
    %p139 = scmp.eq.s32.totalorder %s14, 0
    %p140 = por %p138, %p139
    %p141 = scmp.ne.s32.totalorder %s127, %s128
    %p142 = scmp.eq.s32.totalorder %s15, 1
    %p143 = por %p141, %p142
    %p145 = scmp.ne.s32.totalorder %s128, %s144
    %p146 = scmp.eq.s32.totalorder %s15, 0
    %p147 = por %p145, %p146
    %p148 = scmp.le.s32.totalorder 1, %s9
    %p149 = scmp.lt.s32.totalorder %s9, 3
    %p150 = pnand %p148, %p149
    %p151 = pneg %p150
    // Predicated region
    $region9: #{distill_backbone_forward.31} parent=5 // pred_check
      _
    $region10: #{distill_backbone_forward.31} parent=5 // pred_check_branch
      %153 = sbr.rel (%p150) target = $region12
    $region11: #{distill_backbone_forward.31} parent=5 // pred_region
      %s154 = ssub.s32 %s9, 1
      // Predicated region
      $region13: #{distill_backbone_forward.31} parent=11 // pred_check
        %p155 = pneg %p84
      $region14: #{distill_backbone_forward.31} parent=11 // pred_check_branch
        %157 = sbr.rel (%p155) target = $region16
      $region15: #{distill_backbone_forward.31} parent=11 // pred_region
        %s158 = smul.u32 4, %s21
        %p159 = scmp.lt.s32.totalorder %s158, 3
        %s160 = scalar_select %p159, %s158, 3
        %p161 = scmp.lt.s32.totalorder %s20, 0
        %s162 = scalar_select %p161, %s20, 0
        %s163 = sadd.s32 %s162, %s160
        %s164 = smul.addr %s163, 4
        %s165 = scalar_lea.vmem %s1, %s164
        %s166 = smul.u32 4, %s21
      $region16: #{distill_backbone_forward.31} parent=11 // pred_fallthru
        _
    $region12: #{distill_backbone_forward.31} parent=5 // pred_fallthru
      _
    %p167 = scmp.lt.s32.totalorder %s9, 2
    // Predicated region
    $region17: #{distill_backbone_forward.31} parent=5 // pred_check
      %p168 = pneg %p167
    $region18: #{distill_backbone_forward.31} parent=5 // pred_check_branch
      %170 = sbr.rel (%p168) target = $region20
    $region19: #{distill_backbone_forward.31} parent=5 // pred_region
      // Predicated region
      $region21: #{distill_backbone_forward.31} parent=19 // pred_check
        %p171 = pneg %p50
      $region22: #{distill_backbone_forward.31} parent=19 // pred_check_branch
        %173 = sbr.rel (%p171) target = $region24
      $region23: #{distill_backbone_forward.31} parent=19 // pred_region
        %p174 = scmp.lt.s32.totalorder %s16, 1
        %s175 = scalar_select %p174, %s16, 1
        %p176 = scmp.lt.s32.totalorder %s18, 0
        %s177 = scalar_select %p176, %s18, 0
        %s178 = sadd.s32 %s177, %s175
        %s179 = smul.addr %s178, 4
        %s180 = scalar_lea.vmem %s0, %s179
      $region24: #{distill_backbone_forward.31} parent=19 // pred_fallthru
        _
      // Predicated region
      $region25: #{distill_backbone_forward.31} parent=19 // pred_check
        %p181 = pneg %p106
      $region26: #{distill_backbone_forward.31} parent=19 // pred_check_branch
        %183 = sbr.rel (%p181) target = $region28
      $region27: #{distill_backbone_forward.31} parent=19 // pred_region
        %p184 = scmp.lt.s32.totalorder %s16, 1
        %s185 = scalar_select %p184, %s16, 1
        %p186 = scmp.lt.s32.totalorder %s17, 0
        %s187 = scalar_select %p186, %s17, 0
        %s188 = sadd.s32 %s187, %s185
        %s189 = smul.addr %s188, 4
        %s190 = scalar_lea.vmem %s2, %s189
      $region28: #{distill_backbone_forward.31} parent=19 // pred_fallthru
        _
    $region20: #{distill_backbone_forward.31} parent=5 // pred_fallthru
      _
    %p191 = scmp.le.s32.totalorder 1, %s9
    %p192 = scmp.lt.s32.totalorder %s9, 3
    %p193 = pnand %p191, %p192
    %p194 = pneg %p193
    // Predicated region
    $region29: #{distill_backbone_forward.31} parent=5 // pred_check
      _
    $region30: #{distill_backbone_forward.31} parent=5 // pred_check_branch
      %196 = sbr.rel (%p193) target = $region32
    $region31: #{distill_backbone_forward.31} parent=5 // pred_region
      %s197 = ssub.s32 %s9, 1
      %p198 = scmp.lt.s32.totalorder %s19, 1
      %s199 = scalar_select %p198, %s19, 1
      %p200 = scmp.lt.s32.totalorder %s21, 0
      %s201 = scalar_select %p200, %s21, 0
      %s202 = sadd.s32 %s201, %s199
      %s203 = smul.addr %s202, 4
      %s204 = scalar_lea.vmem %s0, %s203
      %p205 = pneg %p56
      %p206 = pneg %p53
      %s207 = smul.u32 4, %s21
      %p208 = scmp.lt.s32.totalorder %s207, 3
      %s209 = scalar_select %p208, %s207, 3
      %p210 = scmp.lt.s32.totalorder %s20, 0
      %s211 = scalar_select %p210, %s20, 0
      %s212 = sadd.s32 %s211, %s209
      %s213 = smul.addr %s212, 4
      %s214 = scalar_lea.vmem %s1, %s213
      %p215 = pneg %p84
      %p216 = pneg %p81
      %p217 = scmp.lt.s32.totalorder %s19, 1
      %s218 = scalar_select %p217, %s19, 1
      %p219 = scmp.lt.s32.totalorder %s20, 0
      %s220 = scalar_select %p219, %s20, 0
      %s221 = sadd.s32 %s220, %s218
      %s222 = smul.addr %s221, 4
      %s223 = scalar_lea.vmem %s2, %s222
      %p224 = pneg %p112
      %p225 = pneg %p109
      %p226 = pneg %p140
      %p227 = pneg %p137
      %p228 = scmp.lt.s32.totalorder %s19, 1
      %s229 = scalar_select %p228, %s19, 1
      %p230 = scmp.lt.s32.totalorder %s20, 0
      %s231 = scalar_select %p230, %s20, 0
      %s232 = sadd.s32 %s231, %s229
      %s233 = smul.addr %s232, 4
      %s234 = scalar_lea.vmem %s3, %s233
      %p235 = scmp.lt.s32.totalorder %s19, 1
      %s236 = scalar_select %p235, %s19, 1
      %p237 = scmp.lt.s32.totalorder %s21, 0
      %s238 = scalar_select %p237, %s21, 0
      %s239 = sadd.s32 %s238, %s236
      %s240 = smul.addr %s239, 4
      %s241 = scalar_lea.vmem %s0, %s240
      %s242 = smul.u32 4, %s21
      %p243 = scmp.lt.s32.totalorder %s242, 3
      %s244 = scalar_select %p243, %s242, 3
      %p245 = scmp.lt.s32.totalorder %s20, 0
      %s246 = scalar_select %p245, %s20, 0
      %s247 = sadd.s32 %s246, %s244
      %s248 = smul.addr %s247, 4
      %s249 = scalar_lea.vmem %s1, %s248
      %s250 = smul.u32 4, %s21
      %p251 = scmp.lt.s32.totalorder %s19, 1
      %s252 = scalar_select %p251, %s19, 1
      %p253 = scmp.lt.s32.totalorder %s20, 0
      %s254 = scalar_select %p253, %s20, 0
      %s255 = sadd.s32 %s254, %s252
      %s256 = smul.addr %s255, 4
      %s257 = scalar_lea.vmem %s2, %s256
      %p258 = scmp.lt.s32.totalorder %s19, 1
      %s259 = scalar_select %p258, %s19, 1
      %p260 = scmp.lt.s32.totalorder %s20, 0
      %s261 = scalar_select %p260, %s20, 0
      %s262 = sadd.s32 %s261, %s259
      %s263 = smul.addr %s262, 4
      %s264 = scalar_lea.vmem %s3, %s263
      %p266 = scmp.eq.s32.totalorder %s21, 0
      // Predicated region
      $region33: #{distill_backbone_forward.31} parent=31 // pred_check
        %p267 = pneg %p266
      $region34: #{distill_backbone_forward.31} parent=31 // pred_check_branch
        %269 = sbr.rel (%p267) target = $region36
      $region35: #{distill_backbone_forward.31} parent=31 // pred_region
        %vm270 = vcmask 261120
        %271 = vst.msk [vmem:[#allocation2] sm:$0xff] %vm270, 0.0
      $region36: #{distill_backbone_forward.31} parent=31 // pred_fallthru
        _
      %v272 = vld [vmem:[%s241] sm:$0xf]
      %v273 = vld [vmem:[#allocation2] sm:$0xff]
      %v274 = vld [vmem:[%s249] sm:$0xf]
      %v275 = vld [vmem:[%s249 + $0x4] sm:$0xf]
      %v276 = vld [vmem:[%s249 + $0x8] sm:$0xf]
      %v277 = vld [vmem:[%s249 + $0xc] sm:$0xf]
      %v282 = vunpack.c.l.b16 %v274
      %v283 = vunpack.c.l.b16 %v275
      %v284 = vunpack.c.l.b16 %v276
      %v285 = vunpack.c.l.b16 %v277
      %v286 = vpack.c.b16 %v283, %v282
      %v287 = vpack.c.b16 %v285, %v284
      %vm290 = vcmask 261120
      %v292 = vsel %vm290, %v272, 0
      %294 = vmatpush.bf16.msra.mxu0 0
      %295 = vmatpush.bf16.msra.mxu0 0
      %296 = vmatpush.bf16.msra.mxu0 0
      %297 = vmatpush.bf16.msra.mxu0 0
      %298 = vmatpush.bf16.msra.mxu0 0
      %299 = vmatpush.bf16.msra.mxu0 0
      %300 = vmatpush.bf16.msra.mxu0 %v287
      %301 = vmatpush.bf16.msra.mxu0 %v286
      %302 = vmatmul.bf16.gmra.mxu0 %v292
      %v303 = vpop.f32.mrf.mxu0
      %v304 = vadd.f32 0.0, %v303
      %v305 = vpop.f32.mrf.mxu0
      %306 = vdwg.mxu0
      %v307 = vadd.f32 %v273, %v304
      %308 = vst.msk [vmem:[#allocation2] sm:$0xff] %vm290, %v307
      // Predicated region
      $region37: #{distill_backbone_forward.31} parent=31 // pred_check
        %p309 = pneg %p266
      $region38: #{distill_backbone_forward.31} parent=31 // pred_check_branch
        %311 = sbr.rel (%p309) target = $region40
      $region39: #{distill_backbone_forward.31} parent=31 // pred_region
        %v312 = vld [vmem:[#allocation2] sm:$0xff]
        %v313 = vld [vmem:[%s257] sm:$0xf]
        %v314 = vunpack.c.l.bf16 %v313
        %v315 = vadd.f32 %v312, %v314
        %v316 = vpack.c.bf16 %v315, %v315
        %vm317 = vcmask 257024
        %318 = vst.msk [vmem:[%s264] sm:$0xf] %vm317, %v316
      $region40: #{distill_backbone_forward.31} parent=31 // pred_fallthru
        _
      %p319 = scmp.lt.s32.totalorder %s19, 1
      %s320 = scalar_select %p319, %s19, 1
      %p321 = scmp.lt.s32.totalorder %s20, 0
      %s322 = scalar_select %p321, %s20, 0
      %s323 = sadd.s32 %s322, %s320
      %s324 = smul.addr %s323, 4
      %s325 = scalar_lea.vmem %s3, %s324
      // Predicated region
      $region41: #{distill_backbone_forward.31} parent=31 // pred_check
        %p326 = pneg %p137
      $region42: #{distill_backbone_forward.31} parent=31 // pred_check_branch
        %328 = sbr.rel (%p326) target = $region44
      $region43: #{distill_backbone_forward.31} parent=31 // pred_region
        _
      $region44: #{distill_backbone_forward.31} parent=31 // pred_fallthru
        _
    $region32: #{distill_backbone_forward.31} parent=5 // pred_fallthru
      _
    %p329 = scmp.le.s32.totalorder 2, %s9
    // Predicated region
    $region45: #{distill_backbone_forward.31} parent=5 // pred_check
      %p330 = pneg %p329
    $region46: #{distill_backbone_forward.31} parent=5 // pred_check_branch
      %332 = sbr.rel (%p330) target = $region48
    $region47: #{distill_backbone_forward.31} parent=5 // pred_region
      %s333 = ssub.s32 %s9, 2
      // Predicated region
      $region49: #{distill_backbone_forward.31} parent=47 // pred_check
        %p334 = pneg %p143
      $region50: #{distill_backbone_forward.31} parent=47 // pred_check_branch
        %336 = sbr.rel (%p334) target = $region52
      $region51: #{distill_backbone_forward.31} parent=47 // pred_region
        %p337 = scmp.lt.s32.totalorder %s22, 1
        %s338 = scalar_select %p337, %s22, 1
        %p339 = scmp.lt.s32.totalorder %s23, 0
        %s340 = scalar_select %p339, %s23, 0
        %s341 = sadd.s32 %s340, %s338
        %s342 = smul.addr %s341, 4
        %s343 = scalar_lea.vmem %s3, %s342
      $region52: #{distill_backbone_forward.31} parent=47 // pred_fallthru
        _
    $region48: #{distill_backbone_forward.31} parent=5 // pred_fallthru
      _
  $region6: #{distill_backbone_forward.31} parent=0 // loop_footer
    %s13 = sadd.s32 1, %s9
  $region7: #{distill_backbone_forward.31} parent=0 // loop_footer_branch
    %8 = sbr.rel target = $region3
  $region8: #{distill_backbone_forward.31} parent=0 // loop_exit
    _

// kernel: distill_backbone_forward.29
$region0: #{distill_backbone_forward.29}
  #allocation0 [shape = 'u32[]', space=smem, size = 0x4, offset = 0x4, fixed_abs, tag = 'smem constant byte address 0x4 - core index']
  #allocation1 [shape = 'u32[72,128]{1,0:T(1,128)}', space=vmem, size = 0x9000, scoped, tag = 'internal scratch']
  #allocation2 [shape = 'f32[8,96]{1,0:T(8,128)}', space=vmem, size = 0x1000, scoped, tag = 'scratch operand']
  %s0 = inlined_call_operand.vmem [shape: bf16[16,32], index: 0, kind: input, shape index: {}]
  %s1 = inlined_call_operand.vmem [shape: f32[16,1], index: 1, kind: input, shape index: {}]
  %s2 = inlined_call_operand.vmem [shape: f32[1,32], index: 2, kind: input, shape index: {}]
  %s3 = inlined_call_operand.vmem [shape: bf16[32,96], index: 3, kind: input, shape index: {}]
  %s4 = inlined_call_operand.vmem [shape: bf16[16,96], index: 4, kind: output, shape index: {}]
  %s5 = sld [smem:[#allocation0]]
  $region57: #{distill_backbone_forward.29} parent=0
    _
  %s7 = ssub.s32 1, %s5
  %s8 = scalar_select 0, %s7, %s5
  loop: start=0, step=1, limit=4
  $region2: #{distill_backbone_forward.29} parent=0 // loop_pre_header
    _
  $region3: #{distill_backbone_forward.29} parent=0 // loop_header
    %s10 = sphi 0, %s14
    %p11 = scmp.ge.s32.totalorder %s10, 4
    %s17 = sphi 0, %s36
    %s18 = sphi 0, %s32
    %s19 = sphi 0, %s28
    %s20 = sphi 0, %s17
    %s21 = sphi 0, %s18
    %s22 = sphi 0, %s19
    %s23 = sphi 0, %s20
    %s24 = sphi 0, %s21
    %s25 = sphi 0, %s22
    %s41 = sphi 0, %s43
    %s44 = sphi 0, %s41
    %s45 = sphi 0, %s44
    %s61 = sphi 0, %s45
    %s67 = sphi 0, %s69
    %s70 = sphi 0, %s67
    %s71 = sphi 0, %s70
    %s87 = sphi 0, %s71
    %s93 = sphi 0, %s95
    %s96 = sphi 0, %s93
    %s97 = sphi 0, %s96
    %s113 = sphi 0, %s97
    %s121 = sphi 0, %s123
    %s124 = sphi 0, %s121
    %s125 = sphi 0, %s124
    %s141 = sphi 0, %s125
    %s149 = sphi 0, %s151
    %s152 = sphi 0, %s149
    %s153 = sphi 0, %s152
    %s169 = sphi 0, %s153
  $region4: #{distill_backbone_forward.29} parent=0 // loop_header_branch
    %13 = sbr.rel (%p11) target = $region8
  $region5: #{distill_backbone_forward.29} parent=0 // loop_body
    %s15 = ssub.s32 %s10, 1
    %s16 = ssub.s32 %s10, 2
    %s26 = sadd.s32 1, %s19
    %p27 = scmp.ge.s32.totalorder %s26, 1
    %s28 = scalar_select %p27, 0, %s26
    %s29 = sadd.s32 1, %s18
    %s30 = scalar_select %p27, %s29, %s18
    %p31 = scmp.ge.s32.totalorder %s30, 1
    %s32 = scalar_select %p31, 0, %s30
    %s33 = sadd.s32 1, %s17
    %s34 = scalar_select %p31, %s33, %s17
    %p35 = scmp.ge.s32.totalorder %s34, 2
    %s36 = scalar_select %p35, 0, %s34
    %s37 = ssub.s32 %s17, %s36
    %s38 = ssub.s32 %s19, %s28
    %s39 = sor.u32 %s37, %s38
    %p40 = scmp.eq.s32.totalorder %s39, 0
    %s42 = sadd.s32 %s41, 1
    %s43 = scalar_select %p40, %s41, %s42
    %p46 = pneg %p40
    %p47 = scmp.eq.s32.totalorder %s10, 1
    %p48 = por %p46, %p47
    %p49 = scmp.ne.s32.totalorder %s41, %s44
    %p50 = scmp.eq.s32.totalorder %s10, 0
    %p51 = por %p49, %p50
    %p52 = scmp.ne.s32.totalorder %s41, %s44
    %p53 = scmp.eq.s32.totalorder %s15, 1
    %p54 = por %p52, %p53
    %p55 = scmp.ne.s32.totalorder %s44, %s45
    %p56 = scmp.eq.s32.totalorder %s15, 0
    %p57 = por %p55, %p56
    %p58 = scmp.ne.s32.totalorder %s44, %s45
    %p59 = scmp.eq.s32.totalorder %s16, 1
    %p60 = por %p58, %p59
    %p62 = scmp.ne.s32.totalorder %s45, %s61
    %p63 = scmp.eq.s32.totalorder %s16, 0
    %p64 = por %p62, %p63
    %s65 = ssub.s32 %s17, %s36
    %p66 = scmp.eq.s32.totalorder %s65, 0
    %s68 = sadd.s32 %s67, 1
    %s69 = scalar_select %p66, %s67, %s68
    %p72 = pneg %p66
    %p73 = scmp.eq.s32.totalorder %s10, 1
    %p74 = por %p72, %p73
    %p75 = scmp.ne.s32.totalorder %s67, %s70
    %p76 = scmp.eq.s32.totalorder %s10, 0
    %p77 = por %p75, %p76
    %p78 = scmp.ne.s32.totalorder %s67, %s70
    %p79 = scmp.eq.s32.totalorder %s15, 1
    %p80 = por %p78, %p79
    %p81 = scmp.ne.s32.totalorder %s70, %s71
    %p82 = scmp.eq.s32.totalorder %s15, 0
    %p83 = por %p81, %p82
    %p84 = scmp.ne.s32.totalorder %s70, %s71
    %p85 = scmp.eq.s32.totalorder %s16, 1
    %p86 = por %p84, %p85
    %p88 = scmp.ne.s32.totalorder %s71, %s87
    %p89 = scmp.eq.s32.totalorder %s16, 0
    %p90 = por %p88, %p89
    %s91 = ssub.s32 %s19, %s28
    %p92 = scmp.eq.s32.totalorder %s91, 0
    %s94 = sadd.s32 %s93, 1
    %s95 = scalar_select %p92, %s93, %s94
    %p98 = pneg %p92
    %p99 = scmp.eq.s32.totalorder %s10, 1
    %p100 = por %p98, %p99
    %p101 = scmp.ne.s32.totalorder %s93, %s96
    %p102 = scmp.eq.s32.totalorder %s10, 0
    %p103 = por %p101, %p102
    %p104 = scmp.ne.s32.totalorder %s93, %s96
    %p105 = scmp.eq.s32.totalorder %s15, 1
    %p106 = por %p104, %p105
    %p107 = scmp.ne.s32.totalorder %s96, %s97
    %p108 = scmp.eq.s32.totalorder %s15, 0
    %p109 = por %p107, %p108
    %p110 = scmp.ne.s32.totalorder %s96, %s97
    %p111 = scmp.eq.s32.totalorder %s16, 1
    %p112 = por %p110, %p111
    %p114 = scmp.ne.s32.totalorder %s97, %s113
    %p115 = scmp.eq.s32.totalorder %s16, 0
    %p116 = por %p114, %p115
    %s117 = ssub.s32 %s19, %s28
    %s118 = ssub.s32 %s18, %s32
    %s119 = sor.u32 %s117, %s118
    %p120 = scmp.eq.s32.totalorder %s119, 0
    %s122 = sadd.s32 %s121, 1
    %s123 = scalar_select %p120, %s121, %s122
    %p126 = pneg %p120
    %p127 = scmp.eq.s32.totalorder %s10, 1
    %p128 = por %p126, %p127
    %p129 = scmp.ne.s32.totalorder %s121, %s124
    %p130 = scmp.eq.s32.totalorder %s10, 0
    %p131 = por %p129, %p130
    %p132 = scmp.ne.s32.totalorder %s121, %s124
    %p133 = scmp.eq.s32.totalorder %s15, 1
    %p134 = por %p132, %p133
    %p135 = scmp.ne.s32.totalorder %s124, %s125
    %p136 = scmp.eq.s32.totalorder %s15, 0
    %p137 = por %p135, %p136
    %p138 = scmp.ne.s32.totalorder %s124, %s125
    %p139 = scmp.eq.s32.totalorder %s16, 1
    %p140 = por %p138, %p139
    %p142 = scmp.ne.s32.totalorder %s125, %s141
    %p143 = scmp.eq.s32.totalorder %s16, 0
    %p144 = por %p142, %p143
    %s145 = ssub.s32 %s17, %s36
    %s146 = ssub.s32 %s18, %s32
    %s147 = sor.u32 %s145, %s146
    %p148 = scmp.eq.s32.totalorder %s147, 0
    %s150 = sadd.s32 %s149, 1
    %s151 = scalar_select %p148, %s149, %s150
    %p154 = pneg %p148
    %p155 = scmp.eq.s32.totalorder %s10, 1
    %p156 = por %p154, %p155
    %p157 = scmp.ne.s32.totalorder %s149, %s152
    %p158 = scmp.eq.s32.totalorder %s10, 0
    %p159 = por %p157, %p158
    %p160 = scmp.ne.s32.totalorder %s149, %s152
    %p161 = scmp.eq.s32.totalorder %s15, 1
    %p162 = por %p160, %p161
    %p163 = scmp.ne.s32.totalorder %s152, %s153
    %p164 = scmp.eq.s32.totalorder %s15, 0
    %p165 = por %p163, %p164
    %p166 = scmp.ne.s32.totalorder %s152, %s153
    %p167 = scmp.eq.s32.totalorder %s16, 1
    %p168 = por %p166, %p167
    %p170 = scmp.ne.s32.totalorder %s153, %s169
    %p171 = scmp.eq.s32.totalorder %s16, 0
    %p172 = por %p170, %p171
    %p173 = scmp.le.s32.totalorder 1, %s10
    %p174 = scmp.lt.s32.totalorder %s10, 3
    %p175 = pnand %p173, %p174
    %p176 = pneg %p175
    // Predicated region
    $region9: #{distill_backbone_forward.29} parent=5 // pred_check
      _
    $region10: #{distill_backbone_forward.29} parent=5 // pred_check_branch
      %178 = sbr.rel (%p175) target = $region12
    $region11: #{distill_backbone_forward.29} parent=5 // pred_region
      %s179 = ssub.s32 %s10, 1
      // Predicated region
      $region13: #{distill_backbone_forward.29} parent=11 // pred_check
        %p180 = pneg %p109
      $region14: #{distill_backbone_forward.29} parent=11 // pred_check_branch
        %182 = sbr.rel (%p180) target = $region16
      $region15: #{distill_backbone_forward.29} parent=11 // pred_region
        %p183 = scmp.lt.s32.totalorder %s22, 0
        %s184 = scalar_select %p183, %s22, 0
        %s185 = scalar_lea.vmem %s2, %s184
      $region16: #{distill_backbone_forward.29} parent=11 // pred_fallthru
        _
      // Predicated region
      $region17: #{distill_backbone_forward.29} parent=11 // pred_check
        %p186 = pneg %p137
      $region18: #{distill_backbone_forward.29} parent=11 // pred_check_branch
        %188 = sbr.rel (%p186) target = $region20
      $region19: #{distill_backbone_forward.29} parent=11 // pred_region
        %s189 = smul.u32 4, %s22
        %p190 = scmp.lt.s32.totalorder %s189, 3
        %s191 = scalar_select %p190, %s189, 3
        %p192 = scmp.lt.s32.totalorder %s21, 0
        %s193 = scalar_select %p192, %s21, 0
        %s194 = sadd.s32 %s193, %s191
        %s195 = smul.addr %s194, 4
        %s196 = scalar_lea.vmem %s3, %s195
        %s197 = smul.u32 4, %s22
      $region20: #{distill_backbone_forward.29} parent=11 // pred_fallthru
        _
    $region12: #{distill_backbone_forward.29} parent=5 // pred_fallthru
      _
    %p198 = scmp.lt.s32.totalorder %s10, 2
    // Predicated region
    $region21: #{distill_backbone_forward.29} parent=5 // pred_check
      %p199 = pneg %p198
    $region22: #{distill_backbone_forward.29} parent=5 // pred_check_branch
      %201 = sbr.rel (%p199) target = $region24
    $region23: #{distill_backbone_forward.29} parent=5 // pred_region
      // Predicated region
      $region25: #{distill_backbone_forward.29} parent=23 // pred_check
        %p202 = pneg %p51
      $region26: #{distill_backbone_forward.29} parent=23 // pred_check_branch
        %204 = sbr.rel (%p202) target = $region28
      $region27: #{distill_backbone_forward.29} parent=23 // pred_region
        %p205 = scmp.lt.s32.totalorder %s17, 1
        %s206 = scalar_select %p205, %s17, 1
        %p207 = scmp.lt.s32.totalorder %s19, 0
        %s208 = scalar_select %p207, %s19, 0
        %s209 = sadd.s32 %s208, %s206
        %s210 = smul.addr %s209, 4
        %s211 = scalar_lea.vmem %s0, %s210
      $region28: #{distill_backbone_forward.29} parent=23 // pred_fallthru
        _
      // Predicated region
      $region29: #{distill_backbone_forward.29} parent=23 // pred_check
        %p212 = pneg %p77
      $region30: #{distill_backbone_forward.29} parent=23 // pred_check_branch
        %214 = sbr.rel (%p212) target = $region32
      $region31: #{distill_backbone_forward.29} parent=23 // pred_region
        %p215 = scmp.lt.s32.totalorder %s17, 1
        %s216 = scalar_select %p215, %s17, 1
        %s217 = smul.addr %s216, 8
        %s218 = scalar_lea.vmem %s1, %s217
      $region32: #{distill_backbone_forward.29} parent=23 // pred_fallthru
        _
    $region24: #{distill_backbone_forward.29} parent=5 // pred_fallthru
      _
    %p219 = scmp.le.s32.totalorder 1, %s10
    %p220 = scmp.lt.s32.totalorder %s10, 3
    %p221 = pnand %p219, %p220
    %p222 = pneg %p221
    // Predicated region
    $region33: #{distill_backbone_forward.29} parent=5 // pred_check
      _
    $region34: #{distill_backbone_forward.29} parent=5 // pred_check_branch
      %224 = sbr.rel (%p221) target = $region36
    $region35: #{distill_backbone_forward.29} parent=5 // pred_region
      %s225 = ssub.s32 %s10, 1
      %p226 = scmp.lt.s32.totalorder %s20, 1
      %s227 = scalar_select %p226, %s20, 1
      %p228 = scmp.lt.s32.totalorder %s22, 0
      %s229 = scalar_select %p228, %s22, 0
      %s230 = sadd.s32 %s229, %s227
      %s231 = smul.addr %s230, 4
      %s232 = scalar_lea.vmem %s0, %s231
      %p233 = pneg %p57
      %p234 = pneg %p54
      %p235 = scmp.lt.s32.totalorder %s20, 1
      %s236 = scalar_select %p235, %s20, 1
      %s237 = smul.addr %s236, 8
      %s238 = scalar_lea.vmem %s1, %s237
      %p239 = pneg %p83
      %p240 = pneg %p80
      %p241 = scmp.lt.s32.totalorder %s22, 0
      %s242 = scalar_select %p241, %s22, 0
      %s243 = scalar_lea.vmem %s2, %s242
      %p244 = pneg %p109
      %p245 = pneg %p106
      %s246 = smul.u32 4, %s22
      %p247 = scmp.lt.s32.totalorder %s246, 3
      %s248 = scalar_select %p247, %s246, 3
      %p249 = scmp.lt.s32.totalorder %s21, 0
      %s250 = scalar_select %p249, %s21, 0
      %s251 = sadd.s32 %s250, %s248
      %s252 = smul.addr %s251, 4
      %s253 = scalar_lea.vmem %s3, %s252
      %p254 = pneg %p137
      %p255 = pneg %p134
      %p256 = pneg %p165
      %p257 = pneg %p162
      %p258 = scmp.lt.s32.totalorder %s20, 1
      %s259 = scalar_select %p258, %s20, 1
      %p260 = scmp.lt.s32.totalorder %s21, 0
      %s261 = scalar_select %p260, %s21, 0
      %s262 = sadd.s32 %s261, %s259
      %s263 = smul.addr %s262, 4
      %s264 = scalar_lea.vmem %s4, %s263
      %p265 = scmp.lt.s32.totalorder %s20, 1
      %s266 = scalar_select %p265, %s20, 1
      %p267 = scmp.lt.s32.totalorder %s22, 0
      %s268 = scalar_select %p267, %s22, 0
      %s269 = sadd.s32 %s268, %s266
      %s270 = smul.addr %s269, 4
      %s271 = scalar_lea.vmem %s0, %s270
      %p272 = scmp.lt.s32.totalorder %s20, 1
      %s273 = scalar_select %p272, %s20, 1
      %s274 = smul.addr %s273, 8
      %s275 = scalar_lea.vmem %s1, %s274
      %p276 = scmp.lt.s32.totalorder %s22, 0
      %s277 = scalar_select %p276, %s22, 0
      %s278 = scalar_lea.vmem %s2, %s277
      %s279 = smul.u32 4, %s22
      %p280 = scmp.lt.s32.totalorder %s279, 3
      %s281 = scalar_select %p280, %s279, 3
      %p282 = scmp.lt.s32.totalorder %s21, 0
      %s283 = scalar_select %p282, %s21, 0
      %s284 = sadd.s32 %s283, %s281
      %s285 = smul.addr %s284, 4
      %s286 = scalar_lea.vmem %s3, %s285
      %s287 = smul.u32 4, %s22
      %p288 = scmp.lt.s32.totalorder %s20, 1
      %s289 = scalar_select %p288, %s20, 1
      %p290 = scmp.lt.s32.totalorder %s21, 0
      %s291 = scalar_select %p290, %s21, 0
      %s292 = sadd.s32 %s291, %s289
      %s293 = smul.addr %s292, 4
      %s294 = scalar_lea.vmem %s4, %s293
      %p296 = scmp.eq.s32.totalorder %s22, 0
      // Predicated region
      $region37: #{distill_backbone_forward.29} parent=35 // pred_check
        %p297 = pneg %p296
      $region38: #{distill_backbone_forward.29} parent=35 // pred_check_branch
        %299 = sbr.rel (%p297) target = $region40
      $region39: #{distill_backbone_forward.29} parent=35 // pred_region
        %vm300 = vcmask 785408
        %301 = vst.msk [vmem:[#allocation2] sm:$0xff] %vm300, 0.0
      $region40: #{distill_backbone_forward.29} parent=35 // pred_fallthru
        _
      %v302 = vld [vmem:[%s271] sm:$0xf]
      %v303 = vunpack.c.l.bf16 %v302
      %v304 = vld [vmem:[%s275] sm:$0xff]
      %306 = vset.pattern.permute.xlu0 0
      %307 = vperm.xlu0 %306, %v304
      %v308 = vpop.permute.xlu0 %307
      %v310 = vmul.f32 %v303, %v308
      %v311 = vld [vmem:[%s278] sm:$0x1]
      %v313 = vperm.slane %v311, 0
      %v315 = vmul.f32 %v310, %v313
      %v316 = vpack.c.bf16 %v315, %v315
      %v317 = vld [vmem:[#allocation2] sm:$0xff]
      %v318 = vld [vmem:[%s286] sm:$0xf]
      %v319 = vld [vmem:[%s286 + $0x4] sm:$0xf]
      %v320 = vld [vmem:[%s286 + $0x8] sm:$0xf]
      %v321 = vld [vmem:[%s286 + $0xc] sm:$0xf]
      %v326 = vunpack.c.l.b16 %v318
      %v327 = vunpack.c.l.b16 %v319
      %v328 = vunpack.c.l.b16 %v320
      %v329 = vunpack.c.l.b16 %v321
      %v330 = vpack.c.b16 %v327, %v326
      %v331 = vpack.c.b16 %v329, %v328
      %vm334 = vcmask 261120
      %v336 = vsel %vm334, %v316, 0
      %338 = vmatpush.bf16.msra.mxu0 0
      %339 = vmatpush.bf16.msra.mxu0 0
      %340 = vmatpush.bf16.msra.mxu0 0
      %341 = vmatpush.bf16.msra.mxu0 0
      %342 = vmatpush.bf16.msra.mxu0 0
      %343 = vmatpush.bf16.msra.mxu0 0
      %344 = vmatpush.bf16.msra.mxu0 %v331
      %345 = vmatpush.bf16.msra.mxu0 %v330
      %346 = vmatmul.bf16.gmra.mxu0 %v336
      %v347 = vpop.f32.mrf.mxu0
      %v348 = vadd.f32 0.0, %v347
      %v349 = vpop.f32.mrf.mxu0
      %350 = vdwg.mxu0
      %v351 = vadd.f32 %v317, %v348
      %vm352 = vcmask 785408
      %353 = vst.msk [vmem:[#allocation2] sm:$0xff] %vm352, %v351
      // Predicated region
      $region41: #{distill_backbone_forward.29} parent=35 // pred_check
        %p354 = pneg %p296
      $region42: #{distill_backbone_forward.29} parent=35 // pred_check_branch
        %356 = sbr.rel (%p354) target = $region44
      $region43: #{distill_backbone_forward.29} parent=35 // pred_region
        %v357 = vld [vmem:[#allocation2] sm:$0xff]
        %v358 = vpack.c.bf16 %v357, %v357
        %vm359 = vcmask 781312
        %360 = vst.msk [vmem:[%s294] sm:$0xf] %vm359, %v358
      $region44: #{distill_backbone_forward.29} parent=35 // pred_fallthru
        _
      %p361 = scmp.lt.s32.totalorder %s20, 1
      %s362 = scalar_select %p361, %s20, 1
      %p363 = scmp.lt.s32.totalorder %s21, 0
      %s364 = scalar_select %p363, %s21, 0
      %s365 = sadd.s32 %s364, %s362
      %s366 = smul.addr %s365, 4
      %s367 = scalar_lea.vmem %s4, %s366
      // Predicated region
      $region45: #{distill_backbone_forward.29} parent=35 // pred_check
        %p368 = pneg %p162
      $region46: #{distill_backbone_forward.29} parent=35 // pred_check_branch
        %370 = sbr.rel (%p368) target = $region48
      $region47: #{distill_backbone_forward.29} parent=35 // pred_region
        _
      $region48: #{distill_backbone_forward.29} parent=35 // pred_fallthru
        _
    $region36: #{distill_backbone_forward.29} parent=5 // pred_fallthru
      _
    %p371 = scmp.le.s32.totalorder 2, %s10
    // Predicated region
    $region49: #{distill_backbone_forward.29} parent=5 // pred_check
      %p372 = pneg %p371
    $region50: #{distill_backbone_forward.29} parent=5 // pred_check_branch
      %374 = sbr.rel (%p372) target = $region52
    $region51: #{distill_backbone_forward.29} parent=5 // pred_region
      %s375 = ssub.s32 %s10, 2
      // Predicated region
      $region53: #{distill_backbone_forward.29} parent=51 // pred_check
        %p376 = pneg %p168
      $region54: #{distill_backbone_forward.29} parent=51 // pred_check_branch
        %378 = sbr.rel (%p376) target = $region56
      $region55: #{distill_backbone_forward.29} parent=51 // pred_region
        %p379 = scmp.lt.s32.totalorder %s23, 1
        %s380 = scalar_select %p379, %s23, 1
        %p381 = scmp.lt.s32.totalorder %s24, 0
        %s382 = scalar_select %p381, %s24, 0
        %s383 = sadd.s32 %s382, %s380
        %s384 = smul.addr %s383, 4
        %s385 = scalar_lea.vmem %s4, %s384
      $region56: #{distill_backbone_forward.29} parent=51 // pred_fallthru
        _
    $region52: #{distill_backbone_forward.29} parent=5 // pred_fallthru
      _
  $region6: #{distill_backbone_forward.29} parent=0 // loop_footer
    %s14 = sadd.s32 1, %s10
  $region7: #{distill_backbone_forward.29} parent=0 // loop_footer_branch
    %9 = sbr.rel target = $region3
  $region8: #{distill_backbone_forward.29} parent=0 // loop_exit
    _

// kernel: distill_backbone_forward.33
$region0: #{distill_backbone_forward.33}
  #allocation0 [shape = 'u32[]', space=smem, size = 0x4, offset = 0x4, fixed_abs, tag = 'smem constant byte address 0x4 - core index']
  #allocation1 [shape = 'u32[72,128]{1,0:T(1,128)}', space=vmem, size = 0x9000, scoped, tag = 'internal scratch']
  #allocation2 [shape = 'f32[8,32]{1,0:T(8,128)}', space=vmem, size = 0x1000, scoped, tag = 'scratch operand']
  %s0 = inlined_call_operand.vmem [shape: bf16[16,32], index: 0, kind: input, shape index: {}]
  %s1 = inlined_call_operand.vmem [shape: f32[16,1], index: 1, kind: input, shape index: {}]
  %s2 = inlined_call_operand.vmem [shape: f32[1,32], index: 2, kind: input, shape index: {}]
  %s3 = inlined_call_operand.vmem [shape: bf16[32,32], index: 3, kind: input, shape index: {}]
  %s4 = inlined_call_operand.vmem [shape: bf16[16,32], index: 4, kind: output, shape index: {}]
  %s5 = sld [smem:[#allocation0]]
  $region57: #{distill_backbone_forward.33} parent=0
    _
  %s7 = ssub.s32 1, %s5
  %s8 = scalar_select 0, %s7, %s5
  loop: start=0, step=1, limit=4
  $region2: #{distill_backbone_forward.33} parent=0 // loop_pre_header
    _
  $region3: #{distill_backbone_forward.33} parent=0 // loop_header
    %s10 = sphi 0, %s14
    %p11 = scmp.ge.s32.totalorder %s10, 4
    %s17 = sphi 0, %s36
    %s18 = sphi 0, %s32
    %s19 = sphi 0, %s28
    %s20 = sphi 0, %s17
    %s21 = sphi 0, %s18
    %s22 = sphi 0, %s19
    %s23 = sphi 0, %s20
    %s24 = sphi 0, %s21
    %s25 = sphi 0, %s22
    %s41 = sphi 0, %s43
    %s44 = sphi 0, %s41
    %s45 = sphi 0, %s44
    %s61 = sphi 0, %s45
    %s67 = sphi 0, %s69
    %s70 = sphi 0, %s67
    %s71 = sphi 0, %s70
    %s87 = sphi 0, %s71
    %s93 = sphi 0, %s95
    %s96 = sphi 0, %s93
    %s97 = sphi 0, %s96
    %s113 = sphi 0, %s97
    %s121 = sphi 0, %s123
    %s124 = sphi 0, %s121
    %s125 = sphi 0, %s124
    %s141 = sphi 0, %s125
    %s149 = sphi 0, %s151
    %s152 = sphi 0, %s149
    %s153 = sphi 0, %s152
    %s169 = sphi 0, %s153
  $region4: #{distill_backbone_forward.33} parent=0 // loop_header_branch
    %13 = sbr.rel (%p11) target = $region8
  $region5: #{distill_backbone_forward.33} parent=0 // loop_body
    %s15 = ssub.s32 %s10, 1
    %s16 = ssub.s32 %s10, 2
    %s26 = sadd.s32 1, %s19
    %p27 = scmp.ge.s32.totalorder %s26, 1
    %s28 = scalar_select %p27, 0, %s26
    %s29 = sadd.s32 1, %s18
    %s30 = scalar_select %p27, %s29, %s18
    %p31 = scmp.ge.s32.totalorder %s30, 1
    %s32 = scalar_select %p31, 0, %s30
    %s33 = sadd.s32 1, %s17
    %s34 = scalar_select %p31, %s33, %s17
    %p35 = scmp.ge.s32.totalorder %s34, 2
    %s36 = scalar_select %p35, 0, %s34
    %s37 = ssub.s32 %s17, %s36
    %s38 = ssub.s32 %s19, %s28
    %s39 = sor.u32 %s37, %s38
    %p40 = scmp.eq.s32.totalorder %s39, 0
    %s42 = sadd.s32 %s41, 1
    %s43 = scalar_select %p40, %s41, %s42
    %p46 = pneg %p40
    %p47 = scmp.eq.s32.totalorder %s10, 1
    %p48 = por %p46, %p47
    %p49 = scmp.ne.s32.totalorder %s41, %s44
    %p50 = scmp.eq.s32.totalorder %s10, 0
    %p51 = por %p49, %p50
    %p52 = scmp.ne.s32.totalorder %s41, %s44
    %p53 = scmp.eq.s32.totalorder %s15, 1
    %p54 = por %p52, %p53
    %p55 = scmp.ne.s32.totalorder %s44, %s45
    %p56 = scmp.eq.s32.totalorder %s15, 0
    %p57 = por %p55, %p56
    %p58 = scmp.ne.s32.totalorder %s44, %s45
    %p59 = scmp.eq.s32.totalorder %s16, 1
    %p60 = por %p58, %p59
    %p62 = scmp.ne.s32.totalorder %s45, %s61
    %p63 = scmp.eq.s32.totalorder %s16, 0
    %p64 = por %p62, %p63
    %s65 = ssub.s32 %s17, %s36
    %p66 = scmp.eq.s32.totalorder %s65, 0
    %s68 = sadd.s32 %s67, 1
    %s69 = scalar_select %p66, %s67, %s68
    %p72 = pneg %p66
    %p73 = scmp.eq.s32.totalorder %s10, 1
    %p74 = por %p72, %p73
    %p75 = scmp.ne.s32.totalorder %s67, %s70
    %p76 = scmp.eq.s32.totalorder %s10, 0
    %p77 = por %p75, %p76
    %p78 = scmp.ne.s32.totalorder %s67, %s70
    %p79 = scmp.eq.s32.totalorder %s15, 1
    %p80 = por %p78, %p79
    %p81 = scmp.ne.s32.totalorder %s70, %s71
    %p82 = scmp.eq.s32.totalorder %s15, 0
    %p83 = por %p81, %p82
    %p84 = scmp.ne.s32.totalorder %s70, %s71
    %p85 = scmp.eq.s32.totalorder %s16, 1
    %p86 = por %p84, %p85
    %p88 = scmp.ne.s32.totalorder %s71, %s87
    %p89 = scmp.eq.s32.totalorder %s16, 0
    %p90 = por %p88, %p89
    %s91 = ssub.s32 %s19, %s28
    %p92 = scmp.eq.s32.totalorder %s91, 0
    %s94 = sadd.s32 %s93, 1
    %s95 = scalar_select %p92, %s93, %s94
    %p98 = pneg %p92
    %p99 = scmp.eq.s32.totalorder %s10, 1
    %p100 = por %p98, %p99
    %p101 = scmp.ne.s32.totalorder %s93, %s96
    %p102 = scmp.eq.s32.totalorder %s10, 0
    %p103 = por %p101, %p102
    %p104 = scmp.ne.s32.totalorder %s93, %s96
    %p105 = scmp.eq.s32.totalorder %s15, 1
    %p106 = por %p104, %p105
    %p107 = scmp.ne.s32.totalorder %s96, %s97
    %p108 = scmp.eq.s32.totalorder %s15, 0
    %p109 = por %p107, %p108
    %p110 = scmp.ne.s32.totalorder %s96, %s97
    %p111 = scmp.eq.s32.totalorder %s16, 1
    %p112 = por %p110, %p111
    %p114 = scmp.ne.s32.totalorder %s97, %s113
    %p115 = scmp.eq.s32.totalorder %s16, 0
    %p116 = por %p114, %p115
    %s117 = ssub.s32 %s19, %s28
    %s118 = ssub.s32 %s18, %s32
    %s119 = sor.u32 %s117, %s118
    %p120 = scmp.eq.s32.totalorder %s119, 0
    %s122 = sadd.s32 %s121, 1
    %s123 = scalar_select %p120, %s121, %s122
    %p126 = pneg %p120
    %p127 = scmp.eq.s32.totalorder %s10, 1
    %p128 = por %p126, %p127
    %p129 = scmp.ne.s32.totalorder %s121, %s124
    %p130 = scmp.eq.s32.totalorder %s10, 0
    %p131 = por %p129, %p130
    %p132 = scmp.ne.s32.totalorder %s121, %s124
    %p133 = scmp.eq.s32.totalorder %s15, 1
    %p134 = por %p132, %p133
    %p135 = scmp.ne.s32.totalorder %s124, %s125
    %p136 = scmp.eq.s32.totalorder %s15, 0
    %p137 = por %p135, %p136
    %p138 = scmp.ne.s32.totalorder %s124, %s125
    %p139 = scmp.eq.s32.totalorder %s16, 1
    %p140 = por %p138, %p139
    %p142 = scmp.ne.s32.totalorder %s125, %s141
    %p143 = scmp.eq.s32.totalorder %s16, 0
    %p144 = por %p142, %p143
    %s145 = ssub.s32 %s17, %s36
    %s146 = ssub.s32 %s18, %s32
    %s147 = sor.u32 %s145, %s146
    %p148 = scmp.eq.s32.totalorder %s147, 0
    %s150 = sadd.s32 %s149, 1
    %s151 = scalar_select %p148, %s149, %s150
    %p154 = pneg %p148
    %p155 = scmp.eq.s32.totalorder %s10, 1
    %p156 = por %p154, %p155
    %p157 = scmp.ne.s32.totalorder %s149, %s152
    %p158 = scmp.eq.s32.totalorder %s10, 0
    %p159 = por %p157, %p158
    %p160 = scmp.ne.s32.totalorder %s149, %s152
    %p161 = scmp.eq.s32.totalorder %s15, 1
    %p162 = por %p160, %p161
    %p163 = scmp.ne.s32.totalorder %s152, %s153
    %p164 = scmp.eq.s32.totalorder %s15, 0
    %p165 = por %p163, %p164
    %p166 = scmp.ne.s32.totalorder %s152, %s153
    %p167 = scmp.eq.s32.totalorder %s16, 1
    %p168 = por %p166, %p167
    %p170 = scmp.ne.s32.totalorder %s153, %s169
    %p171 = scmp.eq.s32.totalorder %s16, 0
    %p172 = por %p170, %p171
    %p173 = scmp.le.s32.totalorder 1, %s10
    %p174 = scmp.lt.s32.totalorder %s10, 3
    %p175 = pnand %p173, %p174
    %p176 = pneg %p175
    // Predicated region
    $region9: #{distill_backbone_forward.33} parent=5 // pred_check
      _
    $region10: #{distill_backbone_forward.33} parent=5 // pred_check_branch
      %178 = sbr.rel (%p175) target = $region12
    $region11: #{distill_backbone_forward.33} parent=5 // pred_region
      %s179 = ssub.s32 %s10, 1
      // Predicated region
      $region13: #{distill_backbone_forward.33} parent=11 // pred_check
        %p180 = pneg %p109
      $region14: #{distill_backbone_forward.33} parent=11 // pred_check_branch
        %182 = sbr.rel (%p180) target = $region16
      $region15: #{distill_backbone_forward.33} parent=11 // pred_region
        %p183 = scmp.lt.s32.totalorder %s22, 0
        %s184 = scalar_select %p183, %s22, 0
        %s185 = scalar_lea.vmem %s2, %s184
      $region16: #{distill_backbone_forward.33} parent=11 // pred_fallthru
        _
      // Predicated region
      $region17: #{distill_backbone_forward.33} parent=11 // pred_check
        %p186 = pneg %p137
      $region18: #{distill_backbone_forward.33} parent=11 // pred_check_branch
        %188 = sbr.rel (%p186) target = $region20
      $region19: #{distill_backbone_forward.33} parent=11 // pred_region
        %s189 = smul.u32 4, %s22
        %p190 = scmp.lt.s32.totalorder %s189, 3
        %s191 = scalar_select %p190, %s189, 3
        %p192 = scmp.lt.s32.totalorder %s21, 0
        %s193 = scalar_select %p192, %s21, 0
        %s194 = sadd.s32 %s193, %s191
        %s195 = smul.addr %s194, 4
        %s196 = scalar_lea.vmem %s3, %s195
        %s197 = smul.u32 4, %s22
      $region20: #{distill_backbone_forward.33} parent=11 // pred_fallthru
        _
    $region12: #{distill_backbone_forward.33} parent=5 // pred_fallthru
      _
    %p198 = scmp.lt.s32.totalorder %s10, 2
    // Predicated region
    $region21: #{distill_backbone_forward.33} parent=5 // pred_check
      %p199 = pneg %p198
    $region22: #{distill_backbone_forward.33} parent=5 // pred_check_branch
      %201 = sbr.rel (%p199) target = $region24
    $region23: #{distill_backbone_forward.33} parent=5 // pred_region
      // Predicated region
      $region25: #{distill_backbone_forward.33} parent=23 // pred_check
        %p202 = pneg %p51
      $region26: #{distill_backbone_forward.33} parent=23 // pred_check_branch
        %204 = sbr.rel (%p202) target = $region28
      $region27: #{distill_backbone_forward.33} parent=23 // pred_region
        %p205 = scmp.lt.s32.totalorder %s17, 1
        %s206 = scalar_select %p205, %s17, 1
        %p207 = scmp.lt.s32.totalorder %s19, 0
        %s208 = scalar_select %p207, %s19, 0
        %s209 = sadd.s32 %s208, %s206
        %s210 = smul.addr %s209, 4
        %s211 = scalar_lea.vmem %s0, %s210
      $region28: #{distill_backbone_forward.33} parent=23 // pred_fallthru
        _
      // Predicated region
      $region29: #{distill_backbone_forward.33} parent=23 // pred_check
        %p212 = pneg %p77
      $region30: #{distill_backbone_forward.33} parent=23 // pred_check_branch
        %214 = sbr.rel (%p212) target = $region32
      $region31: #{distill_backbone_forward.33} parent=23 // pred_region
        %p215 = scmp.lt.s32.totalorder %s17, 1
        %s216 = scalar_select %p215, %s17, 1
        %s217 = smul.addr %s216, 8
        %s218 = scalar_lea.vmem %s1, %s217
      $region32: #{distill_backbone_forward.33} parent=23 // pred_fallthru
        _
    $region24: #{distill_backbone_forward.33} parent=5 // pred_fallthru
      _
    %p219 = scmp.le.s32.totalorder 1, %s10
    %p220 = scmp.lt.s32.totalorder %s10, 3
    %p221 = pnand %p219, %p220
    %p222 = pneg %p221
    // Predicated region
    $region33: #{distill_backbone_forward.33} parent=5 // pred_check
      _
    $region34: #{distill_backbone_forward.33} parent=5 // pred_check_branch
      %224 = sbr.rel (%p221) target = $region36
    $region35: #{distill_backbone_forward.33} parent=5 // pred_region
      %s225 = ssub.s32 %s10, 1
      %p226 = scmp.lt.s32.totalorder %s20, 1
      %s227 = scalar_select %p226, %s20, 1
      %p228 = scmp.lt.s32.totalorder %s22, 0
      %s229 = scalar_select %p228, %s22, 0
      %s230 = sadd.s32 %s229, %s227
      %s231 = smul.addr %s230, 4
      %s232 = scalar_lea.vmem %s0, %s231
      %p233 = pneg %p57
      %p234 = pneg %p54
      %p235 = scmp.lt.s32.totalorder %s20, 1
      %s236 = scalar_select %p235, %s20, 1
      %s237 = smul.addr %s236, 8
      %s238 = scalar_lea.vmem %s1, %s237
      %p239 = pneg %p83
      %p240 = pneg %p80
      %p241 = scmp.lt.s32.totalorder %s22, 0
      %s242 = scalar_select %p241, %s22, 0
      %s243 = scalar_lea.vmem %s2, %s242
      %p244 = pneg %p109
      %p245 = pneg %p106
      %s246 = smul.u32 4, %s22
      %p247 = scmp.lt.s32.totalorder %s246, 3
      %s248 = scalar_select %p247, %s246, 3
      %p249 = scmp.lt.s32.totalorder %s21, 0
      %s250 = scalar_select %p249, %s21, 0
      %s251 = sadd.s32 %s250, %s248
      %s252 = smul.addr %s251, 4
      %s253 = scalar_lea.vmem %s3, %s252
      %p254 = pneg %p137
      %p255 = pneg %p134
      %p256 = pneg %p165
      %p257 = pneg %p162
      %p258 = scmp.lt.s32.totalorder %s20, 1
      %s259 = scalar_select %p258, %s20, 1
      %p260 = scmp.lt.s32.totalorder %s21, 0
      %s261 = scalar_select %p260, %s21, 0
      %s262 = sadd.s32 %s261, %s259
      %s263 = smul.addr %s262, 4
      %s264 = scalar_lea.vmem %s4, %s263
      %p265 = scmp.lt.s32.totalorder %s20, 1
      %s266 = scalar_select %p265, %s20, 1
      %p267 = scmp.lt.s32.totalorder %s22, 0
      %s268 = scalar_select %p267, %s22, 0
      %s269 = sadd.s32 %s268, %s266
      %s270 = smul.addr %s269, 4
      %s271 = scalar_lea.vmem %s0, %s270
      %p272 = scmp.lt.s32.totalorder %s20, 1
      %s273 = scalar_select %p272, %s20, 1
      %s274 = smul.addr %s273, 8
      %s275 = scalar_lea.vmem %s1, %s274
      %p276 = scmp.lt.s32.totalorder %s22, 0
      %s277 = scalar_select %p276, %s22, 0
      %s278 = scalar_lea.vmem %s2, %s277
      %s279 = smul.u32 4, %s22
      %p280 = scmp.lt.s32.totalorder %s279, 3
      %s281 = scalar_select %p280, %s279, 3
      %p282 = scmp.lt.s32.totalorder %s21, 0
      %s283 = scalar_select %p282, %s21, 0
      %s284 = sadd.s32 %s283, %s281
      %s285 = smul.addr %s284, 4
      %s286 = scalar_lea.vmem %s3, %s285
      %s287 = smul.u32 4, %s22
      %p288 = scmp.lt.s32.totalorder %s20, 1
      %s289 = scalar_select %p288, %s20, 1
      %p290 = scmp.lt.s32.totalorder %s21, 0
      %s291 = scalar_select %p290, %s21, 0
      %s292 = sadd.s32 %s291, %s289
      %s293 = smul.addr %s292, 4
      %s294 = scalar_lea.vmem %s4, %s293
      %p296 = scmp.eq.s32.totalorder %s22, 0
      // Predicated region
      $region37: #{distill_backbone_forward.33} parent=35 // pred_check
        %p297 = pneg %p296
      $region38: #{distill_backbone_forward.33} parent=35 // pred_check_branch
        %299 = sbr.rel (%p297) target = $region40
      $region39: #{distill_backbone_forward.33} parent=35 // pred_region
        %vm300 = vcmask 261120
        %301 = vst.msk [vmem:[#allocation2] sm:$0xff] %vm300, 0.0
      $region40: #{distill_backbone_forward.33} parent=35 // pred_fallthru
        _
      %v302 = vld [vmem:[%s271] sm:$0xf]
      %v303 = vunpack.c.l.bf16 %v302
      %v304 = vld [vmem:[%s275] sm:$0xff]
      %306 = vset.pattern.permute.xlu0 0
      %307 = vperm.xlu0 %306, %v304
      %v308 = vpop.permute.xlu0 %307
      %v310 = vmul.f32 %v303, %v308
      %v311 = vld [vmem:[%s278] sm:$0x1]
      %v313 = vperm.slane %v311, 0
      %v315 = vmul.f32 %v310, %v313
      %v316 = vpack.c.bf16 %v315, %v315
      %v317 = vld [vmem:[#allocation2] sm:$0xff]
      %v318 = vld [vmem:[%s286] sm:$0xf]
      %v319 = vld [vmem:[%s286 + $0x4] sm:$0xf]
      %v320 = vld [vmem:[%s286 + $0x8] sm:$0xf]
      %v321 = vld [vmem:[%s286 + $0xc] sm:$0xf]
      %v326 = vunpack.c.l.b16 %v318
      %v327 = vunpack.c.l.b16 %v319
      %v328 = vunpack.c.l.b16 %v320
      %v329 = vunpack.c.l.b16 %v321
      %v330 = vpack.c.b16 %v327, %v326
      %v331 = vpack.c.b16 %v329, %v328
      %vm334 = vcmask 261120
      %v336 = vsel %vm334, %v316, 0
      %338 = vmatpush.bf16.msra.mxu0 0
      %339 = vmatpush.bf16.msra.mxu0 0
      %340 = vmatpush.bf16.msra.mxu0 0
      %341 = vmatpush.bf16.msra.mxu0 0
      %342 = vmatpush.bf16.msra.mxu0 0
      %343 = vmatpush.bf16.msra.mxu0 0
      %344 = vmatpush.bf16.msra.mxu0 %v331
      %345 = vmatpush.bf16.msra.mxu0 %v330
      %346 = vmatmul.bf16.gmra.mxu0 %v336
      %v347 = vpop.f32.mrf.mxu0
      %v348 = vadd.f32 0.0, %v347
      %v349 = vpop.f32.mrf.mxu0
      %350 = vdwg.mxu0
      %v351 = vadd.f32 %v317, %v348
      %352 = vst.msk [vmem:[#allocation2] sm:$0xff] %vm334, %v351
      // Predicated region
      $region41: #{distill_backbone_forward.33} parent=35 // pred_check
        %p353 = pneg %p296
      $region42: #{distill_backbone_forward.33} parent=35 // pred_check_branch
        %355 = sbr.rel (%p353) target = $region44
      $region43: #{distill_backbone_forward.33} parent=35 // pred_region
        %v356 = vld [vmem:[#allocation2] sm:$0xff]
        %v357 = vpack.c.bf16 %v356, %v356
        %vm358 = vcmask 257024
        %359 = vst.msk [vmem:[%s294] sm:$0xf] %vm358, %v357
      $region44: #{distill_backbone_forward.33} parent=35 // pred_fallthru
        _
      %p360 = scmp.lt.s32.totalorder %s20, 1
      %s361 = scalar_select %p360, %s20, 1
      %p362 = scmp.lt.s32.totalorder %s21, 0
      %s363 = scalar_select %p362, %s21, 0
      %s364 = sadd.s32 %s363, %s361
      %s365 = smul.addr %s364, 4
      %s366 = scalar_lea.vmem %s4, %s365
      // Predicated region
      $region45: #{distill_backbone_forward.33} parent=35 // pred_check
        %p367 = pneg %p162
      $region46: #{distill_backbone_forward.33} parent=35 // pred_check_branch
        %369 = sbr.rel (%p367) target = $region48
      $region47: #{distill_backbone_forward.33} parent=35 // pred_region
        _
      $region48: #{distill_backbone_forward.33} parent=35 // pred_fallthru
        _
    $region36: #{distill_backbone_forward.33} parent=5 // pred_fallthru
      _
    %p370 = scmp.le.s32.totalorder 2, %s10
    // Predicated region
    $region49: #{distill_backbone_forward.33} parent=5 // pred_check
      %p371 = pneg %p370
    $region50: #{distill_backbone_forward.33} parent=5 // pred_check_branch
      %373 = sbr.rel (%p371) target = $region52
    $region51: #{distill_backbone_forward.33} parent=5 // pred_region
      %s374 = ssub.s32 %s10, 2
      // Predicated region
      $region53: #{distill_backbone_forward.33} parent=51 // pred_check
        %p375 = pneg %p168
      $region54: #{distill_backbone_forward.33} parent=51 // pred_check_branch
        %377 = sbr.rel (%p375) target = $region56
      $region55: #{distill_backbone_forward.33} parent=51 // pred_region
        %p378 = scmp.lt.s32.totalorder %s23, 1
        %s379 = scalar_select %p378, %s23, 1
        %p380 = scmp.lt.s32.totalorder %s24, 0
        %s381 = scalar_select %p380, %s24, 0
        %s382 = sadd.s32 %s381, %s379
        %s383 = smul.addr %s382, 4
        %s384 = scalar_lea.vmem %s4, %s383
      $region56: #{distill_backbone_forward.33} parent=51 // pred_fallthru
        _
    $region52: #{distill_backbone_forward.33} parent=5 // pred_fallthru
      _
  $region6: #{distill_backbone_forward.33} parent=0 // loop_footer
    %s14 = sadd.s32 1, %s10
  $region7: #{distill_backbone_forward.33} parent=0 // loop_footer_branch
    %9 = sbr.rel target = $region3
  $region8: #{distill_backbone_forward.33} parent=0 // loop_exit
    _

// kernel: distill_backbone_forward.23
$region0: #{distill_backbone_forward.23}
  #allocation0 [shape = 'u32[]', space=smem, size = 0x4, offset = 0x4, fixed_abs, tag = 'smem constant byte address 0x4 - core index']
  #allocation1 [shape = 'u32[72,128]{1,0:T(1,128)}', space=vmem, size = 0x9000, scoped, tag = 'internal scratch']
  %s0 = inlined_call_operand.vmem [shape: bf16[16,96], index: 0, kind: input, shape index: {}]
  %s1 = inlined_call_operand.vmem [shape: f32[2,1,8], index: 1, kind: input, shape index: {}]
  %s2 = inlined_call_operand.vmem [shape: bf16[16,32], index: 2, kind: output, shape index: {}]
  %s3 = sld [smem:[#allocation0]]
  $region41: #{distill_backbone_forward.23} parent=0
    _
  %s5 = ssub.s32 1, %s3
  %s6 = scalar_select 0, %s5, %s3
  loop: start=0, step=1, limit=4
  $region2: #{distill_backbone_forward.23} parent=0 // loop_pre_header
    _
  $region3: #{distill_backbone_forward.23} parent=0 // loop_header
    %s8 = sphi 0, %s12
    %p9 = scmp.ge.s32.totalorder %s8, 4
    %s18 = sphi 0, %s20
    %s21 = sphi 0, %s18
    %s22 = sphi 0, %s21
    %s38 = sphi 0, %s22
    %s44 = sphi 0, %s46
    %s47 = sphi 0, %s44
    %s48 = sphi 0, %s47
    %s64 = sphi 0, %s48
    %s70 = sphi 0, %s72
    %s73 = sphi 0, %s70
    %s74 = sphi 0, %s73
    %s90 = sphi 0, %s74
  $region4: #{distill_backbone_forward.23} parent=0 // loop_header_branch
    %11 = sbr.rel (%p9) target = $region8
  $region5: #{distill_backbone_forward.23} parent=0 // loop_body
    %s13 = ssub.s32 %s8, 1
    %s14 = ssub.s32 %s8, 2
    %s15 = sadd.s32 %s8, 1
    %s16 = ssub.s32 %s8, %s15
    %p17 = scmp.eq.s32.totalorder %s16, 0
    %s19 = sadd.s32 %s18, 1
    %s20 = scalar_select %p17, %s18, %s19
    %p23 = pneg %p17
    %p24 = scmp.eq.s32.totalorder %s8, 1
    %p25 = por %p23, %p24
    %p26 = scmp.ne.s32.totalorder %s18, %s21
    %p27 = scmp.eq.s32.totalorder %s8, 0
    %p28 = por %p26, %p27
    %p29 = scmp.ne.s32.totalorder %s18, %s21
    %p30 = scmp.eq.s32.totalorder %s13, 1
    %p31 = por %p29, %p30
    %p32 = scmp.ne.s32.totalorder %s21, %s22
    %p33 = scmp.eq.s32.totalorder %s13, 0
    %p34 = por %p32, %p33
    %p35 = scmp.ne.s32.totalorder %s21, %s22
    %p36 = scmp.eq.s32.totalorder %s14, 1
    %p37 = por %p35, %p36
    %p39 = scmp.ne.s32.totalorder %s22, %s38
    %p40 = scmp.eq.s32.totalorder %s14, 0
    %p41 = por %p39, %p40
    %s42 = ssub.s32 %s8, %s15
    %p43 = scmp.eq.s32.totalorder %s42, 0
    %s45 = sadd.s32 %s44, 1
    %s46 = scalar_select %p43, %s44, %s45
    %p49 = pneg %p43
    %p50 = scmp.eq.s32.totalorder %s8, 1
    %p51 = por %p49, %p50
    %p52 = scmp.ne.s32.totalorder %s44, %s47
    %p53 = scmp.eq.s32.totalorder %s8, 0
    %p54 = por %p52, %p53
    %p55 = scmp.ne.s32.totalorder %s44, %s47
    %p56 = scmp.eq.s32.totalorder %s13, 1
    %p57 = por %p55, %p56
    %p58 = scmp.ne.s32.totalorder %s47, %s48
    %p59 = scmp.eq.s32.totalorder %s13, 0
    %p60 = por %p58, %p59
    %p61 = scmp.ne.s32.totalorder %s47, %s48
    %p62 = scmp.eq.s32.totalorder %s14, 1
    %p63 = por %p61, %p62
    %p65 = scmp.ne.s32.totalorder %s48, %s64
    %p66 = scmp.eq.s32.totalorder %s14, 0
    %p67 = por %p65, %p66
    %s68 = ssub.s32 %s8, %s15
    %p69 = scmp.eq.s32.totalorder %s68, 0
    %s71 = sadd.s32 %s70, 1
    %s72 = scalar_select %p69, %s70, %s71
    %p75 = pneg %p69
    %p76 = scmp.eq.s32.totalorder %s8, 1
    %p77 = por %p75, %p76
    %p78 = scmp.ne.s32.totalorder %s70, %s73
    %p79 = scmp.eq.s32.totalorder %s8, 0
    %p80 = por %p78, %p79
    %p81 = scmp.ne.s32.totalorder %s70, %s73
    %p82 = scmp.eq.s32.totalorder %s13, 1
    %p83 = por %p81, %p82
    %p84 = scmp.ne.s32.totalorder %s73, %s74
    %p85 = scmp.eq.s32.totalorder %s13, 0
    %p86 = por %p84, %p85
    %p87 = scmp.ne.s32.totalorder %s73, %s74
    %p88 = scmp.eq.s32.totalorder %s14, 1
    %p89 = por %p87, %p88
    %p91 = scmp.ne.s32.totalorder %s74, %s90
    %p92 = scmp.eq.s32.totalorder %s14, 0
    %p93 = por %p91, %p92
    %p94 = scmp.le.s32.totalorder 1, %s8
    %p95 = scmp.lt.s32.totalorder %s8, 3
    %p96 = pnand %p94, %p95
    %p97 = pneg %p96
    // Predicated region
    $region9: #{distill_backbone_forward.23} parent=5 // pred_check
      _
    $region10: #{distill_backbone_forward.23} parent=5 // pred_check_branch
      %99 = sbr.rel (%p96) target = $region12
    $region11: #{distill_backbone_forward.23} parent=5 // pred_region
      %s100 = ssub.s32 %s8, 1
    $region12: #{distill_backbone_forward.23} parent=5 // pred_fallthru
      _
    %p101 = scmp.lt.s32.totalorder %s8, 2
    // Predicated region
    $region13: #{distill_backbone_forward.23} parent=5 // pred_check
      %p102 = pneg %p101
    $region14: #{distill_backbone_forward.23} parent=5 // pred_check_branch
      %104 = sbr.rel (%p102) target = $region16
    $region15: #{distill_backbone_forward.23} parent=5 // pred_region
      // Predicated region
      $region17: #{distill_backbone_forward.23} parent=15 // pred_check
        %p105 = pneg %p28
      $region18: #{distill_backbone_forward.23} parent=15 // pred_check_branch
        %107 = sbr.rel (%p105) target = $region20
      $region19: #{distill_backbone_forward.23} parent=15 // pred_region
        %p108 = scmp.lt.s32.totalorder %s8, 1
        %s109 = scalar_select %p108, %s8, 1
        %s110 = smul.addr %s109, 4
        %s111 = scalar_lea.vmem %s0, %s110
      $region20: #{distill_backbone_forward.23} parent=15 // pred_fallthru
        _
      // Predicated region
      $region21: #{distill_backbone_forward.23} parent=15 // pred_check
        %p112 = pneg %p54
      $region22: #{distill_backbone_forward.23} parent=15 // pred_check_branch
        %114 = sbr.rel (%p112) target = $region24
      $region23: #{distill_backbone_forward.23} parent=15 // pred_region
        %p115 = scmp.lt.s32.totalorder %s8, 1
        %s116 = scalar_select %p115, %s8, 1
        %s117 = scalar_lea.vmem %s1, %s116
      $region24: #{distill_backbone_forward.23} parent=15 // pred_fallthru
        _
    $region16: #{distill_backbone_forward.23} parent=5 // pred_fallthru
      _
    %p118 = scmp.le.s32.totalorder 1, %s8
    %p119 = scmp.lt.s32.totalorder %s8, 3
    %p120 = pnand %p118, %p119
    %p121 = pneg %p120
    // Predicated region
    $region25: #{distill_backbone_forward.23} parent=5 // pred_check
      _
    $region26: #{distill_backbone_forward.23} parent=5 // pred_check_branch
      %123 = sbr.rel (%p120) target = $region28
    $region27: #{distill_backbone_forward.23} parent=5 // pred_region
      %s124 = ssub.s32 %s8, 1
      %p125 = scmp.lt.s32.totalorder %s13, 1
      %s126 = scalar_select %p125, %s13, 1
      %s127 = smul.addr %s126, 4
      %s128 = scalar_lea.vmem %s0, %s127
      %p129 = pneg %p34
      %p130 = pneg %p31
      %p131 = scmp.lt.s32.totalorder %s13, 1
      %s132 = scalar_select %p131, %s13, 1
      %s133 = scalar_lea.vmem %s1, %s132
      %p134 = pneg %p60
      %p135 = pneg %p57
      %p136 = pneg %p86
      %p137 = pneg %p83
      %p138 = scmp.lt.s32.totalorder %s13, 1
      %s139 = scalar_select %p138, %s13, 1
      %s140 = smul.addr %s139, 4
      %s141 = scalar_lea.vmem %s2, %s140
      %p142 = scmp.lt.s32.totalorder %s13, 1
      %s143 = scalar_select %p142, %s13, 1
      %s144 = smul.addr %s143, 4
      %s145 = scalar_lea.vmem %s0, %s144
      %p146 = scmp.lt.s32.totalorder %s13, 1
      %s147 = scalar_select %p146, %s13, 1
      %s148 = scalar_lea.vmem %s1, %s147
      %p149 = scmp.lt.s32.totalorder %s13, 1
      %s150 = scalar_select %p149, %s13, 1
      %s151 = smul.addr %s150, 4
      %s152 = scalar_lea.vmem %s2, %s151
      %v154 = vld [vmem:[%s145] sm:$0xf]
      %v155 = vld [vmem:[%s148] sm:$0x1]
      %v157 = vperm.slane %v155, 0
      %v160 = vunpack.c.l.b16 %v154
      %v161 = vpack.c.b16 %v160, %v160
      %162 = vrot.lane.b32.xlu0 %v161, 96
      %v163 = vpop.permute.xlu0 %162
      %vm164 = vcmask 64512
      %v166 = vsel %vm164, %v154, 0
      %v169 = vsel %vm164, %v163, 0
      %171 = vmatpush.bf16.xpose.msra.mxu0 0
      %172 = vmatpush.bf16.xpose.msra.mxu0 0
      %173 = vmatpush.bf16.xpose.msra.mxu0 0
      %174 = vmatpush.bf16.xpose.msra.mxu0 0
      %175 = vmatpush.bf16.xpose.msra.mxu0 0
      %176 = vmatpush.bf16.xpose.msra.mxu0 0
      %177 = vmatpush.bf16.xpose.msra.mxu0 0
      %178 = vmatpush.bf16.xpose.msra.mxu0 %v169
      %179 = vmatmul.bf16.gmra.mxu0 %v166
      %v180 = vpop.f32.mrf.mxu0
      %v181 = vadd.f32 %v157, %v180
      %v182 = vpop.f32.mrf.mxu0
      %183 = vdwg.mxu0
      %v184 = vsel %vm164, %v181, -inf
      %185 = vmax.xlane.f32.xlu0 %v184
      %v186 = vpop.xlane.xlu0 %185
      %v187 = vsub.f32 %v181, %v186
      %v188 = vmul.f32 %v187, 1.442695
      %v189 = vpow.pop %v188
      %v190 = vsel %vm164, %v189, 0.0
      %191 = vadd.xlane.f32.xlu0 %v190
      %v192 = vpop.xlane.xlu0 %191
      %v193 = vrcp.pop %v192
      %v194 = vmul.f32 %v189, %v193
      %v195 = vpack.c.bf16 %v194, %v194
      %196 = vrot.lane.b32.xlu0 %v161, 64
      %v197 = vpop.permute.xlu0 %196
      %v199 = vsel %vm164, %v195, 0
      %vm201 = vcmask 1043456
      %v203 = vsel %vm201, %v197, 0
      %205 = vmatpush.bf16.msra.mxu0 0
      %206 = vmatpush.bf16.msra.mxu0 0
      %207 = vmatpush.bf16.msra.mxu0 0
      %208 = vmatpush.bf16.msra.mxu0 0
      %209 = vmatpush.bf16.msra.mxu0 0
      %210 = vmatpush.bf16.msra.mxu0 0
      %211 = vmatpush.bf16.msra.mxu0 0
      %212 = vmatpush.bf16.msra.mxu0 %v203
      %213 = vmatmul.bf16.gmra.mxu0 %v199
      %v214 = vpop.f32.mrf.mxu0
      %v215 = vadd.f32 0.0, %v214
      %v216 = vpop.f32.mrf.mxu0
      %217 = vdwg.mxu0
      %218 = vrot.lane.b32.xlu0 %v161, 120
      %v219 = vpop.permute.xlu0 %218
      %220 = vrot.lane.b32.xlu0 %v161, 88
      %v221 = vpop.permute.xlu0 %220
      %v223 = vsel %vm164, %v219, 0
      %v226 = vsel %vm164, %v221, 0
      %228 = vmatpush.bf16.xpose.msra.mxu0 0
      %229 = vmatpush.bf16.xpose.msra.mxu0 0
      %230 = vmatpush.bf16.xpose.msra.mxu0 0
      %231 = vmatpush.bf16.xpose.msra.mxu0 0
      %232 = vmatpush.bf16.xpose.msra.mxu0 0
      %233 = vmatpush.bf16.xpose.msra.mxu0 0
      %234 = vmatpush.bf16.xpose.msra.mxu0 0
      %235 = vmatpush.bf16.xpose.msra.mxu0 %v226
      %236 = vmatmul.bf16.gmra.mxu0 %v223
      %v237 = vpop.f32.mrf.mxu0
      %v238 = vadd.f32 %v157, %v237
      %v239 = vpop.f32.mrf.mxu0
      %240 = vdwg.mxu0
      %v241 = vsel %vm164, %v238, -inf
      %242 = vmax.xlane.f32.xlu0 %v241
      %v243 = vpop.xlane.xlu0 %242
      %v244 = vsub.f32 %v238, %v243
      %v245 = vmul.f32 %v244, 1.442695
      %v246 = vpow.pop %v245
      %v247 = vsel %vm164, %v246, 0.0
      %248 = vadd.xlane.f32.xlu0 %v247
      %v249 = vpop.xlane.xlu0 %248
      %v250 = vrcp.pop %v249
      %v251 = vmul.f32 %v246, %v250
      %v252 = vpack.c.bf16 %v251, %v251
      %253 = vrot.lane.b32.xlu0 %v161, 56
      %v254 = vpop.permute.xlu0 %253
      %v256 = vsel %vm164, %v252, 0
      %v259 = vsel %vm201, %v254, 0
      %261 = vmatpush.bf16.msra.mxu0 0
      %262 = vmatpush.bf16.msra.mxu0 0
      %263 = vmatpush.bf16.msra.mxu0 0
      %264 = vmatpush.bf16.msra.mxu0 0
      %265 = vmatpush.bf16.msra.mxu0 0
      %266 = vmatpush.bf16.msra.mxu0 0
      %267 = vmatpush.bf16.msra.mxu0 0
      %268 = vmatpush.bf16.msra.mxu0 %v259
      %269 = vmatmul.bf16.gmra.mxu0 %v256
      %v270 = vpop.f32.mrf.mxu0
      %v271 = vadd.f32 0.0, %v270
      %v272 = vpop.f32.mrf.mxu0
      %273 = vdwg.mxu0
      %274 = vrot.lane.b32.xlu0 %v161, 112
      %v275 = vpop.permute.xlu0 %274
      %276 = vrot.lane.b32.xlu0 %v161, 80
      %v277 = vpop.permute.xlu0 %276
      %v279 = vsel %vm164, %v275, 0
      %v282 = vsel %vm164, %v277, 0
      %284 = vmatpush.bf16.xpose.msra.mxu0 0
      %285 = vmatpush.bf16.xpose.msra.mxu0 0
      %286 = vmatpush.bf16.xpose.msra.mxu0 0
      %287 = vmatpush.bf16.xpose.msra.mxu0 0
      %288 = vmatpush.bf16.xpose.msra.mxu0 0
      %289 = vmatpush.bf16.xpose.msra.mxu0 0
      %290 = vmatpush.bf16.xpose.msra.mxu0 0
      %291 = vmatpush.bf16.xpose.msra.mxu0 %v282
      %292 = vmatmul.bf16.gmra.mxu0 %v279
      %v293 = vpop.f32.mrf.mxu0
      %v294 = vadd.f32 %v157, %v293
      %v295 = vpop.f32.mrf.mxu0
      %296 = vdwg.mxu0
      %v297 = vsel %vm164, %v294, -inf
      %298 = vmax.xlane.f32.xlu0 %v297
      %v299 = vpop.xlane.xlu0 %298
      %v300 = vsub.f32 %v294, %v299
      %v301 = vmul.f32 %v300, 1.442695
      %v302 = vpow.pop %v301
      %v303 = vsel %vm164, %v302, 0.0
      %304 = vadd.xlane.f32.xlu0 %v303
      %v305 = vpop.xlane.xlu0 %304
      %v306 = vrcp.pop %v305
      %v307 = vmul.f32 %v302, %v306
      %v308 = vpack.c.bf16 %v307, %v307
      %309 = vrot.lane.b32.xlu0 %v161, 48
      %v310 = vpop.permute.xlu0 %309
      %v312 = vsel %vm164, %v308, 0
      %v315 = vsel %vm201, %v310, 0
      %317 = vmatpush.bf16.msra.mxu0 0
      %318 = vmatpush.bf16.msra.mxu0 0
      %319 = vmatpush.bf16.msra.mxu0 0
      %320 = vmatpush.bf16.msra.mxu0 0
      %321 = vmatpush.bf16.msra.mxu0 0
      %322 = vmatpush.bf16.msra.mxu0 0
      %323 = vmatpush.bf16.msra.mxu0 0
      %324 = vmatpush.bf16.msra.mxu0 %v315
      %325 = vmatmul.bf16.gmra.mxu0 %v312
      %v326 = vpop.f32.mrf.mxu0
      %v327 = vadd.f32 0.0, %v326
      %v328 = vpop.f32.mrf.mxu0
      %329 = vdwg.mxu0
      %330 = vrot.lane.b32.xlu0 %v161, 104
      %v331 = vpop.permute.xlu0 %330
      %332 = vrot.lane.b32.xlu0 %v161, 72
      %v333 = vpop.permute.xlu0 %332
      %v335 = vsel %vm164, %v331, 0
      %v338 = vsel %vm164, %v333, 0
      %340 = vmatpush.bf16.xpose.msra.mxu0 0
      %341 = vmatpush.bf16.xpose.msra.mxu0 0
      %342 = vmatpush.bf16.xpose.msra.mxu0 0
      %343 = vmatpush.bf16.xpose.msra.mxu0 0
      %344 = vmatpush.bf16.xpose.msra.mxu0 0
      %345 = vmatpush.bf16.xpose.msra.mxu0 0
      %346 = vmatpush.bf16.xpose.msra.mxu0 0
      %347 = vmatpush.bf16.xpose.msra.mxu0 %v338
      %348 = vmatmul.bf16.gmra.mxu0 %v335
      %v349 = vpop.f32.mrf.mxu0
      %v350 = vadd.f32 %v157, %v349
      %v351 = vpop.f32.mrf.mxu0
      %352 = vdwg.mxu0
      %v353 = vsel %vm164, %v350, -inf
      %354 = vmax.xlane.f32.xlu0 %v353
      %v355 = vpop.xlane.xlu0 %354
      %v356 = vsub.f32 %v350, %v355
      %v357 = vmul.f32 %v356, 1.442695
      %v358 = vpow.pop %v357
      %v359 = vsel %vm164, %v358, 0.0
      %360 = vadd.xlane.f32.xlu0 %v359
      %v361 = vpop.xlane.xlu0 %360
      %v362 = vrcp.pop %v361
      %v363 = vmul.f32 %v358, %v362
      %v364 = vpack.c.bf16 %v363, %v363
      %365 = vrot.lane.b32.xlu0 %v161, 40
      %v366 = vpop.permute.xlu0 %365
      %v368 = vsel %vm164, %v364, 0
      %v371 = vsel %vm201, %v366, 0
      %373 = vmatpush.bf16.msra.mxu0 0
      %374 = vmatpush.bf16.msra.mxu0 0
      %375 = vmatpush.bf16.msra.mxu0 0
      %376 = vmatpush.bf16.msra.mxu0 0
      %377 = vmatpush.bf16.msra.mxu0 0
      %378 = vmatpush.bf16.msra.mxu0 0
      %379 = vmatpush.bf16.msra.mxu0 0
      %380 = vmatpush.bf16.msra.mxu0 %v371
      %381 = vmatmul.bf16.gmra.mxu0 %v368
      %v382 = vpop.f32.mrf.mxu0
      %v383 = vadd.f32 0.0, %v382
      %v384 = vpop.f32.mrf.mxu0
      %385 = vdwg.mxu0
      %387 = vrot.lane.b32.xlu0 %v271, 8
      %v388 = vpop.permute.xlu0 %387
      %391 = vrot.lane.b32.xlu0 %v327, 16
      %v392 = vpop.permute.xlu0 %391
      %395 = vrot.lane.b32.xlu0 %v383, 24
      %v396 = vpop.permute.xlu0 %395
      %v398 = vsel %vm164, %v215, %v388
      %vm399 = vcmask 130048
      %v400 = vsel %vm399, %v398, %v392
      %vm401 = vcmask 195584
      %v402 = vsel %vm401, %v400, %v396
      %v403 = vpack.c.bf16 %v402, %v402
      %vm404 = vcmask 257024
      %405 = vst.msk [vmem:[%s152] sm:$0xf] %vm404, %v403
      %p406 = scmp.lt.s32.totalorder %s13, 1
      %s407 = scalar_select %p406, %s13, 1
      %s408 = smul.addr %s407, 4
      %s409 = scalar_lea.vmem %s2, %s408
      // Predicated region
      $region29: #{distill_backbone_forward.23} parent=27 // pred_check
        %p410 = pneg %p83
      $region30: #{distill_backbone_forward.23} parent=27 // pred_check_branch
        %412 = sbr.rel (%p410) target = $region32
      $region31: #{distill_backbone_forward.23} parent=27 // pred_region
        _
      $region32: #{distill_backbone_forward.23} parent=27 // pred_fallthru
        _
    $region28: #{distill_backbone_forward.23} parent=5 // pred_fallthru
      _
    %p413 = scmp.le.s32.totalorder 2, %s8
    // Predicated region
    $region33: #{distill_backbone_forward.23} parent=5 // pred_check
      %p414 = pneg %p413
    $region34: #{distill_backbone_forward.23} parent=5 // pred_check_branch
      %416 = sbr.rel (%p414) target = $region36
    $region35: #{distill_backbone_forward.23} parent=5 // pred_region
      %s417 = ssub.s32 %s8, 2
      // Predicated region
      $region37: #{distill_backbone_forward.23} parent=35 // pred_check
        %p418 = pneg %p89
      $region38: #{distill_backbone_forward.23} parent=35 // pred_check_branch
        %420 = sbr.rel (%p418) target = $region40
      $region39: #{distill_backbone_forward.23} parent=35 // pred_region
        %p421 = scmp.lt.s32.totalorder %s14, 1
        %s422 = scalar_select %p421, %s14, 1
        %s423 = smul.addr %s422, 4
        %s424 = scalar_lea.vmem %s2, %s423
      $region40: #{distill_backbone_forward.23} parent=35 // pred_fallthru
        _
    $region36: #{distill_backbone_forward.23} parent=5 // pred_fallthru
      _
  $region6: #{distill_backbone_forward.23} parent=0 // loop_footer
    %s12 = sadd.s32 1, %s8
  $region7: #{distill_backbone_forward.23} parent=0 // loop_footer_branch
    %7 = sbr.rel target = $region3
  $region8: #{distill_backbone_forward.23} parent=0 // loop_exit
    _

// kernel: distill_backbone_forward.26
$region0: #{distill_backbone_forward.26}
  #allocation0 [shape = 'u32[]', space=smem, size = 0x4, offset = 0x4, fixed_abs, tag = 'smem constant byte address 0x4 - core index']
  #allocation1 [shape = 'u32[72,128]{1,0:T(1,128)}', space=vmem, size = 0x9000, scoped, tag = 'internal scratch']
  #allocation2 [shape = 'f32[8,64]{1,0:T(8,128)}', space=vmem, size = 0x1000, scoped, tag = 'scratch operand']
  %s0 = inlined_call_operand.vmem [shape: bf16[16,32], index: 0, kind: input, shape index: {}]
  %s1 = inlined_call_operand.vmem [shape: f32[16,1], index: 1, kind: input, shape index: {}]
  %s2 = inlined_call_operand.vmem [shape: f32[1,32], index: 2, kind: input, shape index: {}]
  %s3 = inlined_call_operand.vmem [shape: bf16[32,64], index: 3, kind: input, shape index: {}]
  %s4 = inlined_call_operand.vmem [shape: bf16[16,64], index: 4, kind: output, shape index: {}]
  %s5 = sld [smem:[#allocation0]]
  $region57: #{distill_backbone_forward.26} parent=0
    _
  %s7 = ssub.s32 1, %s5
  %s8 = scalar_select 0, %s7, %s5
  loop: start=0, step=1, limit=4
  $region2: #{distill_backbone_forward.26} parent=0 // loop_pre_header
    _
  $region3: #{distill_backbone_forward.26} parent=0 // loop_header
    %s10 = sphi 0, %s14
    %p11 = scmp.ge.s32.totalorder %s10, 4
    %s17 = sphi 0, %s36
    %s18 = sphi 0, %s32
    %s19 = sphi 0, %s28
    %s20 = sphi 0, %s17
    %s21 = sphi 0, %s18
    %s22 = sphi 0, %s19
    %s23 = sphi 0, %s20
    %s24 = sphi 0, %s21
    %s25 = sphi 0, %s22
    %s41 = sphi 0, %s43
    %s44 = sphi 0, %s41
    %s45 = sphi 0, %s44
    %s61 = sphi 0, %s45
    %s67 = sphi 0, %s69
    %s70 = sphi 0, %s67
    %s71 = sphi 0, %s70
    %s87 = sphi 0, %s71
    %s93 = sphi 0, %s95
    %s96 = sphi 0, %s93
    %s97 = sphi 0, %s96
    %s113 = sphi 0, %s97
    %s121 = sphi 0, %s123
    %s124 = sphi 0, %s121
    %s125 = sphi 0, %s124
    %s141 = sphi 0, %s125
    %s149 = sphi 0, %s151
    %s152 = sphi 0, %s149
    %s153 = sphi 0, %s152
    %s169 = sphi 0, %s153
  $region4: #{distill_backbone_forward.26} parent=0 // loop_header_branch
    %13 = sbr.rel (%p11) target = $region8
  $region5: #{distill_backbone_forward.26} parent=0 // loop_body
    %s15 = ssub.s32 %s10, 1
    %s16 = ssub.s32 %s10, 2
    %s26 = sadd.s32 1, %s19
    %p27 = scmp.ge.s32.totalorder %s26, 1
    %s28 = scalar_select %p27, 0, %s26
    %s29 = sadd.s32 1, %s18
    %s30 = scalar_select %p27, %s29, %s18
    %p31 = scmp.ge.s32.totalorder %s30, 1
    %s32 = scalar_select %p31, 0, %s30
    %s33 = sadd.s32 1, %s17
    %s34 = scalar_select %p31, %s33, %s17
    %p35 = scmp.ge.s32.totalorder %s34, 2
    %s36 = scalar_select %p35, 0, %s34
    %s37 = ssub.s32 %s17, %s36
    %s38 = ssub.s32 %s19, %s28
    %s39 = sor.u32 %s37, %s38
    %p40 = scmp.eq.s32.totalorder %s39, 0
    %s42 = sadd.s32 %s41, 1
    %s43 = scalar_select %p40, %s41, %s42
    %p46 = pneg %p40
    %p47 = scmp.eq.s32.totalorder %s10, 1
    %p48 = por %p46, %p47
    %p49 = scmp.ne.s32.totalorder %s41, %s44
    %p50 = scmp.eq.s32.totalorder %s10, 0
    %p51 = por %p49, %p50
    %p52 = scmp.ne.s32.totalorder %s41, %s44
    %p53 = scmp.eq.s32.totalorder %s15, 1
    %p54 = por %p52, %p53
    %p55 = scmp.ne.s32.totalorder %s44, %s45
    %p56 = scmp.eq.s32.totalorder %s15, 0
    %p57 = por %p55, %p56
    %p58 = scmp.ne.s32.totalorder %s44, %s45
    %p59 = scmp.eq.s32.totalorder %s16, 1
    %p60 = por %p58, %p59
    %p62 = scmp.ne.s32.totalorder %s45, %s61
    %p63 = scmp.eq.s32.totalorder %s16, 0
    %p64 = por %p62, %p63
    %s65 = ssub.s32 %s17, %s36
    %p66 = scmp.eq.s32.totalorder %s65, 0
    %s68 = sadd.s32 %s67, 1
    %s69 = scalar_select %p66, %s67, %s68
    %p72 = pneg %p66
    %p73 = scmp.eq.s32.totalorder %s10, 1
    %p74 = por %p72, %p73
    %p75 = scmp.ne.s32.totalorder %s67, %s70
    %p76 = scmp.eq.s32.totalorder %s10, 0
    %p77 = por %p75, %p76
    %p78 = scmp.ne.s32.totalorder %s67, %s70
    %p79 = scmp.eq.s32.totalorder %s15, 1
    %p80 = por %p78, %p79
    %p81 = scmp.ne.s32.totalorder %s70, %s71
    %p82 = scmp.eq.s32.totalorder %s15, 0
    %p83 = por %p81, %p82
    %p84 = scmp.ne.s32.totalorder %s70, %s71
    %p85 = scmp.eq.s32.totalorder %s16, 1
    %p86 = por %p84, %p85
    %p88 = scmp.ne.s32.totalorder %s71, %s87
    %p89 = scmp.eq.s32.totalorder %s16, 0
    %p90 = por %p88, %p89
    %s91 = ssub.s32 %s19, %s28
    %p92 = scmp.eq.s32.totalorder %s91, 0
    %s94 = sadd.s32 %s93, 1
    %s95 = scalar_select %p92, %s93, %s94
    %p98 = pneg %p92
    %p99 = scmp.eq.s32.totalorder %s10, 1
    %p100 = por %p98, %p99
    %p101 = scmp.ne.s32.totalorder %s93, %s96
    %p102 = scmp.eq.s32.totalorder %s10, 0
    %p103 = por %p101, %p102
    %p104 = scmp.ne.s32.totalorder %s93, %s96
    %p105 = scmp.eq.s32.totalorder %s15, 1
    %p106 = por %p104, %p105
    %p107 = scmp.ne.s32.totalorder %s96, %s97
    %p108 = scmp.eq.s32.totalorder %s15, 0
    %p109 = por %p107, %p108
    %p110 = scmp.ne.s32.totalorder %s96, %s97
    %p111 = scmp.eq.s32.totalorder %s16, 1
    %p112 = por %p110, %p111
    %p114 = scmp.ne.s32.totalorder %s97, %s113
    %p115 = scmp.eq.s32.totalorder %s16, 0
    %p116 = por %p114, %p115
    %s117 = ssub.s32 %s19, %s28
    %s118 = ssub.s32 %s18, %s32
    %s119 = sor.u32 %s117, %s118
    %p120 = scmp.eq.s32.totalorder %s119, 0
    %s122 = sadd.s32 %s121, 1
    %s123 = scalar_select %p120, %s121, %s122
    %p126 = pneg %p120
    %p127 = scmp.eq.s32.totalorder %s10, 1
    %p128 = por %p126, %p127
    %p129 = scmp.ne.s32.totalorder %s121, %s124
    %p130 = scmp.eq.s32.totalorder %s10, 0
    %p131 = por %p129, %p130
    %p132 = scmp.ne.s32.totalorder %s121, %s124
    %p133 = scmp.eq.s32.totalorder %s15, 1
    %p134 = por %p132, %p133
    %p135 = scmp.ne.s32.totalorder %s124, %s125
    %p136 = scmp.eq.s32.totalorder %s15, 0
    %p137 = por %p135, %p136
    %p138 = scmp.ne.s32.totalorder %s124, %s125
    %p139 = scmp.eq.s32.totalorder %s16, 1
    %p140 = por %p138, %p139
    %p142 = scmp.ne.s32.totalorder %s125, %s141
    %p143 = scmp.eq.s32.totalorder %s16, 0
    %p144 = por %p142, %p143
    %s145 = ssub.s32 %s17, %s36
    %s146 = ssub.s32 %s18, %s32
    %s147 = sor.u32 %s145, %s146
    %p148 = scmp.eq.s32.totalorder %s147, 0
    %s150 = sadd.s32 %s149, 1
    %s151 = scalar_select %p148, %s149, %s150
    %p154 = pneg %p148
    %p155 = scmp.eq.s32.totalorder %s10, 1
    %p156 = por %p154, %p155
    %p157 = scmp.ne.s32.totalorder %s149, %s152
    %p158 = scmp.eq.s32.totalorder %s10, 0
    %p159 = por %p157, %p158
    %p160 = scmp.ne.s32.totalorder %s149, %s152
    %p161 = scmp.eq.s32.totalorder %s15, 1
    %p162 = por %p160, %p161
    %p163 = scmp.ne.s32.totalorder %s152, %s153
    %p164 = scmp.eq.s32.totalorder %s15, 0
    %p165 = por %p163, %p164
    %p166 = scmp.ne.s32.totalorder %s152, %s153
    %p167 = scmp.eq.s32.totalorder %s16, 1
    %p168 = por %p166, %p167
    %p170 = scmp.ne.s32.totalorder %s153, %s169
    %p171 = scmp.eq.s32.totalorder %s16, 0
    %p172 = por %p170, %p171
    %p173 = scmp.le.s32.totalorder 1, %s10
    %p174 = scmp.lt.s32.totalorder %s10, 3
    %p175 = pnand %p173, %p174
    %p176 = pneg %p175
    // Predicated region
    $region9: #{distill_backbone_forward.26} parent=5 // pred_check
      _
    $region10: #{distill_backbone_forward.26} parent=5 // pred_check_branch
      %178 = sbr.rel (%p175) target = $region12
    $region11: #{distill_backbone_forward.26} parent=5 // pred_region
      %s179 = ssub.s32 %s10, 1
      // Predicated region
      $region13: #{distill_backbone_forward.26} parent=11 // pred_check
        %p180 = pneg %p109
      $region14: #{distill_backbone_forward.26} parent=11 // pred_check_branch
        %182 = sbr.rel (%p180) target = $region16
      $region15: #{distill_backbone_forward.26} parent=11 // pred_region
        %p183 = scmp.lt.s32.totalorder %s22, 0
        %s184 = scalar_select %p183, %s22, 0
        %s185 = scalar_lea.vmem %s2, %s184
      $region16: #{distill_backbone_forward.26} parent=11 // pred_fallthru
        _
      // Predicated region
      $region17: #{distill_backbone_forward.26} parent=11 // pred_check
        %p186 = pneg %p137
      $region18: #{distill_backbone_forward.26} parent=11 // pred_check_branch
        %188 = sbr.rel (%p186) target = $region20
      $region19: #{distill_backbone_forward.26} parent=11 // pred_region
        %s189 = smul.u32 4, %s22
        %p190 = scmp.lt.s32.totalorder %s189, 3
        %s191 = scalar_select %p190, %s189, 3
        %p192 = scmp.lt.s32.totalorder %s21, 0
        %s193 = scalar_select %p192, %s21, 0
        %s194 = sadd.s32 %s193, %s191
        %s195 = smul.addr %s194, 4
        %s196 = scalar_lea.vmem %s3, %s195
        %s197 = smul.u32 4, %s22
      $region20: #{distill_backbone_forward.26} parent=11 // pred_fallthru
        _
    $region12: #{distill_backbone_forward.26} parent=5 // pred_fallthru
      _
    %p198 = scmp.lt.s32.totalorder %s10, 2
    // Predicated region
    $region21: #{distill_backbone_forward.26} parent=5 // pred_check
      %p199 = pneg %p198
    $region22: #{distill_backbone_forward.26} parent=5 // pred_check_branch
      %201 = sbr.rel (%p199) target = $region24
    $region23: #{distill_backbone_forward.26} parent=5 // pred_region
      // Predicated region
      $region25: #{distill_backbone_forward.26} parent=23 // pred_check
        %p202 = pneg %p51
      $region26: #{distill_backbone_forward.26} parent=23 // pred_check_branch
        %204 = sbr.rel (%p202) target = $region28
      $region27: #{distill_backbone_forward.26} parent=23 // pred_region
        %p205 = scmp.lt.s32.totalorder %s17, 1
        %s206 = scalar_select %p205, %s17, 1
        %p207 = scmp.lt.s32.totalorder %s19, 0
        %s208 = scalar_select %p207, %s19, 0
        %s209 = sadd.s32 %s208, %s206
        %s210 = smul.addr %s209, 4
        %s211 = scalar_lea.vmem %s0, %s210
      $region28: #{distill_backbone_forward.26} parent=23 // pred_fallthru
        _
      // Predicated region
      $region29: #{distill_backbone_forward.26} parent=23 // pred_check
        %p212 = pneg %p77
      $region30: #{distill_backbone_forward.26} parent=23 // pred_check_branch
        %214 = sbr.rel (%p212) target = $region32
      $region31: #{distill_backbone_forward.26} parent=23 // pred_region
        %p215 = scmp.lt.s32.totalorder %s17, 1
        %s216 = scalar_select %p215, %s17, 1
        %s217 = smul.addr %s216, 8
        %s218 = scalar_lea.vmem %s1, %s217
      $region32: #{distill_backbone_forward.26} parent=23 // pred_fallthru
        _
    $region24: #{distill_backbone_forward.26} parent=5 // pred_fallthru
      _
    %p219 = scmp.le.s32.totalorder 1, %s10
    %p220 = scmp.lt.s32.totalorder %s10, 3
    %p221 = pnand %p219, %p220
    %p222 = pneg %p221
    // Predicated region
    $region33: #{distill_backbone_forward.26} parent=5 // pred_check
      _
    $region34: #{distill_backbone_forward.26} parent=5 // pred_check_branch
      %224 = sbr.rel (%p221) target = $region36
    $region35: #{distill_backbone_forward.26} parent=5 // pred_region
      %s225 = ssub.s32 %s10, 1
      %p226 = scmp.lt.s32.totalorder %s20, 1
      %s227 = scalar_select %p226, %s20, 1
      %p228 = scmp.lt.s32.totalorder %s22, 0
      %s229 = scalar_select %p228, %s22, 0
      %s230 = sadd.s32 %s229, %s227
      %s231 = smul.addr %s230, 4
      %s232 = scalar_lea.vmem %s0, %s231
      %p233 = pneg %p57
      %p234 = pneg %p54
      %p235 = scmp.lt.s32.totalorder %s20, 1
      %s236 = scalar_select %p235, %s20, 1
      %s237 = smul.addr %s236, 8
      %s238 = scalar_lea.vmem %s1, %s237
      %p239 = pneg %p83
      %p240 = pneg %p80
      %p241 = scmp.lt.s32.totalorder %s22, 0
      %s242 = scalar_select %p241, %s22, 0
      %s243 = scalar_lea.vmem %s2, %s242
      %p244 = pneg %p109
      %p245 = pneg %p106
      %s246 = smul.u32 4, %s22
      %p247 = scmp.lt.s32.totalorder %s246, 3
      %s248 = scalar_select %p247, %s246, 3
      %p249 = scmp.lt.s32.totalorder %s21, 0
      %s250 = scalar_select %p249, %s21, 0
      %s251 = sadd.s32 %s250, %s248
      %s252 = smul.addr %s251, 4
      %s253 = scalar_lea.vmem %s3, %s252
      %p254 = pneg %p137
      %p255 = pneg %p134
      %p256 = pneg %p165
      %p257 = pneg %p162
      %p258 = scmp.lt.s32.totalorder %s20, 1
      %s259 = scalar_select %p258, %s20, 1
      %p260 = scmp.lt.s32.totalorder %s21, 0
      %s261 = scalar_select %p260, %s21, 0
      %s262 = sadd.s32 %s261, %s259
      %s263 = smul.addr %s262, 4
      %s264 = scalar_lea.vmem %s4, %s263
      %p265 = scmp.lt.s32.totalorder %s20, 1
      %s266 = scalar_select %p265, %s20, 1
      %p267 = scmp.lt.s32.totalorder %s22, 0
      %s268 = scalar_select %p267, %s22, 0
      %s269 = sadd.s32 %s268, %s266
      %s270 = smul.addr %s269, 4
      %s271 = scalar_lea.vmem %s0, %s270
      %p272 = scmp.lt.s32.totalorder %s20, 1
      %s273 = scalar_select %p272, %s20, 1
      %s274 = smul.addr %s273, 8
      %s275 = scalar_lea.vmem %s1, %s274
      %p276 = scmp.lt.s32.totalorder %s22, 0
      %s277 = scalar_select %p276, %s22, 0
      %s278 = scalar_lea.vmem %s2, %s277
      %s279 = smul.u32 4, %s22
      %p280 = scmp.lt.s32.totalorder %s279, 3
      %s281 = scalar_select %p280, %s279, 3
      %p282 = scmp.lt.s32.totalorder %s21, 0
      %s283 = scalar_select %p282, %s21, 0
      %s284 = sadd.s32 %s283, %s281
      %s285 = smul.addr %s284, 4
      %s286 = scalar_lea.vmem %s3, %s285
      %s287 = smul.u32 4, %s22
      %p288 = scmp.lt.s32.totalorder %s20, 1
      %s289 = scalar_select %p288, %s20, 1
      %p290 = scmp.lt.s32.totalorder %s21, 0
      %s291 = scalar_select %p290, %s21, 0
      %s292 = sadd.s32 %s291, %s289
      %s293 = smul.addr %s292, 4
      %s294 = scalar_lea.vmem %s4, %s293
      %p296 = scmp.eq.s32.totalorder %s22, 0
      // Predicated region
      $region37: #{distill_backbone_forward.26} parent=35 // pred_check
        %p297 = pneg %p296
      $region38: #{distill_backbone_forward.26} parent=35 // pred_check_branch
        %299 = sbr.rel (%p297) target = $region40
      $region39: #{distill_backbone_forward.26} parent=35 // pred_region
        %vm300 = vcmask 523264
        %301 = vst.msk [vmem:[#allocation2] sm:$0xff] %vm300, 0.0
      $region40: #{distill_backbone_forward.26} parent=35 // pred_fallthru
        _
      %v302 = vld [vmem:[%s271] sm:$0xf]
      %v303 = vunpack.c.l.bf16 %v302
      %v304 = vld [vmem:[%s275] sm:$0xff]
      %306 = vset.pattern.permute.xlu0 0
      %307 = vperm.xlu0 %306, %v304
      %v308 = vpop.permute.xlu0 %307
      %v310 = vmul.f32 %v303, %v308
      %v311 = vld [vmem:[%s278] sm:$0x1]
      %v313 = vperm.slane %v311, 0
      %v315 = vmul.f32 %v310, %v313
      %v316 = vpack.c.bf16 %v315, %v315
      %v317 = vld [vmem:[#allocation2] sm:$0xff]
      %v318 = vld [vmem:[%s286] sm:$0xf]
      %v319 = vld [vmem:[%s286 + $0x4] sm:$0xf]
      %v320 = vld [vmem:[%s286 + $0x8] sm:$0xf]
      %v321 = vld [vmem:[%s286 + $0xc] sm:$0xf]
      %v326 = vunpack.c.l.b16 %v318
      %v327 = vunpack.c.l.b16 %v319
      %v328 = vunpack.c.l.b16 %v320
      %v329 = vunpack.c.l.b16 %v321
      %v330 = vpack.c.b16 %v327, %v326
      %v331 = vpack.c.b16 %v329, %v328
      %vm334 = vcmask 261120
      %v336 = vsel %vm334, %v316, 0
      %338 = vmatpush.bf16.msra.mxu0 0
      %339 = vmatpush.bf16.msra.mxu0 0
      %340 = vmatpush.bf16.msra.mxu0 0
      %341 = vmatpush.bf16.msra.mxu0 0
      %342 = vmatpush.bf16.msra.mxu0 0
      %343 = vmatpush.bf16.msra.mxu0 0
      %344 = vmatpush.bf16.msra.mxu0 %v331
      %345 = vmatpush.bf16.msra.mxu0 %v330
      %346 = vmatmul.bf16.gmra.mxu0 %v336
      %v347 = vpop.f32.mrf.mxu0
      %v348 = vadd.f32 0.0, %v347
      %v349 = vpop.f32.mrf.mxu0
      %350 = vdwg.mxu0
      %v351 = vadd.f32 %v317, %v348
      %vm352 = vcmask 523264
      %353 = vst.msk [vmem:[#allocation2] sm:$0xff] %vm352, %v351
      // Predicated region
      $region41: #{distill_backbone_forward.26} parent=35 // pred_check
        %p354 = pneg %p296
      $region42: #{distill_backbone_forward.26} parent=35 // pred_check_branch
        %356 = sbr.rel (%p354) target = $region44
      $region43: #{distill_backbone_forward.26} parent=35 // pred_region
        %v357 = vld [vmem:[#allocation2] sm:$0xff]
        %v358 = vmax.f32 %v357, 0.0
        %v359 = vpack.c.bf16 %v358, %v358
        %vm360 = vcmask 519168
        %361 = vst.msk [vmem:[%s294] sm:$0xf] %vm360, %v359
      $region44: #{distill_backbone_forward.26} parent=35 // pred_fallthru
        _
      %p362 = scmp.lt.s32.totalorder %s20, 1
      %s363 = scalar_select %p362, %s20, 1
      %p364 = scmp.lt.s32.totalorder %s21, 0
      %s365 = scalar_select %p364, %s21, 0
      %s366 = sadd.s32 %s365, %s363
      %s367 = smul.addr %s366, 4
      %s368 = scalar_lea.vmem %s4, %s367
      // Predicated region
      $region45: #{distill_backbone_forward.26} parent=35 // pred_check
        %p369 = pneg %p162
      $region46: #{distill_backbone_forward.26} parent=35 // pred_check_branch
        %371 = sbr.rel (%p369) target = $region48
      $region47: #{distill_backbone_forward.26} parent=35 // pred_region
        _
      $region48: #{distill_backbone_forward.26} parent=35 // pred_fallthru
        _
    $region36: #{distill_backbone_forward.26} parent=5 // pred_fallthru
      _
    %p372 = scmp.le.s32.totalorder 2, %s10
    // Predicated region
    $region49: #{distill_backbone_forward.26} parent=5 // pred_check
      %p373 = pneg %p372
    $region50: #{distill_backbone_forward.26} parent=5 // pred_check_branch
      %375 = sbr.rel (%p373) target = $region52
    $region51: #{distill_backbone_forward.26} parent=5 // pred_region
      %s376 = ssub.s32 %s10, 2
      // Predicated region
      $region53: #{distill_backbone_forward.26} parent=51 // pred_check
        %p377 = pneg %p168
      $region54: #{distill_backbone_forward.26} parent=51 // pred_check_branch
        %379 = sbr.rel (%p377) target = $region56
      $region55: #{distill_backbone_forward.26} parent=51 // pred_region
        %p380 = scmp.lt.s32.totalorder %s23, 1
        %s381 = scalar_select %p380, %s23, 1
        %p382 = scmp.lt.s32.totalorder %s24, 0
        %s383 = scalar_select %p382, %s24, 0
        %s384 = sadd.s32 %s383, %s381
        %s385 = smul.addr %s384, 4
        %s386 = scalar_lea.vmem %s4, %s385
      $region56: #{distill_backbone_forward.26} parent=51 // pred_fallthru
        _
    $region52: #{distill_backbone_forward.26} parent=5 // pred_fallthru
      _
  $region6: #{distill_backbone_forward.26} parent=0 // loop_footer
    %s14 = sadd.s32 1, %s10
  $region7: #{distill_backbone_forward.26} parent=0 // loop_footer_branch
    %9 = sbr.rel target = $region3
  $region8: #{distill_backbone_forward.26} parent=0 // loop_exit
    _

// kernel: distill_backbone_forward.27
$region0: #{distill_backbone_forward.27}
  #allocation0 [shape = 'u32[]', space=smem, size = 0x4, offset = 0x4, fixed_abs, tag = 'smem constant byte address 0x4 - core index']
  #allocation1 [shape = 'u32[72,128]{1,0:T(1,128)}', space=vmem, size = 0x9000, scoped, tag = 'internal scratch']
  #allocation2 [shape = 'f32[8,32]{1,0:T(8,128)}', space=vmem, size = 0x1000, scoped, tag = 'scratch operand']
  %s0 = inlined_call_operand.vmem [shape: bf16[16,64], index: 0, kind: input, shape index: {}]
  %s1 = inlined_call_operand.vmem [shape: bf16[64,32], index: 1, kind: input, shape index: {}]
  %s2 = inlined_call_operand.vmem [shape: bf16[16,32], index: 2, kind: input, shape index: {}]
  %s3 = inlined_call_operand.vmem [shape: bf16[16,32], index: 3, kind: output, shape index: {}]
  %s4 = sld [smem:[#allocation0]]
  $region53: #{distill_backbone_forward.27} parent=0
    _
  %s6 = ssub.s32 1, %s4
  %s7 = scalar_select 0, %s6, %s4
  loop: start=0, step=1, limit=4
  $region2: #{distill_backbone_forward.27} parent=0 // loop_pre_header
    _
  $region3: #{distill_backbone_forward.27} parent=0 // loop_header
    %s9 = sphi 0, %s13
    %p10 = scmp.ge.s32.totalorder %s9, 4
    %s16 = sphi 0, %s35
    %s17 = sphi 0, %s31
    %s18 = sphi 0, %s27
    %s19 = sphi 0, %s16
    %s20 = sphi 0, %s17
    %s21 = sphi 0, %s18
    %s22 = sphi 0, %s19
    %s23 = sphi 0, %s20
    %s24 = sphi 0, %s21
    %s40 = sphi 0, %s42
    %s43 = sphi 0, %s40
    %s44 = sphi 0, %s43
    %s60 = sphi 0, %s44
    %s68 = sphi 0, %s70
    %s71 = sphi 0, %s68
    %s72 = sphi 0, %s71
    %s88 = sphi 0, %s72
    %s96 = sphi 0, %s98
    %s99 = sphi 0, %s96
    %s100 = sphi 0, %s99
    %s116 = sphi 0, %s100
    %s124 = sphi 0, %s126
    %s127 = sphi 0, %s124
    %s128 = sphi 0, %s127
    %s144 = sphi 0, %s128
  $region4: #{distill_backbone_forward.27} parent=0 // loop_header_branch
    %12 = sbr.rel (%p10) target = $region8
  $region5: #{distill_backbone_forward.27} parent=0 // loop_body
    %s14 = ssub.s32 %s9, 1
    %s15 = ssub.s32 %s9, 2
    %s25 = sadd.s32 1, %s18
    %p26 = scmp.ge.s32.totalorder %s25, 1
    %s27 = scalar_select %p26, 0, %s25
    %s28 = sadd.s32 1, %s17
    %s29 = scalar_select %p26, %s28, %s17
    %p30 = scmp.ge.s32.totalorder %s29, 1
    %s31 = scalar_select %p30, 0, %s29
    %s32 = sadd.s32 1, %s16
    %s33 = scalar_select %p30, %s32, %s16
    %p34 = scmp.ge.s32.totalorder %s33, 2
    %s35 = scalar_select %p34, 0, %s33
    %s36 = ssub.s32 %s16, %s35
    %s37 = ssub.s32 %s18, %s27
    %s38 = sor.u32 %s36, %s37
    %p39 = scmp.eq.s32.totalorder %s38, 0
    %s41 = sadd.s32 %s40, 1
    %s42 = scalar_select %p39, %s40, %s41
    %p45 = pneg %p39
    %p46 = scmp.eq.s32.totalorder %s9, 1
    %p47 = por %p45, %p46
    %p48 = scmp.ne.s32.totalorder %s40, %s43
    %p49 = scmp.eq.s32.totalorder %s9, 0
    %p50 = por %p48, %p49
    %p51 = scmp.ne.s32.totalorder %s40, %s43
    %p52 = scmp.eq.s32.totalorder %s14, 1
    %p53 = por %p51, %p52
    %p54 = scmp.ne.s32.totalorder %s43, %s44
    %p55 = scmp.eq.s32.totalorder %s14, 0
    %p56 = por %p54, %p55
    %p57 = scmp.ne.s32.totalorder %s43, %s44
    %p58 = scmp.eq.s32.totalorder %s15, 1
    %p59 = por %p57, %p58
    %p61 = scmp.ne.s32.totalorder %s44, %s60
    %p62 = scmp.eq.s32.totalorder %s15, 0
    %p63 = por %p61, %p62
    %s64 = ssub.s32 %s18, %s27
    %s65 = ssub.s32 %s17, %s31
    %s66 = sor.u32 %s64, %s65
    %p67 = scmp.eq.s32.totalorder %s66, 0
    %s69 = sadd.s32 %s68, 1
    %s70 = scalar_select %p67, %s68, %s69
    %p73 = pneg %p67
    %p74 = scmp.eq.s32.totalorder %s9, 1
    %p75 = por %p73, %p74
    %p76 = scmp.ne.s32.totalorder %s68, %s71
    %p77 = scmp.eq.s32.totalorder %s9, 0
    %p78 = por %p76, %p77
    %p79 = scmp.ne.s32.totalorder %s68, %s71
    %p80 = scmp.eq.s32.totalorder %s14, 1
    %p81 = por %p79, %p80
    %p82 = scmp.ne.s32.totalorder %s71, %s72
    %p83 = scmp.eq.s32.totalorder %s14, 0
    %p84 = por %p82, %p83
    %p85 = scmp.ne.s32.totalorder %s71, %s72
    %p86 = scmp.eq.s32.totalorder %s15, 1
    %p87 = por %p85, %p86
    %p89 = scmp.ne.s32.totalorder %s72, %s88
    %p90 = scmp.eq.s32.totalorder %s15, 0
    %p91 = por %p89, %p90
    %s92 = ssub.s32 %s16, %s35
    %s93 = ssub.s32 %s17, %s31
    %s94 = sor.u32 %s92, %s93
    %p95 = scmp.eq.s32.totalorder %s94, 0
    %s97 = sadd.s32 %s96, 1
    %s98 = scalar_select %p95, %s96, %s97
    %p101 = pneg %p95
    %p102 = scmp.eq.s32.totalorder %s9, 1
    %p103 = por %p101, %p102
    %p104 = scmp.ne.s32.totalorder %s96, %s99
    %p105 = scmp.eq.s32.totalorder %s9, 0
    %p106 = por %p104, %p105
    %p107 = scmp.ne.s32.totalorder %s96, %s99
    %p108 = scmp.eq.s32.totalorder %s14, 1
    %p109 = por %p107, %p108
    %p110 = scmp.ne.s32.totalorder %s99, %s100
    %p111 = scmp.eq.s32.totalorder %s14, 0
    %p112 = por %p110, %p111
    %p113 = scmp.ne.s32.totalorder %s99, %s100
    %p114 = scmp.eq.s32.totalorder %s15, 1
    %p115 = por %p113, %p114
    %p117 = scmp.ne.s32.totalorder %s100, %s116
    %p118 = scmp.eq.s32.totalorder %s15, 0
    %p119 = por %p117, %p118
    %s120 = ssub.s32 %s16, %s35
    %s121 = ssub.s32 %s17, %s31
    %s122 = sor.u32 %s120, %s121
    %p123 = scmp.eq.s32.totalorder %s122, 0
    %s125 = sadd.s32 %s124, 1
    %s126 = scalar_select %p123, %s124, %s125
    %p129 = pneg %p123
    %p130 = scmp.eq.s32.totalorder %s9, 1
    %p131 = por %p129, %p130
    %p132 = scmp.ne.s32.totalorder %s124, %s127
    %p133 = scmp.eq.s32.totalorder %s9, 0
    %p134 = por %p132, %p133
    %p135 = scmp.ne.s32.totalorder %s124, %s127
    %p136 = scmp.eq.s32.totalorder %s14, 1
    %p137 = por %p135, %p136
    %p138 = scmp.ne.s32.totalorder %s127, %s128
    %p139 = scmp.eq.s32.totalorder %s14, 0
    %p140 = por %p138, %p139
    %p141 = scmp.ne.s32.totalorder %s127, %s128
    %p142 = scmp.eq.s32.totalorder %s15, 1
    %p143 = por %p141, %p142
    %p145 = scmp.ne.s32.totalorder %s128, %s144
    %p146 = scmp.eq.s32.totalorder %s15, 0
    %p147 = por %p145, %p146
    %p148 = scmp.le.s32.totalorder 1, %s9
    %p149 = scmp.lt.s32.totalorder %s9, 3
    %p150 = pnand %p148, %p149
    %p151 = pneg %p150
    // Predicated region
    $region9: #{distill_backbone_forward.27} parent=5 // pred_check
      _
    $region10: #{distill_backbone_forward.27} parent=5 // pred_check_branch
      %153 = sbr.rel (%p150) target = $region12
    $region11: #{distill_backbone_forward.27} parent=5 // pred_region
      %s154 = ssub.s32 %s9, 1
      // Predicated region
      $region13: #{distill_backbone_forward.27} parent=11 // pred_check
        %p155 = pneg %p84
      $region14: #{distill_backbone_forward.27} parent=11 // pred_check_branch
        %157 = sbr.rel (%p155) target = $region16
      $region15: #{distill_backbone_forward.27} parent=11 // pred_region
        %s158 = smul.u32 8, %s21
        %p159 = scmp.lt.s32.totalorder %s158, 7
        %s160 = scalar_select %p159, %s158, 7
        %p161 = scmp.lt.s32.totalorder %s20, 0
        %s162 = scalar_select %p161, %s20, 0
        %s163 = sadd.s32 %s162, %s160
        %s164 = smul.addr %s163, 4
        %s165 = scalar_lea.vmem %s1, %s164
        %s166 = smul.u32 8, %s21
      $region16: #{distill_backbone_forward.27} parent=11 // pred_fallthru
        _
    $region12: #{distill_backbone_forward.27} parent=5 // pred_fallthru
      _
    %p167 = scmp.lt.s32.totalorder %s9, 2
    // Predicated region
    $region17: #{distill_backbone_forward.27} parent=5 // pred_check
      %p168 = pneg %p167
    $region18: #{distill_backbone_forward.27} parent=5 // pred_check_branch
      %170 = sbr.rel (%p168) target = $region20
    $region19: #{distill_backbone_forward.27} parent=5 // pred_region
      // Predicated region
      $region21: #{distill_backbone_forward.27} parent=19 // pred_check
        %p171 = pneg %p50
      $region22: #{distill_backbone_forward.27} parent=19 // pred_check_branch
        %173 = sbr.rel (%p171) target = $region24
      $region23: #{distill_backbone_forward.27} parent=19 // pred_region
        %p174 = scmp.lt.s32.totalorder %s16, 1
        %s175 = scalar_select %p174, %s16, 1
        %p176 = scmp.lt.s32.totalorder %s18, 0
        %s177 = scalar_select %p176, %s18, 0
        %s178 = sadd.s32 %s177, %s175
        %s179 = smul.addr %s178, 4
        %s180 = scalar_lea.vmem %s0, %s179
      $region24: #{distill_backbone_forward.27} parent=19 // pred_fallthru
        _
      // Predicated region
      $region25: #{distill_backbone_forward.27} parent=19 // pred_check
        %p181 = pneg %p106
      $region26: #{distill_backbone_forward.27} parent=19 // pred_check_branch
        %183 = sbr.rel (%p181) target = $region28
      $region27: #{distill_backbone_forward.27} parent=19 // pred_region
        %p184 = scmp.lt.s32.totalorder %s16, 1
        %s185 = scalar_select %p184, %s16, 1
        %p186 = scmp.lt.s32.totalorder %s17, 0
        %s187 = scalar_select %p186, %s17, 0
        %s188 = sadd.s32 %s187, %s185
        %s189 = smul.addr %s188, 4
        %s190 = scalar_lea.vmem %s2, %s189
      $region28: #{distill_backbone_forward.27} parent=19 // pred_fallthru
        _
    $region20: #{distill_backbone_forward.27} parent=5 // pred_fallthru
      _
    %p191 = scmp.le.s32.totalorder 1, %s9
    %p192 = scmp.lt.s32.totalorder %s9, 3
    %p193 = pnand %p191, %p192
    %p194 = pneg %p193
    // Predicated region
    $region29: #{distill_backbone_forward.27} parent=5 // pred_check
      _
    $region30: #{distill_backbone_forward.27} parent=5 // pred_check_branch
      %196 = sbr.rel (%p193) target = $region32
    $region31: #{distill_backbone_forward.27} parent=5 // pred_region
      %s197 = ssub.s32 %s9, 1
      %p198 = scmp.lt.s32.totalorder %s19, 1
      %s199 = scalar_select %p198, %s19, 1
      %p200 = scmp.lt.s32.totalorder %s21, 0
      %s201 = scalar_select %p200, %s21, 0
      %s202 = sadd.s32 %s201, %s199
      %s203 = smul.addr %s202, 4
      %s204 = scalar_lea.vmem %s0, %s203
      %p205 = pneg %p56
      %p206 = pneg %p53
      %s207 = smul.u32 8, %s21
      %p208 = scmp.lt.s32.totalorder %s207, 7
      %s209 = scalar_select %p208, %s207, 7
      %p210 = scmp.lt.s32.totalorder %s20, 0
      %s211 = scalar_select %p210, %s20, 0
      %s212 = sadd.s32 %s211, %s209
      %s213 = smul.addr %s212, 4
      %s214 = scalar_lea.vmem %s1, %s213
      %p215 = pneg %p84
      %p216 = pneg %p81
      %p217 = scmp.lt.s32.totalorder %s19, 1
      %s218 = scalar_select %p217, %s19, 1
      %p219 = scmp.lt.s32.totalorder %s20, 0
      %s220 = scalar_select %p219, %s20, 0
      %s221 = sadd.s32 %s220, %s218
      %s222 = smul.addr %s221, 4
      %s223 = scalar_lea.vmem %s2, %s222
      %p224 = pneg %p112
      %p225 = pneg %p109
      %p226 = pneg %p140
      %p227 = pneg %p137
      %p228 = scmp.lt.s32.totalorder %s19, 1
      %s229 = scalar_select %p228, %s19, 1
      %p230 = scmp.lt.s32.totalorder %s20, 0
      %s231 = scalar_select %p230, %s20, 0
      %s232 = sadd.s32 %s231, %s229
      %s233 = smul.addr %s232, 4
      %s234 = scalar_lea.vmem %s3, %s233
      %p235 = scmp.lt.s32.totalorder %s19, 1
      %s236 = scalar_select %p235, %s19, 1
      %p237 = scmp.lt.s32.totalorder %s21, 0
      %s238 = scalar_select %p237, %s21, 0
      %s239 = sadd.s32 %s238, %s236
      %s240 = smul.addr %s239, 4
      %s241 = scalar_lea.vmem %s0, %s240
      %s242 = smul.u32 8, %s21
      %p243 = scmp.lt.s32.totalorder %s242, 7
      %s244 = scalar_select %p243, %s242, 7
      %p245 = scmp.lt.s32.totalorder %s20, 0
      %s246 = scalar_select %p245, %s20, 0
      %s247 = sadd.s32 %s246, %s244
      %s248 = smul.addr %s247, 4
      %s249 = scalar_lea.vmem %s1, %s248
      %s250 = smul.u32 8, %s21
      %p251 = scmp.lt.s32.totalorder %s19, 1
      %s252 = scalar_select %p251, %s19, 1
      %p253 = scmp.lt.s32.totalorder %s20, 0
      %s254 = scalar_select %p253, %s20, 0
      %s255 = sadd.s32 %s254, %s252
      %s256 = smul.addr %s255, 4
      %s257 = scalar_lea.vmem %s2, %s256
      %p258 = scmp.lt.s32.totalorder %s19, 1
      %s259 = scalar_select %p258, %s19, 1
      %p260 = scmp.lt.s32.totalorder %s20, 0
      %s261 = scalar_select %p260, %s20, 0
      %s262 = sadd.s32 %s261, %s259
      %s263 = smul.addr %s262, 4
      %s264 = scalar_lea.vmem %s3, %s263
      %p266 = scmp.eq.s32.totalorder %s21, 0
      // Predicated region
      $region33: #{distill_backbone_forward.27} parent=31 // pred_check
        %p267 = pneg %p266
      $region34: #{distill_backbone_forward.27} parent=31 // pred_check_branch
        %269 = sbr.rel (%p267) target = $region36
      $region35: #{distill_backbone_forward.27} parent=31 // pred_region
        %vm270 = vcmask 261120
        %271 = vst.msk [vmem:[#allocation2] sm:$0xff] %vm270, 0.0
      $region36: #{distill_backbone_forward.27} parent=31 // pred_fallthru
        _
      %v272 = vld [vmem:[%s241] sm:$0xf]
      %v273 = vld [vmem:[#allocation2] sm:$0xff]
      %v274 = vld [vmem:[%s249] sm:$0xf]
      %v275 = vld [vmem:[%s249 + $0x4] sm:$0xf]
      %v276 = vld [vmem:[%s249 + $0x8] sm:$0xf]
      %v277 = vld [vmem:[%s249 + $0xc] sm:$0xf]
      %v278 = vld [vmem:[%s249 + $0x10] sm:$0xf]
      %v279 = vld [vmem:[%s249 + $0x14] sm:$0xf]
      %v280 = vld [vmem:[%s249 + $0x18] sm:$0xf]
      %v281 = vld [vmem:[%s249 + $0x1c] sm:$0xf]
      %v290 = vunpack.c.l.b16 %v274
      %v291 = vunpack.c.l.b16 %v275
      %v292 = vunpack.c.l.b16 %v276
      %v293 = vunpack.c.l.b16 %v277
      %v294 = vunpack.c.l.b16 %v278
      %v295 = vunpack.c.l.b16 %v279
      %v296 = vunpack.c.l.b16 %v280
      %v297 = vunpack.c.l.b16 %v281
      %v298 = vpack.c.b16 %v291, %v290
      %v299 = vpack.c.b16 %v293, %v292
      %v300 = vpack.c.b16 %v295, %v294
      %v301 = vpack.c.b16 %v297, %v296
      %vm306 = vcmask 523264
      %v308 = vsel %vm306, %v272, 0
      %310 = vmatpush.bf16.msra.mxu0 0
      %311 = vmatpush.bf16.msra.mxu0 0
      %312 = vmatpush.bf16.msra.mxu0 0
      %313 = vmatpush.bf16.msra.mxu0 0
      %314 = vmatpush.bf16.msra.mxu0 %v301
      %315 = vmatpush.bf16.msra.mxu0 %v300
      %316 = vmatpush.bf16.msra.mxu0 %v299
      %317 = vmatpush.bf16.msra.mxu0 %v298
      %318 = vmatmul.bf16.gmra.mxu0 %v308
      %v319 = vpop.f32.mrf.mxu0
      %v320 = vadd.f32 0.0, %v319
      %v321 = vpop.f32.mrf.mxu0
      %322 = vdwg.mxu0
      %v323 = vadd.f32 %v273, %v320
      %vm324 = vcmask 261120
      %325 = vst.msk [vmem:[#allocation2] sm:$0xff] %vm324, %v323
      // Predicated region
      $region37: #{distill_backbone_forward.27} parent=31 // pred_check
        %p326 = pneg %p266
      $region38: #{distill_backbone_forward.27} parent=31 // pred_check_branch
        %328 = sbr.rel (%p326) target = $region40
      $region39: #{distill_backbone_forward.27} parent=31 // pred_region
        %v329 = vld [vmem:[#allocation2] sm:$0xff]
        %v330 = vld [vmem:[%s257] sm:$0xf]
        %v331 = vunpack.c.l.bf16 %v330
        %v332 = vadd.f32 %v329, %v331
        %v333 = vpack.c.bf16 %v332, %v332
        %vm334 = vcmask 257024
        %335 = vst.msk [vmem:[%s264] sm:$0xf] %vm334, %v333
      $region40: #{distill_backbone_forward.27} parent=31 // pred_fallthru
        _
      %p336 = scmp.lt.s32.totalorder %s19, 1
      %s337 = scalar_select %p336, %s19, 1
      %p338 = scmp.lt.s32.totalorder %s20, 0
      %s339 = scalar_select %p338, %s20, 0
      %s340 = sadd.s32 %s339, %s337
      %s341 = smul.addr %s340, 4
      %s342 = scalar_lea.vmem %s3, %s341
      // Predicated region
      $region41: #{distill_backbone_forward.27} parent=31 // pred_check
        %p343 = pneg %p137
      $region42: #{distill_backbone_forward.27} parent=31 // pred_check_branch
        %345 = sbr.rel (%p343) target = $region44
      $region43: #{distill_backbone_forward.27} parent=31 // pred_region
        _
      $region44: #{distill_backbone_forward.27} parent=31 // pred_fallthru
        _
    $region32: #{distill_backbone_forward.27} parent=5 // pred_fallthru
      _
    %p346 = scmp.le.s32.totalorder 2, %s9
    // Predicated region
    $region45: #{distill_backbone_forward.27} parent=5 // pred_check
      %p347 = pneg %p346
    $region46: #{distill_backbone_forward.27} parent=5 // pred_check_branch
      %349 = sbr.rel (%p347) target = $region48
    $region47: #{distill_backbone_forward.27} parent=5 // pred_region
      %s350 = ssub.s32 %s9, 2
      // Predicated region
      $region49: #{distill_backbone_forward.27} parent=47 // pred_check
        %p351 = pneg %p143
      $region50: #{distill_backbone_forward.27} parent=47 // pred_check_branch
        %353 = sbr.rel (%p351) target = $region52
      $region51: #{distill_backbone_forward.27} parent=47 // pred_region
        %p354 = scmp.lt.s32.totalorder %s22, 1
        %s355 = scalar_select %p354, %s22, 1
        %p356 = scmp.lt.s32.totalorder %s23, 0
        %s357 = scalar_select %p356, %s23, 0
        %s358 = sadd.s32 %s357, %s355
        %s359 = smul.addr %s358, 4
        %s360 = scalar_lea.vmem %s3, %s359
      $region52: #{distill_backbone_forward.27} parent=47 // pred_fallthru
        _
    $region48: #{distill_backbone_forward.27} parent=5 // pred_fallthru
      _
  $region6: #{distill_backbone_forward.27} parent=0 // loop_footer
    %s13 = sadd.s32 1, %s9
  $region7: #{distill_backbone_forward.27} parent=0 // loop_footer_branch
    %8 = sbr.rel target = $region3
  $region8: #{distill_backbone_forward.27} parent=0 // loop_exit
    _

// kernel: distill_backbone_forward.35
$region0: #{distill_backbone_forward.35}
  #allocation0 [shape = 'u32[]', space=smem, size = 0x4, offset = 0x4, fixed_abs, tag = 'smem constant byte address 0x4 - core index']
  #allocation1 [shape = 'u32[72,128]{1,0:T(1,128)}', space=vmem, size = 0x9000, scoped, tag = 'internal scratch']
  #allocation2 [shape = 'f32[8,64]{1,0:T(8,128)}', space=vmem, size = 0x1000, scoped, tag = 'scratch operand']
  %s0 = inlined_call_operand.vmem [shape: bf16[16,32], index: 0, kind: input, shape index: {}]
  %s1 = inlined_call_operand.vmem [shape: f32[16,1], index: 1, kind: input, shape index: {}]
  %s2 = inlined_call_operand.vmem [shape: f32[1,32], index: 2, kind: input, shape index: {}]
  %s3 = inlined_call_operand.vmem [shape: bf16[32,64], index: 3, kind: input, shape index: {}]
  %s4 = inlined_call_operand.vmem [shape: bf16[16,64], index: 4, kind: output, shape index: {}]
  %s5 = sld [smem:[#allocation0]]
  $region57: #{distill_backbone_forward.35} parent=0
    _
  %s7 = ssub.s32 1, %s5
  %s8 = scalar_select 0, %s7, %s5
  loop: start=0, step=1, limit=4
  $region2: #{distill_backbone_forward.35} parent=0 // loop_pre_header
    _
  $region3: #{distill_backbone_forward.35} parent=0 // loop_header
    %s10 = sphi 0, %s14
    %p11 = scmp.ge.s32.totalorder %s10, 4
    %s17 = sphi 0, %s36
    %s18 = sphi 0, %s32
    %s19 = sphi 0, %s28
    %s20 = sphi 0, %s17
    %s21 = sphi 0, %s18
    %s22 = sphi 0, %s19
    %s23 = sphi 0, %s20
    %s24 = sphi 0, %s21
    %s25 = sphi 0, %s22
    %s41 = sphi 0, %s43
    %s44 = sphi 0, %s41
    %s45 = sphi 0, %s44
    %s61 = sphi 0, %s45
    %s67 = sphi 0, %s69
    %s70 = sphi 0, %s67
    %s71 = sphi 0, %s70
    %s87 = sphi 0, %s71
    %s93 = sphi 0, %s95
    %s96 = sphi 0, %s93
    %s97 = sphi 0, %s96
    %s113 = sphi 0, %s97
    %s121 = sphi 0, %s123
    %s124 = sphi 0, %s121
    %s125 = sphi 0, %s124
    %s141 = sphi 0, %s125
    %s149 = sphi 0, %s151
    %s152 = sphi 0, %s149
    %s153 = sphi 0, %s152
    %s169 = sphi 0, %s153
  $region4: #{distill_backbone_forward.35} parent=0 // loop_header_branch
    %13 = sbr.rel (%p11) target = $region8
  $region5: #{distill_backbone_forward.35} parent=0 // loop_body
    %s15 = ssub.s32 %s10, 1
    %s16 = ssub.s32 %s10, 2
    %s26 = sadd.s32 1, %s19
    %p27 = scmp.ge.s32.totalorder %s26, 1
    %s28 = scalar_select %p27, 0, %s26
    %s29 = sadd.s32 1, %s18
    %s30 = scalar_select %p27, %s29, %s18
    %p31 = scmp.ge.s32.totalorder %s30, 1
    %s32 = scalar_select %p31, 0, %s30
    %s33 = sadd.s32 1, %s17
    %s34 = scalar_select %p31, %s33, %s17
    %p35 = scmp.ge.s32.totalorder %s34, 2
    %s36 = scalar_select %p35, 0, %s34
    %s37 = ssub.s32 %s17, %s36
    %s38 = ssub.s32 %s19, %s28
    %s39 = sor.u32 %s37, %s38
    %p40 = scmp.eq.s32.totalorder %s39, 0
    %s42 = sadd.s32 %s41, 1
    %s43 = scalar_select %p40, %s41, %s42
    %p46 = pneg %p40
    %p47 = scmp.eq.s32.totalorder %s10, 1
    %p48 = por %p46, %p47
    %p49 = scmp.ne.s32.totalorder %s41, %s44
    %p50 = scmp.eq.s32.totalorder %s10, 0
    %p51 = por %p49, %p50
    %p52 = scmp.ne.s32.totalorder %s41, %s44
    %p53 = scmp.eq.s32.totalorder %s15, 1
    %p54 = por %p52, %p53
    %p55 = scmp.ne.s32.totalorder %s44, %s45
    %p56 = scmp.eq.s32.totalorder %s15, 0
    %p57 = por %p55, %p56
    %p58 = scmp.ne.s32.totalorder %s44, %s45
    %p59 = scmp.eq.s32.totalorder %s16, 1
    %p60 = por %p58, %p59
    %p62 = scmp.ne.s32.totalorder %s45, %s61
    %p63 = scmp.eq.s32.totalorder %s16, 0
    %p64 = por %p62, %p63
    %s65 = ssub.s32 %s17, %s36
    %p66 = scmp.eq.s32.totalorder %s65, 0
    %s68 = sadd.s32 %s67, 1
    %s69 = scalar_select %p66, %s67, %s68
    %p72 = pneg %p66
    %p73 = scmp.eq.s32.totalorder %s10, 1
    %p74 = por %p72, %p73
    %p75 = scmp.ne.s32.totalorder %s67, %s70
    %p76 = scmp.eq.s32.totalorder %s10, 0
    %p77 = por %p75, %p76
    %p78 = scmp.ne.s32.totalorder %s67, %s70
    %p79 = scmp.eq.s32.totalorder %s15, 1
    %p80 = por %p78, %p79
    %p81 = scmp.ne.s32.totalorder %s70, %s71
    %p82 = scmp.eq.s32.totalorder %s15, 0
    %p83 = por %p81, %p82
    %p84 = scmp.ne.s32.totalorder %s70, %s71
    %p85 = scmp.eq.s32.totalorder %s16, 1
    %p86 = por %p84, %p85
    %p88 = scmp.ne.s32.totalorder %s71, %s87
    %p89 = scmp.eq.s32.totalorder %s16, 0
    %p90 = por %p88, %p89
    %s91 = ssub.s32 %s19, %s28
    %p92 = scmp.eq.s32.totalorder %s91, 0
    %s94 = sadd.s32 %s93, 1
    %s95 = scalar_select %p92, %s93, %s94
    %p98 = pneg %p92
    %p99 = scmp.eq.s32.totalorder %s10, 1
    %p100 = por %p98, %p99
    %p101 = scmp.ne.s32.totalorder %s93, %s96
    %p102 = scmp.eq.s32.totalorder %s10, 0
    %p103 = por %p101, %p102
    %p104 = scmp.ne.s32.totalorder %s93, %s96
    %p105 = scmp.eq.s32.totalorder %s15, 1
    %p106 = por %p104, %p105
    %p107 = scmp.ne.s32.totalorder %s96, %s97
    %p108 = scmp.eq.s32.totalorder %s15, 0
    %p109 = por %p107, %p108
    %p110 = scmp.ne.s32.totalorder %s96, %s97
    %p111 = scmp.eq.s32.totalorder %s16, 1
    %p112 = por %p110, %p111
    %p114 = scmp.ne.s32.totalorder %s97, %s113
    %p115 = scmp.eq.s32.totalorder %s16, 0
    %p116 = por %p114, %p115
    %s117 = ssub.s32 %s19, %s28
    %s118 = ssub.s32 %s18, %s32
    %s119 = sor.u32 %s117, %s118
    %p120 = scmp.eq.s32.totalorder %s119, 0
    %s122 = sadd.s32 %s121, 1
    %s123 = scalar_select %p120, %s121, %s122
    %p126 = pneg %p120
    %p127 = scmp.eq.s32.totalorder %s10, 1
    %p128 = por %p126, %p127
    %p129 = scmp.ne.s32.totalorder %s121, %s124
    %p130 = scmp.eq.s32.totalorder %s10, 0
    %p131 = por %p129, %p130
    %p132 = scmp.ne.s32.totalorder %s121, %s124
    %p133 = scmp.eq.s32.totalorder %s15, 1
    %p134 = por %p132, %p133
    %p135 = scmp.ne.s32.totalorder %s124, %s125
    %p136 = scmp.eq.s32.totalorder %s15, 0
    %p137 = por %p135, %p136
    %p138 = scmp.ne.s32.totalorder %s124, %s125
    %p139 = scmp.eq.s32.totalorder %s16, 1
    %p140 = por %p138, %p139
    %p142 = scmp.ne.s32.totalorder %s125, %s141
    %p143 = scmp.eq.s32.totalorder %s16, 0
    %p144 = por %p142, %p143
    %s145 = ssub.s32 %s17, %s36
    %s146 = ssub.s32 %s18, %s32
    %s147 = sor.u32 %s145, %s146
    %p148 = scmp.eq.s32.totalorder %s147, 0
    %s150 = sadd.s32 %s149, 1
    %s151 = scalar_select %p148, %s149, %s150
    %p154 = pneg %p148
    %p155 = scmp.eq.s32.totalorder %s10, 1
    %p156 = por %p154, %p155
    %p157 = scmp.ne.s32.totalorder %s149, %s152
    %p158 = scmp.eq.s32.totalorder %s10, 0
    %p159 = por %p157, %p158
    %p160 = scmp.ne.s32.totalorder %s149, %s152
    %p161 = scmp.eq.s32.totalorder %s15, 1
    %p162 = por %p160, %p161
    %p163 = scmp.ne.s32.totalorder %s152, %s153
    %p164 = scmp.eq.s32.totalorder %s15, 0
    %p165 = por %p163, %p164
    %p166 = scmp.ne.s32.totalorder %s152, %s153
    %p167 = scmp.eq.s32.totalorder %s16, 1
    %p168 = por %p166, %p167
    %p170 = scmp.ne.s32.totalorder %s153, %s169
    %p171 = scmp.eq.s32.totalorder %s16, 0
    %p172 = por %p170, %p171
    %p173 = scmp.le.s32.totalorder 1, %s10
    %p174 = scmp.lt.s32.totalorder %s10, 3
    %p175 = pnand %p173, %p174
    %p176 = pneg %p175
    // Predicated region
    $region9: #{distill_backbone_forward.35} parent=5 // pred_check
      _
    $region10: #{distill_backbone_forward.35} parent=5 // pred_check_branch
      %178 = sbr.rel (%p175) target = $region12
    $region11: #{distill_backbone_forward.35} parent=5 // pred_region
      %s179 = ssub.s32 %s10, 1
      // Predicated region
      $region13: #{distill_backbone_forward.35} parent=11 // pred_check
        %p180 = pneg %p109
      $region14: #{distill_backbone_forward.35} parent=11 // pred_check_branch
        %182 = sbr.rel (%p180) target = $region16
      $region15: #{distill_backbone_forward.35} parent=11 // pred_region
        %p183 = scmp.lt.s32.totalorder %s22, 0
        %s184 = scalar_select %p183, %s22, 0
        %s185 = scalar_lea.vmem %s2, %s184
      $region16: #{distill_backbone_forward.35} parent=11 // pred_fallthru
        _
      // Predicated region
      $region17: #{distill_backbone_forward.35} parent=11 // pred_check
        %p186 = pneg %p137
      $region18: #{distill_backbone_forward.35} parent=11 // pred_check_branch
        %188 = sbr.rel (%p186) target = $region20
      $region19: #{distill_backbone_forward.35} parent=11 // pred_region
        %s189 = smul.u32 4, %s22
        %p190 = scmp.lt.s32.totalorder %s189, 3
        %s191 = scalar_select %p190, %s189, 3
        %p192 = scmp.lt.s32.totalorder %s21, 0
        %s193 = scalar_select %p192, %s21, 0
        %s194 = sadd.s32 %s193, %s191
        %s195 = smul.addr %s194, 4
        %s196 = scalar_lea.vmem %s3, %s195
        %s197 = smul.u32 4, %s22
      $region20: #{distill_backbone_forward.35} parent=11 // pred_fallthru
        _
    $region12: #{distill_backbone_forward.35} parent=5 // pred_fallthru
      _
    %p198 = scmp.lt.s32.totalorder %s10, 2
    // Predicated region
    $region21: #{distill_backbone_forward.35} parent=5 // pred_check
      %p199 = pneg %p198
    $region22: #{distill_backbone_forward.35} parent=5 // pred_check_branch
      %201 = sbr.rel (%p199) target = $region24
    $region23: #{distill_backbone_forward.35} parent=5 // pred_region
      // Predicated region
      $region25: #{distill_backbone_forward.35} parent=23 // pred_check
        %p202 = pneg %p51
      $region26: #{distill_backbone_forward.35} parent=23 // pred_check_branch
        %204 = sbr.rel (%p202) target = $region28
      $region27: #{distill_backbone_forward.35} parent=23 // pred_region
        %p205 = scmp.lt.s32.totalorder %s17, 1
        %s206 = scalar_select %p205, %s17, 1
        %p207 = scmp.lt.s32.totalorder %s19, 0
        %s208 = scalar_select %p207, %s19, 0
        %s209 = sadd.s32 %s208, %s206
        %s210 = smul.addr %s209, 4
        %s211 = scalar_lea.vmem %s0, %s210
      $region28: #{distill_backbone_forward.35} parent=23 // pred_fallthru
        _
      // Predicated region
      $region29: #{distill_backbone_forward.35} parent=23 // pred_check
        %p212 = pneg %p77
      $region30: #{distill_backbone_forward.35} parent=23 // pred_check_branch
        %214 = sbr.rel (%p212) target = $region32
      $region31: #{distill_backbone_forward.35} parent=23 // pred_region
        %p215 = scmp.lt.s32.totalorder %s17, 1
        %s216 = scalar_select %p215, %s17, 1
        %s217 = smul.addr %s216, 8
        %s218 = scalar_lea.vmem %s1, %s217
      $region32: #{distill_backbone_forward.35} parent=23 // pred_fallthru
        _
    $region24: #{distill_backbone_forward.35} parent=5 // pred_fallthru
      _
    %p219 = scmp.le.s32.totalorder 1, %s10
    %p220 = scmp.lt.s32.totalorder %s10, 3
    %p221 = pnand %p219, %p220
    %p222 = pneg %p221
    // Predicated region
    $region33: #{distill_backbone_forward.35} parent=5 // pred_check
      _
    $region34: #{distill_backbone_forward.35} parent=5 // pred_check_branch
      %224 = sbr.rel (%p221) target = $region36
    $region35: #{distill_backbone_forward.35} parent=5 // pred_region
      %s225 = ssub.s32 %s10, 1
      %p226 = scmp.lt.s32.totalorder %s20, 1
      %s227 = scalar_select %p226, %s20, 1
      %p228 = scmp.lt.s32.totalorder %s22, 0
      %s229 = scalar_select %p228, %s22, 0
      %s230 = sadd.s32 %s229, %s227
      %s231 = smul.addr %s230, 4
      %s232 = scalar_lea.vmem %s0, %s231
      %p233 = pneg %p57
      %p234 = pneg %p54
      %p235 = scmp.lt.s32.totalorder %s20, 1
      %s236 = scalar_select %p235, %s20, 1
      %s237 = smul.addr %s236, 8
      %s238 = scalar_lea.vmem %s1, %s237
      %p239 = pneg %p83
      %p240 = pneg %p80
      %p241 = scmp.lt.s32.totalorder %s22, 0
      %s242 = scalar_select %p241, %s22, 0
      %s243 = scalar_lea.vmem %s2, %s242
      %p244 = pneg %p109
      %p245 = pneg %p106
      %s246 = smul.u32 4, %s22
      %p247 = scmp.lt.s32.totalorder %s246, 3
      %s248 = scalar_select %p247, %s246, 3
      %p249 = scmp.lt.s32.totalorder %s21, 0
      %s250 = scalar_select %p249, %s21, 0
      %s251 = sadd.s32 %s250, %s248
      %s252 = smul.addr %s251, 4
      %s253 = scalar_lea.vmem %s3, %s252
      %p254 = pneg %p137
      %p255 = pneg %p134
      %p256 = pneg %p165
      %p257 = pneg %p162
      %p258 = scmp.lt.s32.totalorder %s20, 1
      %s259 = scalar_select %p258, %s20, 1
      %p260 = scmp.lt.s32.totalorder %s21, 0
      %s261 = scalar_select %p260, %s21, 0
      %s262 = sadd.s32 %s261, %s259
      %s263 = smul.addr %s262, 4
      %s264 = scalar_lea.vmem %s4, %s263
      %p265 = scmp.lt.s32.totalorder %s20, 1
      %s266 = scalar_select %p265, %s20, 1
      %p267 = scmp.lt.s32.totalorder %s22, 0
      %s268 = scalar_select %p267, %s22, 0
      %s269 = sadd.s32 %s268, %s266
      %s270 = smul.addr %s269, 4
      %s271 = scalar_lea.vmem %s0, %s270
      %p272 = scmp.lt.s32.totalorder %s20, 1
      %s273 = scalar_select %p272, %s20, 1
      %s274 = smul.addr %s273, 8
      %s275 = scalar_lea.vmem %s1, %s274
      %p276 = scmp.lt.s32.totalorder %s22, 0
      %s277 = scalar_select %p276, %s22, 0
      %s278 = scalar_lea.vmem %s2, %s277
      %s279 = smul.u32 4, %s22
      %p280 = scmp.lt.s32.totalorder %s279, 3
      %s281 = scalar_select %p280, %s279, 3
      %p282 = scmp.lt.s32.totalorder %s21, 0
      %s283 = scalar_select %p282, %s21, 0
      %s284 = sadd.s32 %s283, %s281
      %s285 = smul.addr %s284, 4
      %s286 = scalar_lea.vmem %s3, %s285
      %s287 = smul.u32 4, %s22
      %p288 = scmp.lt.s32.totalorder %s20, 1
      %s289 = scalar_select %p288, %s20, 1
      %p290 = scmp.lt.s32.totalorder %s21, 0
      %s291 = scalar_select %p290, %s21, 0
      %s292 = sadd.s32 %s291, %s289
      %s293 = smul.addr %s292, 4
      %s294 = scalar_lea.vmem %s4, %s293
      %p296 = scmp.eq.s32.totalorder %s22, 0
      // Predicated region
      $region37: #{distill_backbone_forward.35} parent=35 // pred_check
        %p297 = pneg %p296
      $region38: #{distill_backbone_forward.35} parent=35 // pred_check_branch
        %299 = sbr.rel (%p297) target = $region40
      $region39: #{distill_backbone_forward.35} parent=35 // pred_region
        %vm300 = vcmask 523264
        %301 = vst.msk [vmem:[#allocation2] sm:$0xff] %vm300, 0.0
      $region40: #{distill_backbone_forward.35} parent=35 // pred_fallthru
        _
      %v302 = vld [vmem:[%s271] sm:$0xf]
      %v303 = vunpack.c.l.bf16 %v302
      %v304 = vld [vmem:[%s275] sm:$0xff]
      %306 = vset.pattern.permute.xlu0 0
      %307 = vperm.xlu0 %306, %v304
      %v308 = vpop.permute.xlu0 %307
      %v310 = vmul.f32 %v303, %v308
      %v311 = vld [vmem:[%s278] sm:$0x1]
      %v313 = vperm.slane %v311, 0
      %v315 = vmul.f32 %v310, %v313
      %v316 = vpack.c.bf16 %v315, %v315
      %v317 = vld [vmem:[#allocation2] sm:$0xff]
      %v318 = vld [vmem:[%s286] sm:$0xf]
      %v319 = vld [vmem:[%s286 + $0x4] sm:$0xf]
      %v320 = vld [vmem:[%s286 + $0x8] sm:$0xf]
      %v321 = vld [vmem:[%s286 + $0xc] sm:$0xf]
      %v326 = vunpack.c.l.b16 %v318
      %v327 = vunpack.c.l.b16 %v319
      %v328 = vunpack.c.l.b16 %v320
      %v329 = vunpack.c.l.b16 %v321
      %v330 = vpack.c.b16 %v327, %v326
      %v331 = vpack.c.b16 %v329, %v328
      %vm334 = vcmask 261120
      %v336 = vsel %vm334, %v316, 0
      %338 = vmatpush.bf16.msra.mxu0 0
      %339 = vmatpush.bf16.msra.mxu0 0
      %340 = vmatpush.bf16.msra.mxu0 0
      %341 = vmatpush.bf16.msra.mxu0 0
      %342 = vmatpush.bf16.msra.mxu0 0
      %343 = vmatpush.bf16.msra.mxu0 0
      %344 = vmatpush.bf16.msra.mxu0 %v331
      %345 = vmatpush.bf16.msra.mxu0 %v330
      %346 = vmatmul.bf16.gmra.mxu0 %v336
      %v347 = vpop.f32.mrf.mxu0
      %v348 = vadd.f32 0.0, %v347
      %v349 = vpop.f32.mrf.mxu0
      %350 = vdwg.mxu0
      %v351 = vadd.f32 %v317, %v348
      %vm352 = vcmask 523264
      %353 = vst.msk [vmem:[#allocation2] sm:$0xff] %vm352, %v351
      // Predicated region
      $region41: #{distill_backbone_forward.35} parent=35 // pred_check
        %p354 = pneg %p296
      $region42: #{distill_backbone_forward.35} parent=35 // pred_check_branch
        %356 = sbr.rel (%p354) target = $region44
      $region43: #{distill_backbone_forward.35} parent=35 // pred_region
        %v357 = vld [vmem:[#allocation2] sm:$0xff]
        %v358 = vpack.c.bf16 %v357, %v357
        %vm359 = vcmask 519168
        %360 = vst.msk [vmem:[%s294] sm:$0xf] %vm359, %v358
      $region44: #{distill_backbone_forward.35} parent=35 // pred_fallthru
        _
      %p361 = scmp.lt.s32.totalorder %s20, 1
      %s362 = scalar_select %p361, %s20, 1
      %p363 = scmp.lt.s32.totalorder %s21, 0
      %s364 = scalar_select %p363, %s21, 0
      %s365 = sadd.s32 %s364, %s362
      %s366 = smul.addr %s365, 4
      %s367 = scalar_lea.vmem %s4, %s366
      // Predicated region
      $region45: #{distill_backbone_forward.35} parent=35 // pred_check
        %p368 = pneg %p162
      $region46: #{distill_backbone_forward.35} parent=35 // pred_check_branch
        %370 = sbr.rel (%p368) target = $region48
      $region47: #{distill_backbone_forward.35} parent=35 // pred_region
        _
      $region48: #{distill_backbone_forward.35} parent=35 // pred_fallthru
        _
    $region36: #{distill_backbone_forward.35} parent=5 // pred_fallthru
      _
    %p371 = scmp.le.s32.totalorder 2, %s10
    // Predicated region
    $region49: #{distill_backbone_forward.35} parent=5 // pred_check
      %p372 = pneg %p371
    $region50: #{distill_backbone_forward.35} parent=5 // pred_check_branch
      %374 = sbr.rel (%p372) target = $region52
    $region51: #{distill_backbone_forward.35} parent=5 // pred_region
      %s375 = ssub.s32 %s10, 2
      // Predicated region
      $region53: #{distill_backbone_forward.35} parent=51 // pred_check
        %p376 = pneg %p168
      $region54: #{distill_backbone_forward.35} parent=51 // pred_check_branch
        %378 = sbr.rel (%p376) target = $region56
      $region55: #{distill_backbone_forward.35} parent=51 // pred_region
        %p379 = scmp.lt.s32.totalorder %s23, 1
        %s380 = scalar_select %p379, %s23, 1
        %p381 = scmp.lt.s32.totalorder %s24, 0
        %s382 = scalar_select %p381, %s24, 0
        %s383 = sadd.s32 %s382, %s380
        %s384 = smul.addr %s383, 4
        %s385 = scalar_lea.vmem %s4, %s384
      $region56: #{distill_backbone_forward.35} parent=51 // pred_fallthru
        _
    $region52: #{distill_backbone_forward.35} parent=5 // pred_fallthru
      _
  $region6: #{distill_backbone_forward.35} parent=0 // loop_footer
    %s14 = sadd.s32 1, %s10
  $region7: #{distill_backbone_forward.35} parent=0 // loop_footer_branch
    %9 = sbr.rel target = $region3
  $region8: #{distill_backbone_forward.35} parent=0 // loop_exit
    _

// kernel: distill_backbone_forward.36
$region0: #{distill_backbone_forward.36}
  #allocation0 [shape = 'u32[]', space=smem, size = 0x4, offset = 0x4, fixed_abs, tag = 'smem constant byte address 0x4 - core index']
  #allocation1 [shape = 'u32[72,128]{1,0:T(1,128)}', space=vmem, size = 0x9000, scoped, tag = 'internal scratch']
  %s0 = inlined_call_operand.vmem [shape: bf16[16,32], index: 0, kind: input, shape index: {}]
  %s1 = inlined_call_operand.vmem [shape: bf16[16,64], index: 1, kind: input, shape index: {}]
  %s2 = inlined_call_operand.vmem [shape: f32[2,1,8], index: 2, kind: input, shape index: {}]
  %s3 = inlined_call_operand.vmem [shape: bf16[16,32], index: 3, kind: output, shape index: {}]
  %s4 = sld [smem:[#allocation0]]
  $region45: #{distill_backbone_forward.36} parent=0
    _
  %s6 = ssub.s32 1, %s4
  %s7 = scalar_select 0, %s6, %s4
  loop: start=0, step=1, limit=4
  $region2: #{distill_backbone_forward.36} parent=0 // loop_pre_header
    _
  $region3: #{distill_backbone_forward.36} parent=0 // loop_header
    %s9 = sphi 0, %s13
    %p10 = scmp.ge.s32.totalorder %s9, 4
    %s19 = sphi 0, %s21
    %s22 = sphi 0, %s19
    %s23 = sphi 0, %s22
    %s39 = sphi 0, %s23
    %s45 = sphi 0, %s47
    %s48 = sphi 0, %s45
    %s49 = sphi 0, %s48
    %s65 = sphi 0, %s49
    %s71 = sphi 0, %s73
    %s74 = sphi 0, %s71
    %s75 = sphi 0, %s74
    %s91 = sphi 0, %s75
    %s97 = sphi 0, %s99
    %s100 = sphi 0, %s97
    %s101 = sphi 0, %s100
    %s117 = sphi 0, %s101
  $region4: #{distill_backbone_forward.36} parent=0 // loop_header_branch
    %12 = sbr.rel (%p10) target = $region8
  $region5: #{distill_backbone_forward.36} parent=0 // loop_body
    %s14 = ssub.s32 %s9, 1
    %s15 = ssub.s32 %s9, 2
    %s16 = sadd.s32 %s9, 1
    %s17 = ssub.s32 %s9, %s16
    %p18 = scmp.eq.s32.totalorder %s17, 0
    %s20 = sadd.s32 %s19, 1
    %s21 = scalar_select %p18, %s19, %s20
    %p24 = pneg %p18
    %p25 = scmp.eq.s32.totalorder %s9, 1
    %p26 = por %p24, %p25
    %p27 = scmp.ne.s32.totalorder %s19, %s22
    %p28 = scmp.eq.s32.totalorder %s9, 0
    %p29 = por %p27, %p28
    %p30 = scmp.ne.s32.totalorder %s19, %s22
    %p31 = scmp.eq.s32.totalorder %s14, 1
    %p32 = por %p30, %p31
    %p33 = scmp.ne.s32.totalorder %s22, %s23
    %p34 = scmp.eq.s32.totalorder %s14, 0
    %p35 = por %p33, %p34
    %p36 = scmp.ne.s32.totalorder %s22, %s23
    %p37 = scmp.eq.s32.totalorder %s15, 1
    %p38 = por %p36, %p37
    %p40 = scmp.ne.s32.totalorder %s23, %s39
    %p41 = scmp.eq.s32.totalorder %s15, 0
    %p42 = por %p40, %p41
    %s43 = ssub.s32 %s9, %s16
    %p44 = scmp.eq.s32.totalorder %s43, 0
    %s46 = sadd.s32 %s45, 1
    %s47 = scalar_select %p44, %s45, %s46
    %p50 = pneg %p44
    %p51 = scmp.eq.s32.totalorder %s9, 1
    %p52 = por %p50, %p51
    %p53 = scmp.ne.s32.totalorder %s45, %s48
    %p54 = scmp.eq.s32.totalorder %s9, 0
    %p55 = por %p53, %p54
    %p56 = scmp.ne.s32.totalorder %s45, %s48
    %p57 = scmp.eq.s32.totalorder %s14, 1
    %p58 = por %p56, %p57
    %p59 = scmp.ne.s32.totalorder %s48, %s49
    %p60 = scmp.eq.s32.totalorder %s14, 0
    %p61 = por %p59, %p60
    %p62 = scmp.ne.s32.totalorder %s48, %s49
    %p63 = scmp.eq.s32.totalorder %s15, 1
    %p64 = por %p62, %p63
    %p66 = scmp.ne.s32.totalorder %s49, %s65
    %p67 = scmp.eq.s32.totalorder %s15, 0
    %p68 = por %p66, %p67
    %s69 = ssub.s32 %s9, %s16
    %p70 = scmp.eq.s32.totalorder %s69, 0
    %s72 = sadd.s32 %s71, 1
    %s73 = scalar_select %p70, %s71, %s72
    %p76 = pneg %p70
    %p77 = scmp.eq.s32.totalorder %s9, 1
    %p78 = por %p76, %p77
    %p79 = scmp.ne.s32.totalorder %s71, %s74
    %p80 = scmp.eq.s32.totalorder %s9, 0
    %p81 = por %p79, %p80
    %p82 = scmp.ne.s32.totalorder %s71, %s74
    %p83 = scmp.eq.s32.totalorder %s14, 1
    %p84 = por %p82, %p83
    %p85 = scmp.ne.s32.totalorder %s74, %s75
    %p86 = scmp.eq.s32.totalorder %s14, 0
    %p87 = por %p85, %p86
    %p88 = scmp.ne.s32.totalorder %s74, %s75
    %p89 = scmp.eq.s32.totalorder %s15, 1
    %p90 = por %p88, %p89
    %p92 = scmp.ne.s32.totalorder %s75, %s91
    %p93 = scmp.eq.s32.totalorder %s15, 0
    %p94 = por %p92, %p93
    %s95 = ssub.s32 %s9, %s16
    %p96 = scmp.eq.s32.totalorder %s95, 0
    %s98 = sadd.s32 %s97, 1
    %s99 = scalar_select %p96, %s97, %s98
    %p102 = pneg %p96
    %p103 = scmp.eq.s32.totalorder %s9, 1
    %p104 = por %p102, %p103
    %p105 = scmp.ne.s32.totalorder %s97, %s100
    %p106 = scmp.eq.s32.totalorder %s9, 0
    %p107 = por %p105, %p106
    %p108 = scmp.ne.s32.totalorder %s97, %s100
    %p109 = scmp.eq.s32.totalorder %s14, 1
    %p110 = por %p108, %p109
    %p111 = scmp.ne.s32.totalorder %s100, %s101
    %p112 = scmp.eq.s32.totalorder %s14, 0
    %p113 = por %p111, %p112
    %p114 = scmp.ne.s32.totalorder %s100, %s101
    %p115 = scmp.eq.s32.totalorder %s15, 1
    %p116 = por %p114, %p115
    %p118 = scmp.ne.s32.totalorder %s101, %s117
    %p119 = scmp.eq.s32.totalorder %s15, 0
    %p120 = por %p118, %p119
    %p121 = scmp.le.s32.totalorder 1, %s9
    %p122 = scmp.lt.s32.totalorder %s9, 3
    %p123 = pnand %p121, %p122
    %p124 = pneg %p123
    // Predicated region
    $region9: #{distill_backbone_forward.36} parent=5 // pred_check
      _
    $region10: #{distill_backbone_forward.36} parent=5 // pred_check_branch
      %126 = sbr.rel (%p123) target = $region12
    $region11: #{distill_backbone_forward.36} parent=5 // pred_region
      %s127 = ssub.s32 %s9, 1
    $region12: #{distill_backbone_forward.36} parent=5 // pred_fallthru
      _
    %p128 = scmp.lt.s32.totalorder %s9, 2
    // Predicated region
    $region13: #{distill_backbone_forward.36} parent=5 // pred_check
      %p129 = pneg %p128
    $region14: #{distill_backbone_forward.36} parent=5 // pred_check_branch
      %131 = sbr.rel (%p129) target = $region16
    $region15: #{distill_backbone_forward.36} parent=5 // pred_region
      // Predicated region
      $region17: #{distill_backbone_forward.36} parent=15 // pred_check
        %p132 = pneg %p29
      $region18: #{distill_backbone_forward.36} parent=15 // pred_check_branch
        %134 = sbr.rel (%p132) target = $region20
      $region19: #{distill_backbone_forward.36} parent=15 // pred_region
        %p135 = scmp.lt.s32.totalorder %s9, 1
        %s136 = scalar_select %p135, %s9, 1
        %s137 = smul.addr %s136, 4
        %s138 = scalar_lea.vmem %s0, %s137
      $region20: #{distill_backbone_forward.36} parent=15 // pred_fallthru
        _
      // Predicated region
      $region21: #{distill_backbone_forward.36} parent=15 // pred_check
        %p139 = pneg %p55
      $region22: #{distill_backbone_forward.36} parent=15 // pred_check_branch
        %141 = sbr.rel (%p139) target = $region24
      $region23: #{distill_backbone_forward.36} parent=15 // pred_region
        %p142 = scmp.lt.s32.totalorder %s9, 1
        %s143 = scalar_select %p142, %s9, 1
        %s144 = smul.addr %s143, 4
        %s145 = scalar_lea.vmem %s1, %s144
      $region24: #{distill_backbone_forward.36} parent=15 // pred_fallthru
        _
      // Predicated region
      $region25: #{distill_backbone_forward.36} parent=15 // pred_check
        %p146 = pneg %p81
      $region26: #{distill_backbone_forward.36} parent=15 // pred_check_branch
        %148 = sbr.rel (%p146) target = $region28
      $region27: #{distill_backbone_forward.36} parent=15 // pred_region
        %p149 = scmp.lt.s32.totalorder %s9, 1
        %s150 = scalar_select %p149, %s9, 1
        %s151 = scalar_lea.vmem %s2, %s150
      $region28: #{distill_backbone_forward.36} parent=15 // pred_fallthru
        _
    $region16: #{distill_backbone_forward.36} parent=5 // pred_fallthru
      _
    %p152 = scmp.le.s32.totalorder 1, %s9
    %p153 = scmp.lt.s32.totalorder %s9, 3
    %p154 = pnand %p152, %p153
    %p155 = pneg %p154
    // Predicated region
    $region29: #{distill_backbone_forward.36} parent=5 // pred_check
      _
    $region30: #{distill_backbone_forward.36} parent=5 // pred_check_branch
      %157 = sbr.rel (%p154) target = $region32
    $region31: #{distill_backbone_forward.36} parent=5 // pred_region
      %s158 = ssub.s32 %s9, 1
      %p159 = scmp.lt.s32.totalorder %s14, 1
      %s160 = scalar_select %p159, %s14, 1
      %s161 = smul.addr %s160, 4
      %s162 = scalar_lea.vmem %s0, %s161
      %p163 = pneg %p35
      %p164 = pneg %p32
      %p165 = scmp.lt.s32.totalorder %s14, 1
      %s166 = scalar_select %p165, %s14, 1
      %s167 = smul.addr %s166, 4
      %s168 = scalar_lea.vmem %s1, %s167
      %p169 = pneg %p61
      %p170 = pneg %p58
      %p171 = scmp.lt.s32.totalorder %s14, 1
      %s172 = scalar_select %p171, %s14, 1
      %s173 = scalar_lea.vmem %s2, %s172
      %p174 = pneg %p87
      %p175 = pneg %p84
      %p176 = pneg %p113
      %p177 = pneg %p110
      %p178 = scmp.lt.s32.totalorder %s14, 1
      %s179 = scalar_select %p178, %s14, 1
      %s180 = smul.addr %s179, 4
      %s181 = scalar_lea.vmem %s3, %s180
      %p182 = scmp.lt.s32.totalorder %s14, 1
      %s183 = scalar_select %p182, %s14, 1
      %s184 = smul.addr %s183, 4
      %s185 = scalar_lea.vmem %s0, %s184
      %p186 = scmp.lt.s32.totalorder %s14, 1
      %s187 = scalar_select %p186, %s14, 1
      %s188 = smul.addr %s187, 4
      %s189 = scalar_lea.vmem %s1, %s188
      %p190 = scmp.lt.s32.totalorder %s14, 1
      %s191 = scalar_select %p190, %s14, 1
      %s192 = scalar_lea.vmem %s2, %s191
      %p193 = scmp.lt.s32.totalorder %s14, 1
      %s194 = scalar_select %p193, %s14, 1
      %s195 = smul.addr %s194, 4
      %s196 = scalar_lea.vmem %s3, %s195
      %v198 = vld [vmem:[%s185] sm:$0xf]
      %v199 = vld [vmem:[%s189] sm:$0xf]
      %v200 = vld [vmem:[%s192] sm:$0x1]
      %v202 = vperm.slane %v200, 0
      %vm204 = vcmask 64512
      %v206 = vsel %vm204, %v198, 0
      %v209 = vsel %vm204, %v199, 0
      %211 = vmatpush.bf16.xpose.msra.mxu0 0
      %212 = vmatpush.bf16.xpose.msra.mxu0 0
      %213 = vmatpush.bf16.xpose.msra.mxu0 0
      %214 = vmatpush.bf16.xpose.msra.mxu0 0
      %215 = vmatpush.bf16.xpose.msra.mxu0 0
      %216 = vmatpush.bf16.xpose.msra.mxu0 0
      %217 = vmatpush.bf16.xpose.msra.mxu0 0
      %218 = vmatpush.bf16.xpose.msra.mxu0 %v209
      %219 = vmatmul.bf16.gmra.mxu0 %v206
      %v220 = vpop.f32.mrf.mxu0
      %v221 = vadd.f32 %v202, %v220
      %v222 = vpop.f32.mrf.mxu0
      %223 = vdwg.mxu0
      %v224 = vsel %vm204, %v221, -inf
      %225 = vmax.xlane.f32.xlu0 %v224
      %v226 = vpop.xlane.xlu0 %225
      %v227 = vsub.f32 %v221, %v226
      %v228 = vmul.f32 %v227, 1.442695
      %v229 = vpow.pop %v228
      %v230 = vsel %vm204, %v229, 0.0
      %231 = vadd.xlane.f32.xlu0 %v230
      %v232 = vpop.xlane.xlu0 %231
      %v233 = vrcp.pop %v232
      %v234 = vmul.f32 %v229, %v233
      %v235 = vpack.c.bf16 %v234, %v234
      %v237 = vunpack.c.l.b16 %v199
      %v238 = vpack.c.b16 %v237, %v237
      %239 = vrot.lane.b32.xlu0 %v238, 96
      %v240 = vpop.permute.xlu0 %239
      %v242 = vsel %vm204, %v235, 0
      %vm244 = vcmask 1043456
      %v246 = vsel %vm244, %v240, 0
      %248 = vmatpush.bf16.msra.mxu0 0
      %249 = vmatpush.bf16.msra.mxu0 0
      %250 = vmatpush.bf16.msra.mxu0 0
      %251 = vmatpush.bf16.msra.mxu0 0
      %252 = vmatpush.bf16.msra.mxu0 0
      %253 = vmatpush.bf16.msra.mxu0 0
      %254 = vmatpush.bf16.msra.mxu0 0
      %255 = vmatpush.bf16.msra.mxu0 %v246
      %256 = vmatmul.bf16.gmra.mxu0 %v242
      %v257 = vpop.f32.mrf.mxu0
      %v258 = vadd.f32 0.0, %v257
      %v259 = vpop.f32.mrf.mxu0
      %260 = vdwg.mxu0
      %v262 = vunpack.c.l.b16 %v198
      %v263 = vpack.c.b16 %v262, %v262
      %264 = vrot.lane.b32.xlu0 %v263, 120
      %v265 = vpop.permute.xlu0 %264
      %266 = vrot.lane.b32.xlu0 %v238, 120
      %v267 = vpop.permute.xlu0 %266
      %v269 = vsel %vm204, %v265, 0
      %v272 = vsel %vm204, %v267, 0
      %274 = vmatpush.bf16.xpose.msra.mxu0 0
      %275 = vmatpush.bf16.xpose.msra.mxu0 0
      %276 = vmatpush.bf16.xpose.msra.mxu0 0
      %277 = vmatpush.bf16.xpose.msra.mxu0 0
      %278 = vmatpush.bf16.xpose.msra.mxu0 0
      %279 = vmatpush.bf16.xpose.msra.mxu0 0
      %280 = vmatpush.bf16.xpose.msra.mxu0 0
      %281 = vmatpush.bf16.xpose.msra.mxu0 %v272
      %282 = vmatmul.bf16.gmra.mxu0 %v269
      %v283 = vpop.f32.mrf.mxu0
      %v284 = vadd.f32 %v202, %v283
      %v285 = vpop.f32.mrf.mxu0
      %286 = vdwg.mxu0
      %v287 = vsel %vm204, %v284, -inf
      %288 = vmax.xlane.f32.xlu0 %v287
      %v289 = vpop.xlane.xlu0 %288
      %v290 = vsub.f32 %v284, %v289
      %v291 = vmul.f32 %v290, 1.442695
      %v292 = vpow.pop %v291
      %v293 = vsel %vm204, %v292, 0.0
      %294 = vadd.xlane.f32.xlu0 %v293
      %v295 = vpop.xlane.xlu0 %294
      %v296 = vrcp.pop %v295
      %v297 = vmul.f32 %v292, %v296
      %v298 = vpack.c.bf16 %v297, %v297
      %299 = vrot.lane.b32.xlu0 %v238, 88
      %v300 = vpop.permute.xlu0 %299
      %v302 = vsel %vm204, %v298, 0
      %v305 = vsel %vm244, %v300, 0
      %307 = vmatpush.bf16.msra.mxu0 0
      %308 = vmatpush.bf16.msra.mxu0 0
      %309 = vmatpush.bf16.msra.mxu0 0
      %310 = vmatpush.bf16.msra.mxu0 0
      %311 = vmatpush.bf16.msra.mxu0 0
      %312 = vmatpush.bf16.msra.mxu0 0
      %313 = vmatpush.bf16.msra.mxu0 0
      %314 = vmatpush.bf16.msra.mxu0 %v305
      %315 = vmatmul.bf16.gmra.mxu0 %v302
      %v316 = vpop.f32.mrf.mxu0
      %v317 = vadd.f32 0.0, %v316
      %v318 = vpop.f32.mrf.mxu0
      %319 = vdwg.mxu0
      %320 = vrot.lane.b32.xlu0 %v263, 112
      %v321 = vpop.permute.xlu0 %320
      %322 = vrot.lane.b32.xlu0 %v238, 112
      %v323 = vpop.permute.xlu0 %322
      %v325 = vsel %vm204, %v321, 0
      %v328 = vsel %vm204, %v323, 0
      %330 = vmatpush.bf16.xpose.msra.mxu0 0
      %331 = vmatpush.bf16.xpose.msra.mxu0 0
      %332 = vmatpush.bf16.xpose.msra.mxu0 0
      %333 = vmatpush.bf16.xpose.msra.mxu0 0
      %334 = vmatpush.bf16.xpose.msra.mxu0 0
      %335 = vmatpush.bf16.xpose.msra.mxu0 0
      %336 = vmatpush.bf16.xpose.msra.mxu0 0
      %337 = vmatpush.bf16.xpose.msra.mxu0 %v328
      %338 = vmatmul.bf16.gmra.mxu0 %v325
      %v339 = vpop.f32.mrf.mxu0
      %v340 = vadd.f32 %v202, %v339
      %v341 = vpop.f32.mrf.mxu0
      %342 = vdwg.mxu0
      %v343 = vsel %vm204, %v340, -inf
      %344 = vmax.xlane.f32.xlu0 %v343
      %v345 = vpop.xlane.xlu0 %344
      %v346 = vsub.f32 %v340, %v345
      %v347 = vmul.f32 %v346, 1.442695
      %v348 = vpow.pop %v347
      %v349 = vsel %vm204, %v348, 0.0
      %350 = vadd.xlane.f32.xlu0 %v349
      %v351 = vpop.xlane.xlu0 %350
      %v352 = vrcp.pop %v351
      %v353 = vmul.f32 %v348, %v352
      %v354 = vpack.c.bf16 %v353, %v353
      %355 = vrot.lane.b32.xlu0 %v238, 80
      %v356 = vpop.permute.xlu0 %355
      %v358 = vsel %vm204, %v354, 0
      %v361 = vsel %vm244, %v356, 0
      %363 = vmatpush.bf16.msra.mxu0 0
      %364 = vmatpush.bf16.msra.mxu0 0
      %365 = vmatpush.bf16.msra.mxu0 0
      %366 = vmatpush.bf16.msra.mxu0 0
      %367 = vmatpush.bf16.msra.mxu0 0
      %368 = vmatpush.bf16.msra.mxu0 0
      %369 = vmatpush.bf16.msra.mxu0 0
      %370 = vmatpush.bf16.msra.mxu0 %v361
      %371 = vmatmul.bf16.gmra.mxu0 %v358
      %v372 = vpop.f32.mrf.mxu0
      %v373 = vadd.f32 0.0, %v372
      %v374 = vpop.f32.mrf.mxu0
      %375 = vdwg.mxu0
      %376 = vrot.lane.b32.xlu0 %v263, 104
      %v377 = vpop.permute.xlu0 %376
      %378 = vrot.lane.b32.xlu0 %v238, 104
      %v379 = vpop.permute.xlu0 %378
      %v381 = vsel %vm204, %v377, 0
      %v384 = vsel %vm204, %v379, 0
      %386 = vmatpush.bf16.xpose.msra.mxu0 0
      %387 = vmatpush.bf16.xpose.msra.mxu0 0
      %388 = vmatpush.bf16.xpose.msra.mxu0 0
      %389 = vmatpush.bf16.xpose.msra.mxu0 0
      %390 = vmatpush.bf16.xpose.msra.mxu0 0
      %391 = vmatpush.bf16.xpose.msra.mxu0 0
      %392 = vmatpush.bf16.xpose.msra.mxu0 0
      %393 = vmatpush.bf16.xpose.msra.mxu0 %v384
      %394 = vmatmul.bf16.gmra.mxu0 %v381
      %v395 = vpop.f32.mrf.mxu0
      %v396 = vadd.f32 %v202, %v395
      %v397 = vpop.f32.mrf.mxu0
      %398 = vdwg.mxu0
      %v399 = vsel %vm204, %v396, -inf
      %400 = vmax.xlane.f32.xlu0 %v399
      %v401 = vpop.xlane.xlu0 %400
      %v402 = vsub.f32 %v396, %v401
      %v403 = vmul.f32 %v402, 1.442695
      %v404 = vpow.pop %v403
      %v405 = vsel %vm204, %v404, 0.0
      %406 = vadd.xlane.f32.xlu0 %v405
      %v407 = vpop.xlane.xlu0 %406
      %v408 = vrcp.pop %v407
      %v409 = vmul.f32 %v404, %v408
      %v410 = vpack.c.bf16 %v409, %v409
      %411 = vrot.lane.b32.xlu0 %v238, 72
      %v412 = vpop.permute.xlu0 %411
      %v414 = vsel %vm204, %v410, 0
      %v417 = vsel %vm244, %v412, 0
      %419 = vmatpush.bf16.msra.mxu0 0
      %420 = vmatpush.bf16.msra.mxu0 0
      %421 = vmatpush.bf16.msra.mxu0 0
      %422 = vmatpush.bf16.msra.mxu0 0
      %423 = vmatpush.bf16.msra.mxu0 0
      %424 = vmatpush.bf16.msra.mxu0 0
      %425 = vmatpush.bf16.msra.mxu0 0
      %426 = vmatpush.bf16.msra.mxu0 %v417
      %427 = vmatmul.bf16.gmra.mxu0 %v414
      %v428 = vpop.f32.mrf.mxu0
      %v429 = vadd.f32 0.0, %v428
      %v430 = vpop.f32.mrf.mxu0
      %431 = vdwg.mxu0
      %433 = vrot.lane.b32.xlu0 %v317, 8
      %v434 = vpop.permute.xlu0 %433
      %437 = vrot.lane.b32.xlu0 %v373, 16
      %v438 = vpop.permute.xlu0 %437
      %441 = vrot.lane.b32.xlu0 %v429, 24
      %v442 = vpop.permute.xlu0 %441
      %v444 = vsel %vm204, %v258, %v434
      %vm445 = vcmask 130048
      %v446 = vsel %vm445, %v444, %v438
      %vm447 = vcmask 195584
      %v448 = vsel %vm447, %v446, %v442
      %v449 = vpack.c.bf16 %v448, %v448
      %vm450 = vcmask 257024
      %451 = vst.msk [vmem:[%s196] sm:$0xf] %vm450, %v449
      %p452 = scmp.lt.s32.totalorder %s14, 1
      %s453 = scalar_select %p452, %s14, 1
      %s454 = smul.addr %s453, 4
      %s455 = scalar_lea.vmem %s3, %s454
      // Predicated region
      $region33: #{distill_backbone_forward.36} parent=31 // pred_check
        %p456 = pneg %p110
      $region34: #{distill_backbone_forward.36} parent=31 // pred_check_branch
        %458 = sbr.rel (%p456) target = $region36
      $region35: #{distill_backbone_forward.36} parent=31 // pred_region
        _
      $region36: #{distill_backbone_forward.36} parent=31 // pred_fallthru
        _
    $region32: #{distill_backbone_forward.36} parent=5 // pred_fallthru
      _
    %p459 = scmp.le.s32.totalorder 2, %s9
    // Predicated region
    $region37: #{distill_backbone_forward.36} parent=5 // pred_check
      %p460 = pneg %p459
    $region38: #{distill_backbone_forward.36} parent=5 // pred_check_branch
      %462 = sbr.rel (%p460) target = $region40
    $region39: #{distill_backbone_forward.36} parent=5 // pred_region
      %s463 = ssub.s32 %s9, 2
      // Predicated region
      $region41: #{distill_backbone_forward.36} parent=39 // pred_check
        %p464 = pneg %p116
      $region42: #{distill_backbone_forward.36} parent=39 // pred_check_branch
        %466 = sbr.rel (%p464) target = $region44
      $region43: #{distill_backbone_forward.36} parent=39 // pred_region
        %p467 = scmp.lt.s32.totalorder %s15, 1
        %s468 = scalar_select %p467, %s15, 1
        %s469 = smul.addr %s468, 4
        %s470 = scalar_lea.vmem %s3, %s469
      $region44: #{distill_backbone_forward.36} parent=39 // pred_fallthru
        _
    $region40: #{distill_backbone_forward.36} parent=5 // pred_fallthru
      _
  $region6: #{distill_backbone_forward.36} parent=0 // loop_footer
    %s13 = sadd.s32 1, %s9
  $region7: #{distill_backbone_forward.36} parent=0 // loop_footer_branch
    %8 = sbr.rel target = $region3
  $region8: #{distill_backbone_forward.36} parent=0 // loop_exit
    _

// kernel: distill_backbone_forward.41
$region0: #{distill_backbone_forward.41}
  #allocation0 [shape = 'u32[]', space=smem, size = 0x4, offset = 0x4, fixed_abs, tag = 'smem constant byte address 0x4 - core index']
  #allocation1 [shape = 'u32[72,128]{1,0:T(1,128)}', space=vmem, size = 0x9000, scoped, tag = 'internal scratch']
  %s0 = inlined_call_operand.vmem [shape: bf16[8,32], index: 0, kind: input, shape index: {}]
  %s1 = inlined_call_operand.vmem [shape: f32[1,32], index: 1, kind: input, shape index: {}]
  %s2 = inlined_call_operand.vmem [shape: bf16[32,128], index: 2, kind: input, shape index: {}]
  %s3 = inlined_call_operand.vmem [shape: f32[1,128], index: 3, kind: input, shape index: {}]
  %s4 = inlined_call_operand.vmem [shape: f32[8,128], index: 4, kind: output, shape index: {}]
  %s5 = sld [smem:[#allocation0]]
  $region26: #{distill_backbone_forward.41} parent=0
    _
  %s7 = ssub.s32 1, %s5
  %s8 = scalar_select 0, %s7, %s5
  // Predicated region
  $region2: #{distill_backbone_forward.41} parent=0 // pred_check
    _
  $region3: #{distill_backbone_forward.41} parent=0 // pred_check_branch
    %10 = sbr.rel (0) target = $region5
  $region4: #{distill_backbone_forward.41} parent=0 // pred_region
    _
  $region5: #{distill_backbone_forward.41} parent=0 // pred_fallthru
    _
  // Predicated region
  $region6: #{distill_backbone_forward.41} parent=0 // pred_check
    _
  $region7: #{distill_backbone_forward.41} parent=0 // pred_check_branch
    %12 = sbr.rel (0) target = $region9
  $region8: #{distill_backbone_forward.41} parent=0 // pred_region
    _
  $region9: #{distill_backbone_forward.41} parent=0 // pred_fallthru
    _
  // Predicated region
  $region10: #{distill_backbone_forward.41} parent=0 // pred_check
    _
  $region11: #{distill_backbone_forward.41} parent=0 // pred_check_branch
    %14 = sbr.rel (0) target = $region13
  $region12: #{distill_backbone_forward.41} parent=0 // pred_region
    _
  $region13: #{distill_backbone_forward.41} parent=0 // pred_fallthru
    _
  // Predicated region
  $region14: #{distill_backbone_forward.41} parent=0 // pred_check
    _
  $region15: #{distill_backbone_forward.41} parent=0 // pred_check_branch
    %16 = sbr.rel (0) target = $region17
  $region16: #{distill_backbone_forward.41} parent=0 // pred_region
    _
  $region17: #{distill_backbone_forward.41} parent=0 // pred_fallthru
    _
  %v18 = vld [vmem:[%s0] sm:$0xf]
  %v19 = vunpack.c.l.bf16 %v18
  %v20 = vmul.f32 %v19, %v19
  %vm21 = vcmask 261120
  %v22 = vsel %vm21, %v20, 0.0
  %23 = vadd.xlane.f32.xlu0 %v22
  %v24 = vpop.xlane.xlu0 %23
  %v25 = vrcp.pop 32.0
  %v26 = vmul.f32 32.0, %v25
  %v27 = vsub.f32 1.0, %v26
  %v28 = vmul.f32 %v25, %v27
  %v29 = vadd.f32 %v25, %v28
  %vm30 = vweird.f32 %v25
  %v31 = vsel %vm30, %v25, %v29
  %v32 = vmul.f32 %v24, %v31
  %v33 = vadd.f32 %v32, 1e-06
  %v34 = vrsqrt.pop %v33
  %v35 = vmul.f32 %v34, %v33
  %v36 = vmul.f32 %v35, %v34
  %v37 = vmul.f32 0.5, %v36
  %v38 = vsub.f32 1.5, %v37
  %v39 = vmul.f32 %v34, %v38
  %vm40 = vweird.f32 %v33
  %vm41 = vweird.f32 %v34
  %vm42 = vmor %vm40, %vm41
  %v43 = vsel %vm42, %v34, %v39
  %v44 = vmul.f32 %v19, %v43
  %v45 = vld [vmem:[%s1] sm:$0x1]
  %v47 = vperm.slane %v45, 0
  %v49 = vmul.f32 %v44, %v47
  %v50 = vpack.c.bf16 %v49, %v49
  %v51 = vld [vmem:[%s2] sm:$0xf]
  %v52 = vld [vmem:[%s2 + $0x4] sm:$0xf]
  %v53 = vld [vmem:[%s2 + $0x8] sm:$0xf]
  %v54 = vld [vmem:[%s2 + $0xc] sm:$0xf]
  %v55 = vld [vmem:[%s3] sm:$0x1]
  %v57 = vperm.slane %v55, 0
  %v63 = vunpack.c.l.b16 %v51
  %v64 = vunpack.c.l.b16 %v52
  %v65 = vunpack.c.l.b16 %v53
  %v66 = vunpack.c.l.b16 %v54
  %v67 = vpack.c.b16 %v64, %v63
  %v68 = vpack.c.b16 %v66, %v65
  %v72 = vsel %vm21, %v50, 0
  %74 = vmatpush.bf16.msra.mxu0 0
  %75 = vmatpush.bf16.msra.mxu0 0
  %76 = vmatpush.bf16.msra.mxu0 0
  %77 = vmatpush.bf16.msra.mxu0 0
  %78 = vmatpush.bf16.msra.mxu0 0
  %79 = vmatpush.bf16.msra.mxu0 0
  %80 = vmatpush.bf16.msra.mxu0 %v68
  %81 = vmatpush.bf16.msra.mxu0 %v67
  %82 = vmatmul.bf16.gmra.mxu0 %v72
  %v83 = vpop.f32.mrf.mxu0
  %v84 = vadd.f32 %v57, %v83
  %v85 = vpop.f32.mrf.mxu0
  %86 = vdwg.mxu0
  %87 = vmax.xlane.f32.xlu0 %v84
  %v88 = vpop.xlane.xlu0 %87
  %v89 = vsub.f32 %v84, %v88
  %v90 = vmul.f32 %v89, 1.442695
  %v91 = vpow.pop %v90
  %92 = vadd.xlane.f32.xlu0 %v91
  %v93 = vpop.xlane.xlu0 %92
  %v94 = vlog2.pop %v93
  %v95 = vmul.f32 %v94, 0.6931472
  %v96 = vsub.f32 %v89, %v95
  %97 = vst [vmem:[%s4] sm:$0xff] %v96
  // Predicated region
  $region18: #{distill_backbone_forward.41} parent=0 // pred_check
    _
  $region19: #{distill_backbone_forward.41} parent=0 // pred_check_branch
    %99 = sbr.rel (0) target = $region21
  $region20: #{distill_backbone_forward.41} parent=0 // pred_region
    _
  $region21: #{distill_backbone_forward.41} parent=0 // pred_fallthru
    _
  // Predicated region
  $region22: #{distill_backbone_forward.41} parent=0 // pred_check
    _
  $region23: #{distill_backbone_forward.41} parent=0 // pred_check_branch
    %101 = sbr.rel (0) target = $region25
  $region24: #{distill_backbone_forward.41} parent=0 // pred_region
    _
  $region25: #{distill_backbone_forward.41} parent=0 // pred_fallthru
    _

</llo_original>
